<compile_context>
chip_gen: v5e
topology: v5e:2x2
jax: 0.10.0
libtpu: 0.0.40
codegen_flags: <defaults>
</compile_context>

<pallas_src>
import math
from functools import partial

import jax
import jax.numpy as jnp
from jax.experimental import pallas as pl
from jax.experimental.pallas import tpu as pltpu

# ---------------- scaled-down synthetic ViT config -----------------
B = 2                      # batch
C_IN = 3                   # input channels (RGB, like ViT)
IMG = 16                   # spatial size (224 in the real model)
PATCH = 4                  # patch size (16 in the real model)
N_PATCH = (IMG // PATCH) ** 2          # 16 patches
P_DIM = C_IN * PATCH * PATCH           # 48 = flattened patch dim
D = 32                     # embed dim (768 in ViT-B)
NH = 2                     # attention heads
DH = D // NH               # head dim
MLP = 4 * D                # MLP hidden (128)
DEPTH = 2                  # transformer blocks (12 in ViT-B)
T = N_PATCH + 1            # real tokens incl. CLS (17)
T_PAD = 24                 # token rows padded to a multiple of 8 sublanes
NB_CLASSES = 10            # fc head from update_fc(nb_classes)
NB_PAD = 128               # lane-dense padded width (logits / features / slab)
EPS = 1e-6                 # timm ViT LayerNorm eps

# ---------------- packed weight-slab layout (rows x 128 lanes, f32) ----------
# All weight-matrix row offsets are multiples of 8 (sublane aligned).
R_WPATCH = 0                       # (P_DIM, D)      patch-embed weight
R_POS = R_WPATCH + P_DIM           # (N_PATCH, D)    pos-embed[1:] + patch-embed bias (folded)
R_CLS = R_POS + N_PATCH            # (8, D)          row 0 = cls + pos[0], rows 1..7 = 0
R_GVEC = R_CLS + 8                 # (8, 128)        row 0 = lnf_w, row 1 = lnf_b, row 2 = head_b
R_HEADW = R_GVEC + 8               # (D, 128)        fc head weight, lane-padded to 128
R_LAYER0 = R_HEADW + D
LAYER_ROWS = 3 * D + MLP + 8       # qkv_w(32) + proj_w(32) + fc1_w(32) + fc2_w(128) + vec(8) = 232
# per-layer relative offsets
LO_QKVW = 0                        # (D, 3D)
LO_PROJW = D                       # (D, D)
LO_FC1W = 2 * D                    # (D, MLP)
LO_FC2W = 3 * D                    # (MLP, D)
LO_VEC = 3 * D + MLP               # (8, 128): ln1_w, ln1_b, ln2_w, ln2_b, qkv_b, proj_b, fc1_b, fc2_b
SLAB_ROWS = R_LAYER0 + DEPTH * LAYER_ROWS   # 576


def _layernorm(x, w, b):
    mu = jnp.mean(x, axis=-1, keepdims=True)
    var = jnp.mean(jnp.square(x - mu), axis=-1, keepdims=True)
    return (x - mu) * jax.lax.rsqrt(var + EPS) * w + b


def basenet_vit_kernel(patches_ref, wslab_ref, feat_ref, logits_ref, *, gb):
    """One grid step processes `gb` batch elements stacked along sublanes."""
    W = wslab_ref

    # ---- unpack weights (static slices of the packed slab; no extra DMAs) ----
    w_patch = W[R_WPATCH:R_WPATCH + P_DIM, :D]          # (P_DIM, D)
    pos_pat = W[R_POS:R_POS + N_PATCH, :D]              # (N_PATCH, D), incl. patch-embed bias
    cls_blk = W[R_CLS:R_CLS + 8, :D]                    # (8, D): row 0 = cls + pos[0]
    lnf_w = W[R_GVEC + 0:R_GVEC + 1, :D]
    lnf_b = W[R_GVEC + 1:R_GVEC + 2, :D]
    head_b = W[R_GVEC + 2:R_GVEC + 3, :]                # (1, 128)
    head_w = W[R_HEADW:R_HEADW + D, :]                  # (D, 128)

    # ---- patch embedding for all gb batch elems in one MXU push ----
    patches = patches_ref[...]                          # (gb*N_PATCH, P_DIM)
    emb = jnp.dot(patches, w_patch, preferred_element_type=jnp.float32)

    # Token layout per batch element (sublane aligned):
    #   rows 0..15 = patch tokens, row 16 = CLS, rows 17..23 = zero pad.
    rows = []
    for bi in range(gb):
        rows.append(emb[bi * N_PATCH:(bi + 1) * N_PATCH] + pos_pat)
        rows.append(cls_blk)
    x = jnp.concatenate(rows, axis=0)                   # (gb*T_PAD, D)

    # Additive key mask: pad tokens (cols >= T) never receive attention weight.
    key_mask = jnp.where(
        jax.lax.broadcasted_iota(jnp.int32, (1, T_PAD), 1) < T,
        0.0, -1e30).astype(jnp.float32)                 # (1, T_PAD), stays f32

    scale = 1.0 / math.sqrt(DH)
    for l in range(DEPTH):                              # static unroll
        base = R_LAYER0 + l * LAYER_ROWS
        qkv_w = W[base + LO_QKVW:base + LO_QKVW + D, :3 * D]
        proj_w = W[base + LO_PROJW:base + LO_PROJW + D, :D]
        fc1_w = W[base + LO_FC1W:base + LO_FC1W + D, :]
        fc2_w = W[base + LO_FC2W:base + LO_FC2W + MLP, :D]
        vec = W[base + LO_VEC:base + LO_VEC + 8, :]     # (8, 128)
        ln1_w, ln1_b = vec[0:1, :D], vec[1:2, :D]
        ln2_w, ln2_b = vec[2:3, :D], vec[3:4, :D]
        qkv_b = vec[4:5, :3 * D]
        proj_b = vec[5:6, :D]
        fc1_b = vec[6:7, :]
        fc2_b = vec[7:8, :D]

        # --- multi-head self-attention: one fused QKV matmul per layer ---
        h = _layernorm(x, ln1_w, ln1_b)
        qkv = jnp.dot(h, qkv_w, preferred_element_type=jnp.float32) + qkv_b   # (gb*T_PAD, 3D)

        o_rows = []
        for bi in range(gb):                            # static unroll (8-aligned row slices)
            r0 = bi * T_PAD
            o_heads = []
            for hd in range(NH):                        # static unroll (16-lane value slices)
                c = hd * DH
                q = qkv[r0:r0 + T_PAD, c:c + DH]
                k = qkv[r0:r0 + T_PAD, D + c:D + c + DH]
                v = qkv[r0:r0 + T_PAD, 2 * D + c:2 * D + c + DH]
                # q @ k^T without materializing a transpose of k
                s = jax.lax.dot_general(q, k, (((1,), (1,)), ((), ())),
                                        preferred_element_type=jnp.float32)
                s = s * scale + key_mask
                s = s - jnp.max(s, axis=-1, keepdims=True)
                p = jnp.exp(s)
                denom = jnp.sum(p, axis=-1, keepdims=True)
                inv = pl.reciprocal(denom, approx=True)          # EUP slot
                inv = inv * (2.0 - denom * inv)                  # Newton -> f32 accuracy
                o_heads.append(jnp.dot(p, v, preferred_element_type=jnp.float32) * inv)
            o_rows.append(jnp.concatenate(o_heads, axis=-1))     # (T_PAD, D)
        o = jnp.concatenate(o_rows, axis=0)                      # (gb*T_PAD, D)
        # single fused output projection
        x = x + jnp.dot(o, proj_w, preferred_element_type=jnp.float32) + proj_b

        # --- MLP ---
        h2 = _layernorm(x, ln2_w, ln2_b)
        m = jax.nn.gelu(jnp.dot(h2, fc1_w, preferred_element_type=jnp.float32) + fc1_b)
        x = x + jnp.dot(m, fc2_w, preferred_element_type=jnp.float32) + fc2_b

    # ---- final norm; CLS token (row N_PATCH of each batch block) is the feature ----
    xf = _layernorm(x, lnf_w, lnf_b)
    feat = jnp.concatenate(
        [xf[bi * T_PAD + N_PATCH: bi * T_PAD + N_PATCH + 1] for bi in range(gb)],
        axis=0)                                                  # (gb, D)
    feat_pad = jnp.concatenate(
        [feat, jnp.zeros((gb, NB_PAD - D), jnp.float32)], axis=-1)   # lane-dense (gb, 128)
    logits = jnp.dot(feat, head_w, preferred_element_type=jnp.float32) + head_b   # (gb, 128)

    feat_ref[:, 0, :] = feat_pad            # unmasked 128-lane store
    logits_ref[:, 0, :] = logits            # unmasked 128-lane store


def prepare_weights(p):
    """One-time layout packing of all parameters into a single (576, 128) f32 slab."""
    slab = jnp.zeros((SLAB_ROWS, NB_PAD), jnp.float32)

    def put(s, r, arr):
        arr = jnp.asarray(arr, jnp.float32)
        return s.at[r:r + arr.shape[0], :arr.shape[1]].set(arr)

    slab = put(slab, R_WPATCH, p['w_patch'])
    slab = put(slab, R_POS, p['pos'][1:] + p['b_patch'])        # fold patch-embed bias into pos
    slab = put(slab, R_CLS, p['cls'] + p['pos'][0:1])           # row 0 = cls + pos[0]
    slab = put(slab, R_GVEC + 0, p['lnf_w'])
    slab = put(slab, R_GVEC + 1, p['lnf_b'])
    slab = put(slab, R_GVEC + 2, p['head_b'])
    slab = put(slab, R_HEADW, p['head_w'])
    for l in range(DEPTH):
        base = R_LAYER0 + l * LAYER_ROWS
        slab = put(slab, base + LO_QKVW, p['qkv_w'][l])
        slab = put(slab, base + LO_PROJW, p['proj_w'][l])
        slab = put(slab, base + LO_FC1W, p['fc1_w'][l])
        slab = put(slab, base + LO_FC2W, p['fc2_w'][l])
        vb = base + LO_VEC
        slab = put(slab, vb + 0, p['ln1_w'][l])
        slab = put(slab, vb + 1, p['ln1_b'][l])
        slab = put(slab, vb + 2, p['ln2_w'][l])
        slab = put(slab, vb + 3, p['ln2_b'][l])
        slab = put(slab, vb + 4, p['qkv_b'][l])
        slab = put(slab, vb + 5, p['proj_b'][l])
        slab = put(slab, vb + 6, p['fc1_b'][l])
        slab = put(slab, vb + 7, p['fc2_b'][l])
    return slab


def _default_batch_block(b):
    """v7x: 2 TCs -> keep 2 parallel grid steps. v5e/v6e: single TC -> collapse batch."""
    n_cores = 1
    try:
        kind = jax.devices()[0].device_kind.lower()
        if 'v7' in kind:
            n_cores = 2
    except Exception:
        pass
    gb = max(1, math.ceil(b / n_cores))
    while b % gb:
        gb += 1
    return min(gb, b)


@partial(jax.jit, static_argnames=('batch_block',))
def basenet_forward(x_nchw, wslab, batch_block=None):
    """BaseNet.forward for the ViT branch: {'features': ..., 'logits': ...}."""
    b, c, h, w = x_nchw.shape
    assert (c, h, w) == (C_IN, IMG, IMG)
    gb = batch_block if batch_block is not None else _default_batch_block(b)
    assert b % gb == 0
    n_steps = b // gb

    # NCHW -> (B*N_patches, C*ph*pw)   (pure layout glue, outside the kernel)
    patches = x_nchw.reshape(b, C_IN, IMG // PATCH, PATCH, IMG // PATCH, PATCH)
    patches = patches.transpose(0, 2, 4, 1, 3, 5).reshape(b * N_PATCH, P_DIM)

    in_specs = [
        pl.BlockSpec((gb * N_PATCH, P_DIM), lambda i: (i, 0)),        # per-step patch rows
        pl.BlockSpec((SLAB_ROWS, NB_PAD), lambda i: (0, 0)),          # grid-invariant weight slab
    ]
    out_shape = (jax.ShapeDtypeStruct((b, 1, NB_PAD), jnp.float32),   # features (lane-padded)
                 jax.ShapeDtypeStruct((b, 1, NB_PAD), jnp.float32))   # logits   (lane-padded)
    out_specs = [pl.BlockSpec((gb, 1, NB_PAD), lambda i: (i, 0, 0)),
                 pl.BlockSpec((gb, 1, NB_PAD), lambda i: (i, 0, 0))]

    # advisory cost estimate so XLA schedules surrounding glue around this call
    flops_per_b = (2 * N_PATCH * P_DIM * D
                   + DEPTH * (2 * T_PAD * D * 3 * D             # fused qkv
                              + 4 * NH * T_PAD * T_PAD * DH     # scores + p@v
                              + 2 * T_PAD * D * D               # proj
                              + 4 * T_PAD * D * MLP)            # fc1 + fc2
                   + 2 * D * NB_PAD)
    cost = pl.CostEstimate(
        flops=b * flops_per_b,
        transcendentals=b * DEPTH * (NH * T_PAD * T_PAD + T_PAD * MLP + NH * T_PAD),
        bytes_accessed=int(wslab.size) * 4 + int(patches.size) * 4 + b * 2 * NB_PAD * 4)

    feats_pad, logits_pad = pl.pallas_call(
        partial(basenet_vit_kernel, gb=gb),
        out_shape=out_shape,
        grid_spec=pltpu.PrefetchScalarGridSpec(
            num_scalar_prefetch=0,
            grid=(n_steps,),
            in_specs=in_specs,
            out_specs=out_specs),
        compiler_params=pltpu.CompilerParams(
            dimension_semantics=("parallel",),          # batch groups independent
            vmem_limit_bytes=32 * 1024 * 1024),
        cost_estimate=cost,
    )(patches, wslab)

    return {'features': feats_pad[:, 0, :D],
            'logits': logits_pad[:, 0, :NB_CLASSES]}


def init_params(key):
    keys = jax.random.split(key, 16)
    kit = iter(keys)

    def nrm(shape, s=0.02):
        return jax.random.normal(next(kit), shape, jnp.float32) * s

    return {
        'w_patch': nrm((P_DIM, D)),
        'b_patch': jnp.zeros((1, D), jnp.float32),
        'cls':     nrm((1, D)),
        'pos':     nrm((T, D)),
        'ln1_w':   jnp.ones((DEPTH, 1, D), jnp.float32),
        'ln1_b':   jnp.zeros((DEPTH, 1, D), jnp.float32),
        'qkv_w':   nrm((DEPTH, D, 3 * D)),
        'qkv_b':   jnp.zeros((DEPTH, 1, 3 * D), jnp.float32),
        'proj_w':  nrm((DEPTH, D, D)),
        'proj_b':  jnp.zeros((DEPTH, 1, D), jnp.float32),
        'ln2_w':   jnp.ones((DEPTH, 1, D), jnp.float32),
        'ln2_b':   jnp.zeros((DEPTH, 1, D), jnp.float32),
        'fc1_w':   nrm((DEPTH, D, MLP)),
        'fc1_b':   jnp.zeros((DEPTH, 1, MLP), jnp.float32),
        'fc2_w':   nrm((DEPTH, MLP, D)),
        'fc2_b':   jnp.zeros((DEPTH, 1, D), jnp.float32),
        'lnf_w':   jnp.ones((1, D), jnp.float32),
        'lnf_b':   jnp.zeros((1, D), jnp.float32),
        'head_w':  nrm((D, NB_CLASSES), 1.0 / math.sqrt(D)),
        'head_b':  jnp.zeros((1, NB_CLASSES), jnp.float32),
    }


def reference_forward(x_nchw, p):
    """Pure-JAX reference of the same math (for correctness checking)."""
    b = x_nchw.shape[0]
    patches = x_nchw.reshape(b, C_IN, IMG // PATCH, PATCH, IMG // PATCH, PATCH)
    patches = patches.transpose(0, 2, 4, 1, 3, 5).reshape(b, N_PATCH, P_DIM)
    emb = patches @ p['w_patch'] + p['b_patch']
    cls = jnp.broadcast_to(p['cls'][None], (b, 1, D))
    x = jnp.concatenate([cls, emb], axis=1) + p['pos'][None]
    scale = 1.0 / math.sqrt(DH)

    def ln(t, w, bb):
        mu = t.mean(-1, keepdims=True)
        var = ((t - mu) ** 2).mean(-1, keepdims=True)
        return (t - mu) * jax.lax.rsqrt(var + EPS) * w + bb

    for l in range(DEPTH):
        h = ln(x, p['ln1_w'][l], p['ln1_b'][l])
        qkv = h @ p['qkv_w'][l] + p['qkv_b'][l]
        q, k, v = qkv[..., :D], qkv[..., D:2 * D], qkv[..., 2 * D:]

        def sh(t):
            return t.reshape(b, T, NH, DH).transpose(0, 2, 1, 3)

        qh, kh, vh = sh(q), sh(k), sh(v)
        s = jnp.einsum('bhtd,bhsd->bhts', qh, kh) * scale
        pa = jax.nn.softmax(s, axis=-1)
        a = jnp.einsum('bhts,bhsd->bhtd', pa, vh).transpose(0, 2, 1, 3).reshape(b, T, D)
        x = x + a @ p['proj_w'][l] + p['proj_b'][l]
        h2 = ln(x, p['ln2_w'][l], p['ln2_b'][l])
        m = jax.nn.gelu(h2 @ p['fc1_w'][l] + p['fc1_b'][l])
        x = x + m @ p['fc2_w'][l] + p['fc2_b'][l]

    x = ln(x, p['lnf_w'], p['lnf_b'])
    feat = x[:, 0, :]
    logits = feat @ p['head_w'] + p['head_b']
    return {'features': feat, 'logits': logits}


if __name__ == "__main__":
    key = jax.random.PRNGKey(0)
    k_x, k_p = jax.random.split(key)
    x = jax.random.normal(k_x, (B, C_IN, IMG, IMG), jnp.float32)   # NCHW like PyTorch
    params = init_params(k_p)

    # one-time weight packing, hoisted out of the per-call path
    wslab = jax.block_until_ready(prepare_weights(params))

    out = basenet_forward(x, wslab)
    jax.block_until_ready(out['features'])
    jax.block_until_ready(out['logits'])

    ref = reference_forward(x, params)
    assert out['features'].shape == (B, D)
    assert out['logits'].shape == (B, NB_CLASSES)
    assert jnp.allclose(out['features'], ref['features'], atol=2e-3, rtol=2e-3)
    assert jnp.allclose(out['logits'], ref['logits'], atol=2e-3, rtol=2e-3)

    print("KERNEL_OK")
</pallas_src>

<mosaic_0001>
module attributes {stable_mosaic.version = 11 : i64} {
  func.func @basenet_vit_kernel(%arg0: i32, %arg1: memref<32x48xf32, #tpu.memory_space<vmem>>, %arg2: memref<576x128xf32, #tpu.memory_space<vmem>>, %arg3: memref<2x1x128xf32, #tpu.memory_space<vmem>>, %arg4: memref<2x1x128xf32, #tpu.memory_space<vmem>>) attributes {dimension_semantics = [#tpu.dimension_semantics<parallel>], iteration_bounds = array<i64: 1>, scalar_prefetch = 0 : i64, scratch_operands = 0 : i64, tpu.core_type = #tpu.core_type<tc>, window_params = [{transform_indices = @transform_0, window_bounds = array<i64: 32, 48>}, {pipeline_mode = #tpu.pipeline_mode<synchronous>, transform_indices = @transform_1, window_bounds = array<i64: 576, 128>}, {transform_indices = @transform_2, window_bounds = array<i64: 2, 1, 128>}, {transform_indices = @transform_3, window_bounds = array<i64: 2, 1, 128>}]} {
    %c0 = arith.constant 0 : index
    %c0_0 = arith.constant 0 : index
    %0 = vector.load %arg2[%c0, %c0_0] : memref<576x128xf32, #tpu.memory_space<vmem>>, vector<48x32xf32>
    %c48 = arith.constant 48 : index
    %c0_1 = arith.constant 0 : index
    %1 = vector.load %arg2[%c48, %c0_1] : memref<576x128xf32, #tpu.memory_space<vmem>>, vector<16x32xf32>
    %c64 = arith.constant 64 : index
    %c0_2 = arith.constant 0 : index
    %2 = vector.load %arg2[%c64, %c0_2] : memref<576x128xf32, #tpu.memory_space<vmem>>, vector<8x32xf32>
    %c72 = arith.constant 72 : index
    %c0_3 = arith.constant 0 : index
    %3 = vector.load %arg2[%c72, %c0_3] : memref<576x128xf32, #tpu.memory_space<vmem>>, vector<1x32xf32>
    %c73 = arith.constant 73 : index
    %c0_4 = arith.constant 0 : index
    %4 = vector.load %arg2[%c73, %c0_4] : memref<576x128xf32, #tpu.memory_space<vmem>>, vector<1x32xf32>
    %c74 = arith.constant 74 : index
    %c0_5 = arith.constant 0 : index
    %5 = vector.load %arg2[%c74, %c0_5] : memref<576x128xf32, #tpu.memory_space<vmem>>, vector<1x128xf32>
    %c80 = arith.constant 80 : index
    %c0_6 = arith.constant 0 : index
    %6 = vector.load %arg2[%c80, %c0_6] : memref<576x128xf32, #tpu.memory_space<vmem>>, vector<32x128xf32>
    %c0_7 = arith.constant 0 : index
    %c0_8 = arith.constant 0 : index
    %7 = vector.load %arg1[%c0_7, %c0_8] : memref<32x48xf32, #tpu.memory_space<vmem>>, vector<32x48xf32>
    %cst = arith.constant dense<0.000000e+00> : vector<32x32xf32>
    %8 = tpu.matmul %7, %0, %cst {dimension_numbers = #tpu.dot_dimension_numbers<[1], [0], [0], [1], [0, 0, 1, 1], [], []>} : vector<32x48xf32>, vector<48x32xf32>, vector<32x32xf32> -> vector<32x32xf32>
    %9 = vector.extract_strided_slice %8 {offsets = [0, 0], sizes = [16, 32], strides = [1, 1]} : vector<32x32xf32> to vector<16x32xf32>
    %10 = arith.addf %9, %1 : vector<16x32xf32>
    %11 = vector.extract_strided_slice %8 {offsets = [16, 0], sizes = [16, 32], strides = [1, 1]} : vector<32x32xf32> to vector<16x32xf32>
    %12 = arith.addf %11, %1 : vector<16x32xf32>
    %13 = tpu.concatenate %10, %2, %12, %2 in 0 : vector<16x32xf32>, vector<8x32xf32>, vector<16x32xf32>, vector<8x32xf32> -> vector<48x32xf32>
    %14 = tpu.iota {dimensions = array<i32: 1>} : vector<1x24xi32>
    %c17_i32 = arith.constant 17 : i32
    %15 = vector.broadcast %c17_i32 : i32 to vector<1x24xi32>
    %16 = arith.cmpi slt, %14, %15 : vector<1x24xi32>
    %cst_9 = arith.constant 0.000000e+00 : f32
    %cst_10 = arith.constant -1.000000e+30 : f32
    %17 = vector.broadcast %cst_9 : f32 to vector<1x24xf32>
    %18 = vector.broadcast %cst_10 : f32 to vector<1x24xf32>
    %19 = arith.select %16, %17, %18 : vector<1x24xi1>, vector<1x24xf32>
    %c112 = arith.constant 112 : index
    %c0_11 = arith.constant 0 : index
    %20 = vector.load %arg2[%c112, %c0_11] : memref<576x128xf32, #tpu.memory_space<vmem>>, vector<32x96xf32>
    %c144 = arith.constant 144 : index
    %c0_12 = arith.constant 0 : index
    %21 = vector.load %arg2[%c144, %c0_12] : memref<576x128xf32, #tpu.memory_space<vmem>>, vector<32x32xf32>
    %c176 = arith.constant 176 : index
    %c0_13 = arith.constant 0 : index
    %22 = vector.load %arg2[%c176, %c0_13] : memref<576x128xf32, #tpu.memory_space<vmem>>, vector<32x128xf32>
    %c208 = arith.constant 208 : index
    %c0_14 = arith.constant 0 : index
    %23 = vector.load %arg2[%c208, %c0_14] : memref<576x128xf32, #tpu.memory_space<vmem>>, vector<128x32xf32>
    %c336 = arith.constant 336 : index
    %c0_15 = arith.constant 0 : index
    %24 = vector.load %arg2[%c336, %c0_15] : memref<576x128xf32, #tpu.memory_space<vmem>>, vector<8x128xf32>
    %25 = vector.extract_strided_slice %24 {offsets = [0, 0], sizes = [1, 32], strides = [1, 1]} : vector<8x128xf32> to vector<1x32xf32>
    %26 = vector.extract_strided_slice %24 {offsets = [1, 0], sizes = [1, 32], strides = [1, 1]} : vector<8x128xf32> to vector<1x32xf32>
    %27 = vector.extract_strided_slice %24 {offsets = [2, 0], sizes = [1, 32], strides = [1, 1]} : vector<8x128xf32> to vector<1x32xf32>
    %28 = vector.extract_strided_slice %24 {offsets = [3, 0], sizes = [1, 32], strides = [1, 1]} : vector<8x128xf32> to vector<1x32xf32>
    %29 = vector.extract_strided_slice %24 {offsets = [4, 0], sizes = [1, 96], strides = [1, 1]} : vector<8x128xf32> to vector<1x96xf32>
    %30 = vector.extract_strided_slice %24 {offsets = [5, 0], sizes = [1, 32], strides = [1, 1]} : vector<8x128xf32> to vector<1x32xf32>
    %31 = vector.extract_strided_slice %24 {offsets = [6, 0], sizes = [1, 128], strides = [1, 1]} : vector<8x128xf32> to vector<1x128xf32>
    %32 = vector.extract_strided_slice %24 {offsets = [7, 0], sizes = [1, 32], strides = [1, 1]} : vector<8x128xf32> to vector<1x32xf32>
    %cst_16 = arith.constant dense<0.000000e+00> : vector<48xf32>
    %33 = vector.multi_reduction <add>, %13, %cst_16 [1] : vector<48x32xf32> to vector<48xf32>
    %34 = vector.shape_cast %33 : vector<48xf32> to vector<48x1xf32>
    %cst_17 = arith.constant 3.200000e+01 : f32
    %35 = vector.broadcast %cst_17 : f32 to vector<48x1xf32>
    %36 = arith.divf %34, %35 : vector<48x1xf32>
    %37 = vector.broadcast %36 : vector<48x1xf32> to vector<48x32xf32>
    %38 = arith.subf %13, %37 : vector<48x32xf32>
    %39 = arith.mulf %38, %38 : vector<48x32xf32>
    %cst_18 = arith.constant dense<0.000000e+00> : vector<48xf32>
    %40 = vector.multi_reduction <add>, %39, %cst_18 [1] : vector<48x32xf32> to vector<48xf32>
    %41 = vector.shape_cast %40 : vector<48xf32> to vector<48x1xf32>
    %cst_19 = arith.constant 3.200000e+01 : f32
    %42 = vector.broadcast %cst_19 : f32 to vector<48x1xf32>
    %43 = arith.divf %41, %42 : vector<48x1xf32>
    %44 = vector.broadcast %36 : vector<48x1xf32> to vector<48x32xf32>
    %45 = arith.subf %13, %44 : vector<48x32xf32>
    %cst_20 = arith.constant 9.99999997E-7 : f32
    %46 = vector.broadcast %cst_20 : f32 to vector<48x1xf32>
    %47 = arith.addf %43, %46 : vector<48x1xf32>
    %48 = math.rsqrt %47 : vector<48x1xf32>
    %49 = vector.broadcast %48 : vector<48x1xf32> to vector<48x32xf32>
    %50 = arith.mulf %45, %49 : vector<48x32xf32>
    %51 = vector.broadcast %25 : vector<1x32xf32> to vector<48x32xf32>
    %52 = arith.mulf %50, %51 : vector<48x32xf32>
    %53 = vector.broadcast %26 : vector<1x32xf32> to vector<48x32xf32>
    %54 = arith.addf %52, %53 : vector<48x32xf32>
    %cst_21 = arith.constant dense<0.000000e+00> : vector<48x96xf32>
    %55 = tpu.matmul %54, %20, %cst_21 {dimension_numbers = #tpu.dot_dimension_numbers<[1], [0], [0], [1], [0, 0, 1, 1], [], []>} : vector<48x32xf32>, vector<32x96xf32>, vector<48x96xf32> -> vector<48x96xf32>
    %56 = vector.broadcast %29 : vector<1x96xf32> to vector<48x96xf32>
    %57 = arith.addf %55, %56 : vector<48x96xf32>
    %58 = vector.extract_strided_slice %57 {offsets = [0, 0], sizes = [24, 16], strides = [1, 1]} : vector<48x96xf32> to vector<24x16xf32>
    %59 = vector.extract_strided_slice %57 {offsets = [0, 32], sizes = [24, 16], strides = [1, 1]} : vector<48x96xf32> to vector<24x16xf32>
    %60 = vector.extract_strided_slice %57 {offsets = [0, 64], sizes = [24, 16], strides = [1, 1]} : vector<48x96xf32> to vector<24x16xf32>
    %cst_22 = arith.constant dense<0.000000e+00> : vector<24x24xf32>
    %61 = tpu.matmul %58, %59, %cst_22 {dimension_numbers = #tpu.dot_dimension_numbers<[1], [1], [0], [0], [0, 0, 1, 0], [], []>} : vector<24x16xf32>, vector<24x16xf32>, vector<24x24xf32> -> vector<24x24xf32>
    %cst_23 = arith.constant 2.500000e-01 : f32
    %62 = vector.broadcast %cst_23 : f32 to vector<24x24xf32>
    %63 = arith.mulf %61, %62 : vector<24x24xf32>
    %64 = vector.broadcast %19 : vector<1x24xf32> to vector<24x24xf32>
    %65 = arith.addf %63, %64 : vector<24x24xf32>
    %cst_24 = arith.constant dense<0xFF800000> : vector<24xf32>
    %66 = vector.multi_reduction <maximumf>, %65, %cst_24 [1] : vector<24x24xf32> to vector<24xf32>
    %67 = vector.shape_cast %66 : vector<24xf32> to vector<24x1xf32>
    %68 = vector.broadcast %67 : vector<24x1xf32> to vector<24x24xf32>
    %69 = arith.subf %65, %68 : vector<24x24xf32>
    %70 = math.exp %69 : vector<24x24xf32>
    %cst_25 = arith.constant dense<0.000000e+00> : vector<24xf32>
    %71 = vector.multi_reduction <add>, %70, %cst_25 [1] : vector<24x24xf32> to vector<24xf32>
    %72 = vector.shape_cast %71 : vector<24xf32> to vector<24x1xf32>
    %73 = tpu.reciprocal %72 {approx = true} : vector<24x1xf32> -> vector<24x1xf32>
    %74 = arith.mulf %72, %73 : vector<24x1xf32>
    %cst_26 = arith.constant 2.000000e+00 : f32
    %75 = vector.broadcast %cst_26 : f32 to vector<24x1xf32>
    %76 = arith.subf %75, %74 : vector<24x1xf32>
    %77 = arith.mulf %73, %76 : vector<24x1xf32>
    %cst_27 = arith.constant dense<0.000000e+00> : vector<24x16xf32>
    %78 = tpu.matmul %70, %60, %cst_27 {dimension_numbers = #tpu.dot_dimension_numbers<[1], [0], [0], [1], [0, 0, 1, 1], [], []>} : vector<24x24xf32>, vector<24x16xf32>, vector<24x16xf32> -> vector<24x16xf32>
    %79 = vector.broadcast %77 : vector<24x1xf32> to vector<24x16xf32>
    %80 = arith.mulf %78, %79 : vector<24x16xf32>
    %81 = vector.extract_strided_slice %57 {offsets = [0, 16], sizes = [24, 16], strides = [1, 1]} : vector<48x96xf32> to vector<24x16xf32>
    %82 = vector.extract_strided_slice %57 {offsets = [0, 48], sizes = [24, 16], strides = [1, 1]} : vector<48x96xf32> to vector<24x16xf32>
    %83 = vector.extract_strided_slice %57 {offsets = [0, 80], sizes = [24, 16], strides = [1, 1]} : vector<48x96xf32> to vector<24x16xf32>
    %cst_28 = arith.constant dense<0.000000e+00> : vector<24x24xf32>
    %84 = tpu.matmul %81, %82, %cst_28 {dimension_numbers = #tpu.dot_dimension_numbers<[1], [1], [0], [0], [0, 0, 1, 0], [], []>} : vector<24x16xf32>, vector<24x16xf32>, vector<24x24xf32> -> vector<24x24xf32>
    %cst_29 = arith.constant 2.500000e-01 : f32
    %85 = vector.broadcast %cst_29 : f32 to vector<24x24xf32>
    %86 = arith.mulf %84, %85 : vector<24x24xf32>
    %87 = vector.broadcast %19 : vector<1x24xf32> to vector<24x24xf32>
    %88 = arith.addf %86, %87 : vector<24x24xf32>
    %cst_30 = arith.constant dense<0xFF800000> : vector<24xf32>
    %89 = vector.multi_reduction <maximumf>, %88, %cst_30 [1] : vector<24x24xf32> to vector<24xf32>
    %90 = vector.shape_cast %89 : vector<24xf32> to vector<24x1xf32>
    %91 = vector.broadcast %90 : vector<24x1xf32> to vector<24x24xf32>
    %92 = arith.subf %88, %91 : vector<24x24xf32>
    %93 = math.exp %92 : vector<24x24xf32>
    %cst_31 = arith.constant dense<0.000000e+00> : vector<24xf32>
    %94 = vector.multi_reduction <add>, %93, %cst_31 [1] : vector<24x24xf32> to vector<24xf32>
    %95 = vector.shape_cast %94 : vector<24xf32> to vector<24x1xf32>
    %96 = tpu.reciprocal %95 {approx = true} : vector<24x1xf32> -> vector<24x1xf32>
    %97 = arith.mulf %95, %96 : vector<24x1xf32>
    %cst_32 = arith.constant 2.000000e+00 : f32
    %98 = vector.broadcast %cst_32 : f32 to vector<24x1xf32>
    %99 = arith.subf %98, %97 : vector<24x1xf32>
    %100 = arith.mulf %96, %99 : vector<24x1xf32>
    %cst_33 = arith.constant dense<0.000000e+00> : vector<24x16xf32>
    %101 = tpu.matmul %93, %83, %cst_33 {dimension_numbers = #tpu.dot_dimension_numbers<[1], [0], [0], [1], [0, 0, 1, 1], [], []>} : vector<24x24xf32>, vector<24x16xf32>, vector<24x16xf32> -> vector<24x16xf32>
    %102 = vector.broadcast %100 : vector<24x1xf32> to vector<24x16xf32>
    %103 = arith.mulf %101, %102 : vector<24x16xf32>
    %104 = tpu.concatenate %80, %103 in 1 : vector<24x16xf32>, vector<24x16xf32> -> vector<24x32xf32>
    %105 = vector.extract_strided_slice %57 {offsets = [24, 0], sizes = [24, 16], strides = [1, 1]} : vector<48x96xf32> to vector<24x16xf32>
    %106 = vector.extract_strided_slice %57 {offsets = [24, 32], sizes = [24, 16], strides = [1, 1]} : vector<48x96xf32> to vector<24x16xf32>
    %107 = vector.extract_strided_slice %57 {offsets = [24, 64], sizes = [24, 16], strides = [1, 1]} : vector<48x96xf32> to vector<24x16xf32>
    %cst_34 = arith.constant dense<0.000000e+00> : vector<24x24xf32>
    %108 = tpu.matmul %105, %106, %cst_34 {dimension_numbers = #tpu.dot_dimension_numbers<[1], [1], [0], [0], [0, 0, 1, 0], [], []>} : vector<24x16xf32>, vector<24x16xf32>, vector<24x24xf32> -> vector<24x24xf32>
    %cst_35 = arith.constant 2.500000e-01 : f32
    %109 = vector.broadcast %cst_35 : f32 to vector<24x24xf32>
    %110 = arith.mulf %108, %109 : vector<24x24xf32>
    %111 = vector.broadcast %19 : vector<1x24xf32> to vector<24x24xf32>
    %112 = arith.addf %110, %111 : vector<24x24xf32>
    %cst_36 = arith.constant dense<0xFF800000> : vector<24xf32>
    %113 = vector.multi_reduction <maximumf>, %112, %cst_36 [1] : vector<24x24xf32> to vector<24xf32>
    %114 = vector.shape_cast %113 : vector<24xf32> to vector<24x1xf32>
    %115 = vector.broadcast %114 : vector<24x1xf32> to vector<24x24xf32>
    %116 = arith.subf %112, %115 : vector<24x24xf32>
    %117 = math.exp %116 : vector<24x24xf32>
    %cst_37 = arith.constant dense<0.000000e+00> : vector<24xf32>
    %118 = vector.multi_reduction <add>, %117, %cst_37 [1] : vector<24x24xf32> to vector<24xf32>
    %119 = vector.shape_cast %118 : vector<24xf32> to vector<24x1xf32>
    %120 = tpu.reciprocal %119 {approx = true} : vector<24x1xf32> -> vector<24x1xf32>
    %121 = arith.mulf %119, %120 : vector<24x1xf32>
    %cst_38 = arith.constant 2.000000e+00 : f32
    %122 = vector.broadcast %cst_38 : f32 to vector<24x1xf32>
    %123 = arith.subf %122, %121 : vector<24x1xf32>
    %124 = arith.mulf %120, %123 : vector<24x1xf32>
    %cst_39 = arith.constant dense<0.000000e+00> : vector<24x16xf32>
    %125 = tpu.matmul %117, %107, %cst_39 {dimension_numbers = #tpu.dot_dimension_numbers<[1], [0], [0], [1], [0, 0, 1, 1], [], []>} : vector<24x24xf32>, vector<24x16xf32>, vector<24x16xf32> -> vector<24x16xf32>
    %126 = vector.broadcast %124 : vector<24x1xf32> to vector<24x16xf32>
    %127 = arith.mulf %125, %126 : vector<24x16xf32>
    %128 = vector.extract_strided_slice %57 {offsets = [24, 16], sizes = [24, 16], strides = [1, 1]} : vector<48x96xf32> to vector<24x16xf32>
    %129 = vector.extract_strided_slice %57 {offsets = [24, 48], sizes = [24, 16], strides = [1, 1]} : vector<48x96xf32> to vector<24x16xf32>
    %130 = vector.extract_strided_slice %57 {offsets = [24, 80], sizes = [24, 16], strides = [1, 1]} : vector<48x96xf32> to vector<24x16xf32>
    %cst_40 = arith.constant dense<0.000000e+00> : vector<24x24xf32>
    %131 = tpu.matmul %128, %129, %cst_40 {dimension_numbers = #tpu.dot_dimension_numbers<[1], [1], [0], [0], [0, 0, 1, 0], [], []>} : vector<24x16xf32>, vector<24x16xf32>, vector<24x24xf32> -> vector<24x24xf32>
    %cst_41 = arith.constant 2.500000e-01 : f32
    %132 = vector.broadcast %cst_41 : f32 to vector<24x24xf32>
    %133 = arith.mulf %131, %132 : vector<24x24xf32>
    %134 = vector.broadcast %19 : vector<1x24xf32> to vector<24x24xf32>
    %135 = arith.addf %133, %134 : vector<24x24xf32>
    %cst_42 = arith.constant dense<0xFF800000> : vector<24xf32>
    %136 = vector.multi_reduction <maximumf>, %135, %cst_42 [1] : vector<24x24xf32> to vector<24xf32>
    %137 = vector.shape_cast %136 : vector<24xf32> to vector<24x1xf32>
    %138 = vector.broadcast %137 : vector<24x1xf32> to vector<24x24xf32>
    %139 = arith.subf %135, %138 : vector<24x24xf32>
    %140 = math.exp %139 : vector<24x24xf32>
    %cst_43 = arith.constant dense<0.000000e+00> : vector<24xf32>
    %141 = vector.multi_reduction <add>, %140, %cst_43 [1] : vector<24x24xf32> to vector<24xf32>
    %142 = vector.shape_cast %141 : vector<24xf32> to vector<24x1xf32>
    %143 = tpu.reciprocal %142 {approx = true} : vector<24x1xf32> -> vector<24x1xf32>
    %144 = arith.mulf %142, %143 : vector<24x1xf32>
    %cst_44 = arith.constant 2.000000e+00 : f32
    %145 = vector.broadcast %cst_44 : f32 to vector<24x1xf32>
    %146 = arith.subf %145, %144 : vector<24x1xf32>
    %147 = arith.mulf %143, %146 : vector<24x1xf32>
    %cst_45 = arith.constant dense<0.000000e+00> : vector<24x16xf32>
    %148 = tpu.matmul %140, %130, %cst_45 {dimension_numbers = #tpu.dot_dimension_numbers<[1], [0], [0], [1], [0, 0, 1, 1], [], []>} : vector<24x24xf32>, vector<24x16xf32>, vector<24x16xf32> -> vector<24x16xf32>
    %149 = vector.broadcast %147 : vector<24x1xf32> to vector<24x16xf32>
    %150 = arith.mulf %148, %149 : vector<24x16xf32>
    %151 = tpu.concatenate %127, %150 in 1 : vector<24x16xf32>, vector<24x16xf32> -> vector<24x32xf32>
    %152 = tpu.concatenate %104, %151 in 0 : vector<24x32xf32>, vector<24x32xf32> -> vector<48x32xf32>
    %cst_46 = arith.constant dense<0.000000e+00> : vector<48x32xf32>
    %153 = tpu.matmul %152, %21, %cst_46 {dimension_numbers = #tpu.dot_dimension_numbers<[1], [0], [0], [1], [0, 0, 1, 1], [], []>} : vector<48x32xf32>, vector<32x32xf32>, vector<48x32xf32> -> vector<48x32xf32>
    %154 = arith.addf %13, %153 : vector<48x32xf32>
    %155 = vector.broadcast %30 : vector<1x32xf32> to vector<48x32xf32>
    %156 = arith.addf %154, %155 : vector<48x32xf32>
    %cst_47 = arith.constant dense<0.000000e+00> : vector<48xf32>
    %157 = vector.multi_reduction <add>, %156, %cst_47 [1] : vector<48x32xf32> to vector<48xf32>
    %158 = vector.shape_cast %157 : vector<48xf32> to vector<48x1xf32>
    %cst_48 = arith.constant 3.200000e+01 : f32
    %159 = vector.broadcast %cst_48 : f32 to vector<48x1xf32>
    %160 = arith.divf %158, %159 : vector<48x1xf32>
    %161 = vector.broadcast %160 : vector<48x1xf32> to vector<48x32xf32>
    %162 = arith.subf %156, %161 : vector<48x32xf32>
    %163 = arith.mulf %162, %162 : vector<48x32xf32>
    %cst_49 = arith.constant dense<0.000000e+00> : vector<48xf32>
    %164 = vector.multi_reduction <add>, %163, %cst_49 [1] : vector<48x32xf32> to vector<48xf32>
    %165 = vector.shape_cast %164 : vector<48xf32> to vector<48x1xf32>
    %cst_50 = arith.constant 3.200000e+01 : f32
    %166 = vector.broadcast %cst_50 : f32 to vector<48x1xf32>
    %167 = arith.divf %165, %166 : vector<48x1xf32>
    %168 = vector.broadcast %160 : vector<48x1xf32> to vector<48x32xf32>
    %169 = arith.subf %156, %168 : vector<48x32xf32>
    %cst_51 = arith.constant 9.99999997E-7 : f32
    %170 = vector.broadcast %cst_51 : f32 to vector<48x1xf32>
    %171 = arith.addf %167, %170 : vector<48x1xf32>
    %172 = math.rsqrt %171 : vector<48x1xf32>
    %173 = vector.broadcast %172 : vector<48x1xf32> to vector<48x32xf32>
    %174 = arith.mulf %169, %173 : vector<48x32xf32>
    %175 = vector.broadcast %27 : vector<1x32xf32> to vector<48x32xf32>
    %176 = arith.mulf %174, %175 : vector<48x32xf32>
    %177 = vector.broadcast %28 : vector<1x32xf32> to vector<48x32xf32>
    %178 = arith.addf %176, %177 : vector<48x32xf32>
    %cst_52 = arith.constant dense<0.000000e+00> : vector<48x128xf32>
    %179 = tpu.matmul %178, %22, %cst_52 {dimension_numbers = #tpu.dot_dimension_numbers<[1], [0], [0], [1], [0, 0, 1, 1], [], []>} : vector<48x32xf32>, vector<32x128xf32>, vector<48x128xf32> -> vector<48x128xf32>
    %180 = vector.broadcast %31 : vector<1x128xf32> to vector<48x128xf32>
    %181 = arith.addf %179, %180 : vector<48x128xf32>
    %182 = arith.mulf %181, %181 : vector<48x128xf32>
    %183 = arith.mulf %181, %182 : vector<48x128xf32>
    %cst_53 = arith.constant 4.471500e-02 : f32
    %184 = vector.broadcast %cst_53 : f32 to vector<48x128xf32>
    %185 = arith.mulf %184, %183 : vector<48x128xf32>
    %186 = arith.addf %181, %185 : vector<48x128xf32>
    %cst_54 = arith.constant 0.797884583 : f32
    %187 = vector.broadcast %cst_54 : f32 to vector<48x128xf32>
    %188 = arith.mulf %187, %186 : vector<48x128xf32>
    %189 = math.tanh %188 : vector<48x128xf32>
    %cst_55 = arith.constant 1.000000e+00 : f32
    %190 = vector.broadcast %cst_55 : f32 to vector<48x128xf32>
    %191 = arith.addf %190, %189 : vector<48x128xf32>
    %cst_56 = arith.constant 5.000000e-01 : f32
    %192 = vector.broadcast %cst_56 : f32 to vector<48x128xf32>
    %193 = arith.mulf %192, %191 : vector<48x128xf32>
    %194 = arith.mulf %181, %193 : vector<48x128xf32>
    %cst_57 = arith.constant dense<0.000000e+00> : vector<48x32xf32>
    %195 = tpu.matmul %194, %23, %cst_57 {dimension_numbers = #tpu.dot_dimension_numbers<[1], [0], [0], [1], [0, 0, 1, 1], [], []>} : vector<48x128xf32>, vector<128x32xf32>, vector<48x32xf32> -> vector<48x32xf32>
    %196 = arith.addf %156, %195 : vector<48x32xf32>
    %197 = vector.broadcast %32 : vector<1x32xf32> to vector<48x32xf32>
    %198 = arith.addf %196, %197 : vector<48x32xf32>
    %c344 = arith.constant 344 : index
    %c0_58 = arith.constant 0 : index
    %199 = vector.load %arg2[%c344, %c0_58] : memref<576x128xf32, #tpu.memory_space<vmem>>, vector<32x96xf32>
    %c376 = arith.constant 376 : index
    %c0_59 = arith.constant 0 : index
    %200 = vector.load %arg2[%c376, %c0_59] : memref<576x128xf32, #tpu.memory_space<vmem>>, vector<32x32xf32>
    %c408 = arith.constant 408 : index
    %c0_60 = arith.constant 0 : index
    %201 = vector.load %arg2[%c408, %c0_60] : memref<576x128xf32, #tpu.memory_space<vmem>>, vector<32x128xf32>
    %c440 = arith.constant 440 : index
    %c0_61 = arith.constant 0 : index
    %202 = vector.load %arg2[%c440, %c0_61] : memref<576x128xf32, #tpu.memory_space<vmem>>, vector<128x32xf32>
    %c568 = arith.constant 568 : index
    %c0_62 = arith.constant 0 : index
    %203 = vector.load %arg2[%c568, %c0_62] : memref<576x128xf32, #tpu.memory_space<vmem>>, vector<8x128xf32>
    %204 = vector.extract_strided_slice %203 {offsets = [0, 0], sizes = [1, 32], strides = [1, 1]} : vector<8x128xf32> to vector<1x32xf32>
    %205 = vector.extract_strided_slice %203 {offsets = [1, 0], sizes = [1, 32], strides = [1, 1]} : vector<8x128xf32> to vector<1x32xf32>
    %206 = vector.extract_strided_slice %203 {offsets = [2, 0], sizes = [1, 32], strides = [1, 1]} : vector<8x128xf32> to vector<1x32xf32>
    %207 = vector.extract_strided_slice %203 {offsets = [3, 0], sizes = [1, 32], strides = [1, 1]} : vector<8x128xf32> to vector<1x32xf32>
    %208 = vector.extract_strided_slice %203 {offsets = [4, 0], sizes = [1, 96], strides = [1, 1]} : vector<8x128xf32> to vector<1x96xf32>
    %209 = vector.extract_strided_slice %203 {offsets = [5, 0], sizes = [1, 32], strides = [1, 1]} : vector<8x128xf32> to vector<1x32xf32>
    %210 = vector.extract_strided_slice %203 {offsets = [6, 0], sizes = [1, 128], strides = [1, 1]} : vector<8x128xf32> to vector<1x128xf32>
    %211 = vector.extract_strided_slice %203 {offsets = [7, 0], sizes = [1, 32], strides = [1, 1]} : vector<8x128xf32> to vector<1x32xf32>
    %cst_63 = arith.constant dense<0.000000e+00> : vector<48xf32>
    %212 = vector.multi_reduction <add>, %198, %cst_63 [1] : vector<48x32xf32> to vector<48xf32>
    %213 = vector.shape_cast %212 : vector<48xf32> to vector<48x1xf32>
    %cst_64 = arith.constant 3.200000e+01 : f32
    %214 = vector.broadcast %cst_64 : f32 to vector<48x1xf32>
    %215 = arith.divf %213, %214 : vector<48x1xf32>
    %216 = vector.broadcast %215 : vector<48x1xf32> to vector<48x32xf32>
    %217 = arith.subf %198, %216 : vector<48x32xf32>
    %218 = arith.mulf %217, %217 : vector<48x32xf32>
    %cst_65 = arith.constant dense<0.000000e+00> : vector<48xf32>
    %219 = vector.multi_reduction <add>, %218, %cst_65 [1] : vector<48x32xf32> to vector<48xf32>
    %220 = vector.shape_cast %219 : vector<48xf32> to vector<48x1xf32>
    %cst_66 = arith.constant 3.200000e+01 : f32
    %221 = vector.broadcast %cst_66 : f32 to vector<48x1xf32>
    %222 = arith.divf %220, %221 : vector<48x1xf32>
    %223 = vector.broadcast %215 : vector<48x1xf32> to vector<48x32xf32>
    %224 = arith.subf %198, %223 : vector<48x32xf32>
    %cst_67 = arith.constant 9.99999997E-7 : f32
    %225 = vector.broadcast %cst_67 : f32 to vector<48x1xf32>
    %226 = arith.addf %222, %225 : vector<48x1xf32>
    %227 = math.rsqrt %226 : vector<48x1xf32>
    %228 = vector.broadcast %227 : vector<48x1xf32> to vector<48x32xf32>
    %229 = arith.mulf %224, %228 : vector<48x32xf32>
    %230 = vector.broadcast %204 : vector<1x32xf32> to vector<48x32xf32>
    %231 = arith.mulf %229, %230 : vector<48x32xf32>
    %232 = vector.broadcast %205 : vector<1x32xf32> to vector<48x32xf32>
    %233 = arith.addf %231, %232 : vector<48x32xf32>
    %cst_68 = arith.constant dense<0.000000e+00> : vector<48x96xf32>
    %234 = tpu.matmul %233, %199, %cst_68 {dimension_numbers = #tpu.dot_dimension_numbers<[1], [0], [0], [1], [0, 0, 1, 1], [], []>} : vector<48x32xf32>, vector<32x96xf32>, vector<48x96xf32> -> vector<48x96xf32>
    %235 = vector.broadcast %208 : vector<1x96xf32> to vector<48x96xf32>
    %236 = arith.addf %234, %235 : vector<48x96xf32>
    %237 = vector.extract_strided_slice %236 {offsets = [0, 0], sizes = [24, 16], strides = [1, 1]} : vector<48x96xf32> to vector<24x16xf32>
    %238 = vector.extract_strided_slice %236 {offsets = [0, 32], sizes = [24, 16], strides = [1, 1]} : vector<48x96xf32> to vector<24x16xf32>
    %239 = vector.extract_strided_slice %236 {offsets = [0, 64], sizes = [24, 16], strides = [1, 1]} : vector<48x96xf32> to vector<24x16xf32>
    %cst_69 = arith.constant dense<0.000000e+00> : vector<24x24xf32>
    %240 = tpu.matmul %237, %238, %cst_69 {dimension_numbers = #tpu.dot_dimension_numbers<[1], [1], [0], [0], [0, 0, 1, 0], [], []>} : vector<24x16xf32>, vector<24x16xf32>, vector<24x24xf32> -> vector<24x24xf32>
    %cst_70 = arith.constant 2.500000e-01 : f32
    %241 = vector.broadcast %cst_70 : f32 to vector<24x24xf32>
    %242 = arith.mulf %240, %241 : vector<24x24xf32>
    %243 = vector.broadcast %19 : vector<1x24xf32> to vector<24x24xf32>
    %244 = arith.addf %242, %243 : vector<24x24xf32>
    %cst_71 = arith.constant dense<0xFF800000> : vector<24xf32>
    %245 = vector.multi_reduction <maximumf>, %244, %cst_71 [1] : vector<24x24xf32> to vector<24xf32>
    %246 = vector.shape_cast %245 : vector<24xf32> to vector<24x1xf32>
    %247 = vector.broadcast %246 : vector<24x1xf32> to vector<24x24xf32>
    %248 = arith.subf %244, %247 : vector<24x24xf32>
    %249 = math.exp %248 : vector<24x24xf32>
    %cst_72 = arith.constant dense<0.000000e+00> : vector<24xf32>
    %250 = vector.multi_reduction <add>, %249, %cst_72 [1] : vector<24x24xf32> to vector<24xf32>
    %251 = vector.shape_cast %250 : vector<24xf32> to vector<24x1xf32>
    %252 = tpu.reciprocal %251 {approx = true} : vector<24x1xf32> -> vector<24x1xf32>
    %253 = arith.mulf %251, %252 : vector<24x1xf32>
    %cst_73 = arith.constant 2.000000e+00 : f32
    %254 = vector.broadcast %cst_73 : f32 to vector<24x1xf32>
    %255 = arith.subf %254, %253 : vector<24x1xf32>
    %256 = arith.mulf %252, %255 : vector<24x1xf32>
    %cst_74 = arith.constant dense<0.000000e+00> : vector<24x16xf32>
    %257 = tpu.matmul %249, %239, %cst_74 {dimension_numbers = #tpu.dot_dimension_numbers<[1], [0], [0], [1], [0, 0, 1, 1], [], []>} : vector<24x24xf32>, vector<24x16xf32>, vector<24x16xf32> -> vector<24x16xf32>
    %258 = vector.broadcast %256 : vector<24x1xf32> to vector<24x16xf32>
    %259 = arith.mulf %257, %258 : vector<24x16xf32>
    %260 = vector.extract_strided_slice %236 {offsets = [0, 16], sizes = [24, 16], strides = [1, 1]} : vector<48x96xf32> to vector<24x16xf32>
    %261 = vector.extract_strided_slice %236 {offsets = [0, 48], sizes = [24, 16], strides = [1, 1]} : vector<48x96xf32> to vector<24x16xf32>
    %262 = vector.extract_strided_slice %236 {offsets = [0, 80], sizes = [24, 16], strides = [1, 1]} : vector<48x96xf32> to vector<24x16xf32>
    %cst_75 = arith.constant dense<0.000000e+00> : vector<24x24xf32>
    %263 = tpu.matmul %260, %261, %cst_75 {dimension_numbers = #tpu.dot_dimension_numbers<[1], [1], [0], [0], [0, 0, 1, 0], [], []>} : vector<24x16xf32>, vector<24x16xf32>, vector<24x24xf32> -> vector<24x24xf32>
    %cst_76 = arith.constant 2.500000e-01 : f32
    %264 = vector.broadcast %cst_76 : f32 to vector<24x24xf32>
    %265 = arith.mulf %263, %264 : vector<24x24xf32>
    %266 = vector.broadcast %19 : vector<1x24xf32> to vector<24x24xf32>
    %267 = arith.addf %265, %266 : vector<24x24xf32>
    %cst_77 = arith.constant dense<0xFF800000> : vector<24xf32>
    %268 = vector.multi_reduction <maximumf>, %267, %cst_77 [1] : vector<24x24xf32> to vector<24xf32>
    %269 = vector.shape_cast %268 : vector<24xf32> to vector<24x1xf32>
    %270 = vector.broadcast %269 : vector<24x1xf32> to vector<24x24xf32>
    %271 = arith.subf %267, %270 : vector<24x24xf32>
    %272 = math.exp %271 : vector<24x24xf32>
    %cst_78 = arith.constant dense<0.000000e+00> : vector<24xf32>
    %273 = vector.multi_reduction <add>, %272, %cst_78 [1] : vector<24x24xf32> to vector<24xf32>
    %274 = vector.shape_cast %273 : vector<24xf32> to vector<24x1xf32>
    %275 = tpu.reciprocal %274 {approx = true} : vector<24x1xf32> -> vector<24x1xf32>
    %276 = arith.mulf %274, %275 : vector<24x1xf32>
    %cst_79 = arith.constant 2.000000e+00 : f32
    %277 = vector.broadcast %cst_79 : f32 to vector<24x1xf32>
    %278 = arith.subf %277, %276 : vector<24x1xf32>
    %279 = arith.mulf %275, %278 : vector<24x1xf32>
    %cst_80 = arith.constant dense<0.000000e+00> : vector<24x16xf32>
    %280 = tpu.matmul %272, %262, %cst_80 {dimension_numbers = #tpu.dot_dimension_numbers<[1], [0], [0], [1], [0, 0, 1, 1], [], []>} : vector<24x24xf32>, vector<24x16xf32>, vector<24x16xf32> -> vector<24x16xf32>
    %281 = vector.broadcast %279 : vector<24x1xf32> to vector<24x16xf32>
    %282 = arith.mulf %280, %281 : vector<24x16xf32>
    %283 = tpu.concatenate %259, %282 in 1 : vector<24x16xf32>, vector<24x16xf32> -> vector<24x32xf32>
    %284 = vector.extract_strided_slice %236 {offsets = [24, 0], sizes = [24, 16], strides = [1, 1]} : vector<48x96xf32> to vector<24x16xf32>
    %285 = vector.extract_strided_slice %236 {offsets = [24, 32], sizes = [24, 16], strides = [1, 1]} : vector<48x96xf32> to vector<24x16xf32>
    %286 = vector.extract_strided_slice %236 {offsets = [24, 64], sizes = [24, 16], strides = [1, 1]} : vector<48x96xf32> to vector<24x16xf32>
    %cst_81 = arith.constant dense<0.000000e+00> : vector<24x24xf32>
    %287 = tpu.matmul %284, %285, %cst_81 {dimension_numbers = #tpu.dot_dimension_numbers<[1], [1], [0], [0], [0, 0, 1, 0], [], []>} : vector<24x16xf32>, vector<24x16xf32>, vector<24x24xf32> -> vector<24x24xf32>
    %cst_82 = arith.constant 2.500000e-01 : f32
    %288 = vector.broadcast %cst_82 : f32 to vector<24x24xf32>
    %289 = arith.mulf %287, %288 : vector<24x24xf32>
    %290 = vector.broadcast %19 : vector<1x24xf32> to vector<24x24xf32>
    %291 = arith.addf %289, %290 : vector<24x24xf32>
    %cst_83 = arith.constant dense<0xFF800000> : vector<24xf32>
    %292 = vector.multi_reduction <maximumf>, %291, %cst_83 [1] : vector<24x24xf32> to vector<24xf32>
    %293 = vector.shape_cast %292 : vector<24xf32> to vector<24x1xf32>
    %294 = vector.broadcast %293 : vector<24x1xf32> to vector<24x24xf32>
    %295 = arith.subf %291, %294 : vector<24x24xf32>
    %296 = math.exp %295 : vector<24x24xf32>
    %cst_84 = arith.constant dense<0.000000e+00> : vector<24xf32>
    %297 = vector.multi_reduction <add>, %296, %cst_84 [1] : vector<24x24xf32> to vector<24xf32>
    %298 = vector.shape_cast %297 : vector<24xf32> to vector<24x1xf32>
    %299 = tpu.reciprocal %298 {approx = true} : vector<24x1xf32> -> vector<24x1xf32>
    %300 = arith.mulf %298, %299 : vector<24x1xf32>
    %cst_85 = arith.constant 2.000000e+00 : f32
    %301 = vector.broadcast %cst_85 : f32 to vector<24x1xf32>
    %302 = arith.subf %301, %300 : vector<24x1xf32>
    %303 = arith.mulf %299, %302 : vector<24x1xf32>
    %cst_86 = arith.constant dense<0.000000e+00> : vector<24x16xf32>
    %304 = tpu.matmul %296, %286, %cst_86 {dimension_numbers = #tpu.dot_dimension_numbers<[1], [0], [0], [1], [0, 0, 1, 1], [], []>} : vector<24x24xf32>, vector<24x16xf32>, vector<24x16xf32> -> vector<24x16xf32>
    %305 = vector.broadcast %303 : vector<24x1xf32> to vector<24x16xf32>
    %306 = arith.mulf %304, %305 : vector<24x16xf32>
    %307 = vector.extract_strided_slice %236 {offsets = [24, 16], sizes = [24, 16], strides = [1, 1]} : vector<48x96xf32> to vector<24x16xf32>
    %308 = vector.extract_strided_slice %236 {offsets = [24, 48], sizes = [24, 16], strides = [1, 1]} : vector<48x96xf32> to vector<24x16xf32>
    %309 = vector.extract_strided_slice %236 {offsets = [24, 80], sizes = [24, 16], strides = [1, 1]} : vector<48x96xf32> to vector<24x16xf32>
    %cst_87 = arith.constant dense<0.000000e+00> : vector<24x24xf32>
    %310 = tpu.matmul %307, %308, %cst_87 {dimension_numbers = #tpu.dot_dimension_numbers<[1], [1], [0], [0], [0, 0, 1, 0], [], []>} : vector<24x16xf32>, vector<24x16xf32>, vector<24x24xf32> -> vector<24x24xf32>
    %cst_88 = arith.constant 2.500000e-01 : f32
    %311 = vector.broadcast %cst_88 : f32 to vector<24x24xf32>
    %312 = arith.mulf %310, %311 : vector<24x24xf32>
    %313 = vector.broadcast %19 : vector<1x24xf32> to vector<24x24xf32>
    %314 = arith.addf %312, %313 : vector<24x24xf32>
    %cst_89 = arith.constant dense<0xFF800000> : vector<24xf32>
    %315 = vector.multi_reduction <maximumf>, %314, %cst_89 [1] : vector<24x24xf32> to vector<24xf32>
    %316 = vector.shape_cast %315 : vector<24xf32> to vector<24x1xf32>
    %317 = vector.broadcast %316 : vector<24x1xf32> to vector<24x24xf32>
    %318 = arith.subf %314, %317 : vector<24x24xf32>
    %319 = math.exp %318 : vector<24x24xf32>
    %cst_90 = arith.constant dense<0.000000e+00> : vector<24xf32>
    %320 = vector.multi_reduction <add>, %319, %cst_90 [1] : vector<24x24xf32> to vector<24xf32>
    %321 = vector.shape_cast %320 : vector<24xf32> to vector<24x1xf32>
    %322 = tpu.reciprocal %321 {approx = true} : vector<24x1xf32> -> vector<24x1xf32>
    %323 = arith.mulf %321, %322 : vector<24x1xf32>
    %cst_91 = arith.constant 2.000000e+00 : f32
    %324 = vector.broadcast %cst_91 : f32 to vector<24x1xf32>
    %325 = arith.subf %324, %323 : vector<24x1xf32>
    %326 = arith.mulf %322, %325 : vector<24x1xf32>
    %cst_92 = arith.constant dense<0.000000e+00> : vector<24x16xf32>
    %327 = tpu.matmul %319, %309, %cst_92 {dimension_numbers = #tpu.dot_dimension_numbers<[1], [0], [0], [1], [0, 0, 1, 1], [], []>} : vector<24x24xf32>, vector<24x16xf32>, vector<24x16xf32> -> vector<24x16xf32>
    %328 = vector.broadcast %326 : vector<24x1xf32> to vector<24x16xf32>
    %329 = arith.mulf %327, %328 : vector<24x16xf32>
    %330 = tpu.concatenate %306, %329 in 1 : vector<24x16xf32>, vector<24x16xf32> -> vector<24x32xf32>
    %331 = tpu.concatenate %283, %330 in 0 : vector<24x32xf32>, vector<24x32xf32> -> vector<48x32xf32>
    %cst_93 = arith.constant dense<0.000000e+00> : vector<48x32xf32>
    %332 = tpu.matmul %331, %200, %cst_93 {dimension_numbers = #tpu.dot_dimension_numbers<[1], [0], [0], [1], [0, 0, 1, 1], [], []>} : vector<48x32xf32>, vector<32x32xf32>, vector<48x32xf32> -> vector<48x32xf32>
    %333 = arith.addf %198, %332 : vector<48x32xf32>
    %334 = vector.broadcast %209 : vector<1x32xf32> to vector<48x32xf32>
    %335 = arith.addf %333, %334 : vector<48x32xf32>
    %cst_94 = arith.constant dense<0.000000e+00> : vector<48xf32>
    %336 = vector.multi_reduction <add>, %335, %cst_94 [1] : vector<48x32xf32> to vector<48xf32>
    %337 = vector.shape_cast %336 : vector<48xf32> to vector<48x1xf32>
    %cst_95 = arith.constant 3.200000e+01 : f32
    %338 = vector.broadcast %cst_95 : f32 to vector<48x1xf32>
    %339 = arith.divf %337, %338 : vector<48x1xf32>
    %340 = vector.broadcast %339 : vector<48x1xf32> to vector<48x32xf32>
    %341 = arith.subf %335, %340 : vector<48x32xf32>
    %342 = arith.mulf %341, %341 : vector<48x32xf32>
    %cst_96 = arith.constant dense<0.000000e+00> : vector<48xf32>
    %343 = vector.multi_reduction <add>, %342, %cst_96 [1] : vector<48x32xf32> to vector<48xf32>
    %344 = vector.shape_cast %343 : vector<48xf32> to vector<48x1xf32>
    %cst_97 = arith.constant 3.200000e+01 : f32
    %345 = vector.broadcast %cst_97 : f32 to vector<48x1xf32>
    %346 = arith.divf %344, %345 : vector<48x1xf32>
    %347 = vector.broadcast %339 : vector<48x1xf32> to vector<48x32xf32>
    %348 = arith.subf %335, %347 : vector<48x32xf32>
    %cst_98 = arith.constant 9.99999997E-7 : f32
    %349 = vector.broadcast %cst_98 : f32 to vector<48x1xf32>
    %350 = arith.addf %346, %349 : vector<48x1xf32>
    %351 = math.rsqrt %350 : vector<48x1xf32>
    %352 = vector.broadcast %351 : vector<48x1xf32> to vector<48x32xf32>
    %353 = arith.mulf %348, %352 : vector<48x32xf32>
    %354 = vector.broadcast %206 : vector<1x32xf32> to vector<48x32xf32>
    %355 = arith.mulf %353, %354 : vector<48x32xf32>
    %356 = vector.broadcast %207 : vector<1x32xf32> to vector<48x32xf32>
    %357 = arith.addf %355, %356 : vector<48x32xf32>
    %cst_99 = arith.constant dense<0.000000e+00> : vector<48x128xf32>
    %358 = tpu.matmul %357, %201, %cst_99 {dimension_numbers = #tpu.dot_dimension_numbers<[1], [0], [0], [1], [0, 0, 1, 1], [], []>} : vector<48x32xf32>, vector<32x128xf32>, vector<48x128xf32> -> vector<48x128xf32>
    %359 = vector.broadcast %210 : vector<1x128xf32> to vector<48x128xf32>
    %360 = arith.addf %358, %359 : vector<48x128xf32>
    %361 = arith.mulf %360, %360 : vector<48x128xf32>
    %362 = arith.mulf %360, %361 : vector<48x128xf32>
    %cst_100 = arith.constant 4.471500e-02 : f32
    %363 = vector.broadcast %cst_100 : f32 to vector<48x128xf32>
    %364 = arith.mulf %363, %362 : vector<48x128xf32>
    %365 = arith.addf %360, %364 : vector<48x128xf32>
    %cst_101 = arith.constant 0.797884583 : f32
    %366 = vector.broadcast %cst_101 : f32 to vector<48x128xf32>
    %367 = arith.mulf %366, %365 : vector<48x128xf32>
    %368 = math.tanh %367 : vector<48x128xf32>
    %cst_102 = arith.constant 1.000000e+00 : f32
    %369 = vector.broadcast %cst_102 : f32 to vector<48x128xf32>
    %370 = arith.addf %369, %368 : vector<48x128xf32>
    %cst_103 = arith.constant 5.000000e-01 : f32
    %371 = vector.broadcast %cst_103 : f32 to vector<48x128xf32>
    %372 = arith.mulf %371, %370 : vector<48x128xf32>
    %373 = arith.mulf %360, %372 : vector<48x128xf32>
    %cst_104 = arith.constant dense<0.000000e+00> : vector<48x32xf32>
    %374 = tpu.matmul %373, %202, %cst_104 {dimension_numbers = #tpu.dot_dimension_numbers<[1], [0], [0], [1], [0, 0, 1, 1], [], []>} : vector<48x128xf32>, vector<128x32xf32>, vector<48x32xf32> -> vector<48x32xf32>
    %375 = arith.addf %335, %374 : vector<48x32xf32>
    %376 = vector.broadcast %211 : vector<1x32xf32> to vector<48x32xf32>
    %377 = arith.addf %375, %376 : vector<48x32xf32>
    %cst_105 = arith.constant dense<0.000000e+00> : vector<48xf32>
    %378 = vector.multi_reduction <add>, %377, %cst_105 [1] : vector<48x32xf32> to vector<48xf32>
    %379 = vector.shape_cast %378 : vector<48xf32> to vector<48x1xf32>
    %cst_106 = arith.constant 3.200000e+01 : f32
    %380 = vector.broadcast %cst_106 : f32 to vector<48x1xf32>
    %381 = arith.divf %379, %380 : vector<48x1xf32>
    %382 = vector.broadcast %381 : vector<48x1xf32> to vector<48x32xf32>
    %383 = arith.subf %377, %382 : vector<48x32xf32>
    %384 = arith.mulf %383, %383 : vector<48x32xf32>
    %cst_107 = arith.constant dense<0.000000e+00> : vector<48xf32>
    %385 = vector.multi_reduction <add>, %384, %cst_107 [1] : vector<48x32xf32> to vector<48xf32>
    %386 = vector.shape_cast %385 : vector<48xf32> to vector<48x1xf32>
    %cst_108 = arith.constant 3.200000e+01 : f32
    %387 = vector.broadcast %cst_108 : f32 to vector<48x1xf32>
    %388 = arith.divf %386, %387 : vector<48x1xf32>
    %389 = vector.broadcast %381 : vector<48x1xf32> to vector<48x32xf32>
    %390 = arith.subf %377, %389 : vector<48x32xf32>
    %cst_109 = arith.constant 9.99999997E-7 : f32
    %391 = vector.broadcast %cst_109 : f32 to vector<48x1xf32>
    %392 = arith.addf %388, %391 : vector<48x1xf32>
    %393 = math.rsqrt %392 : vector<48x1xf32>
    %394 = vector.broadcast %393 : vector<48x1xf32> to vector<48x32xf32>
    %395 = arith.mulf %390, %394 : vector<48x32xf32>
    %396 = vector.broadcast %3 : vector<1x32xf32> to vector<48x32xf32>
    %397 = arith.mulf %395, %396 : vector<48x32xf32>
    %398 = vector.broadcast %4 : vector<1x32xf32> to vector<48x32xf32>
    %399 = arith.addf %397, %398 : vector<48x32xf32>
    %400 = vector.extract_strided_slice %399 {offsets = [16, 0], sizes = [1, 32], strides = [1, 1]} : vector<48x32xf32> to vector<1x32xf32>
    %401 = vector.extract_strided_slice %399 {offsets = [40, 0], sizes = [1, 32], strides = [1, 1]} : vector<48x32xf32> to vector<1x32xf32>
    %402 = tpu.concatenate %400, %401 in 0 : vector<1x32xf32>, vector<1x32xf32> -> vector<2x32xf32>
    %cst_110 = arith.constant 0.000000e+00 : f32
    %403 = vector.broadcast %cst_110 : f32 to vector<2x96xf32>
    %404 = tpu.concatenate %402, %403 in 1 : vector<2x32xf32>, vector<2x96xf32> -> vector<2x128xf32>
    %cst_111 = arith.constant dense<0.000000e+00> : vector<2x128xf32>
    %405 = tpu.matmul %402, %6, %cst_111 {dimension_numbers = #tpu.dot_dimension_numbers<[1], [0], [0], [1], [0, 0, 1, 1], [], []>} : vector<2x32xf32>, vector<32x128xf32>, vector<2x128xf32> -> vector<2x128xf32>
    %406 = vector.broadcast %5 : vector<1x128xf32> to vector<2x128xf32>
    %407 = arith.addf %405, %406 : vector<2x128xf32>
    %c0_112 = arith.constant 0 : index
    %c0_113 = arith.constant 0 : index
    %c0_114 = arith.constant 0 : index
    %408 = vector.load %arg3[%c0_112, %c0_113, %c0_114] : memref<2x1x128xf32, #tpu.memory_space<vmem>>, vector<2x1x128xf32>
    %409 = vector.shape_cast %408 : vector<2x1x128xf32> to vector<2x128xf32>
    %410 = vector.shape_cast %404 : vector<2x128xf32> to vector<2x1x128xf32>
    tpu.vector_store %arg3[%c0_112, %c0_113, %c0_114], %410 {strides = array<i32>} : memref<2x1x128xf32, #tpu.memory_space<vmem>>, vector<2x1x128xf32>,
    %c0_115 = arith.constant 0 : index
    %c0_116 = arith.constant 0 : index
    %c0_117 = arith.constant 0 : index
    %411 = vector.load %arg4[%c0_115, %c0_116, %c0_117] : memref<2x1x128xf32, #tpu.memory_space<vmem>>, vector<2x1x128xf32>
    %412 = vector.shape_cast %411 : vector<2x1x128xf32> to vector<2x128xf32>
    %413 = vector.shape_cast %407 : vector<2x128xf32> to vector<2x1x128xf32>
    tpu.vector_store %arg4[%c0_115, %c0_116, %c0_117], %413 {strides = array<i32>} : memref<2x1x128xf32, #tpu.memory_space<vmem>>, vector<2x1x128xf32>,
    return
  }
  func.func @transform_0(%arg0: i32) -> (i32, i32) {
    %c0_i32 = arith.constant 0 : i32
    %c0_i32_0 = arith.constant 0 : i32
    return %arg0, %c0_i32 : i32, i32
  }
  func.func @transform_1(%arg0: i32) -> (i32, i32) {
    %c0_i32 = arith.constant 0 : i32
    %c0_i32_0 = arith.constant 0 : i32
    %c0_i32_1 = arith.constant 0 : i32
    return %c0_i32, %c0_i32_0 : i32, i32
  }
  func.func @transform_2(%arg0: i32) -> (i32, i32, i32) {
    %c0_i32 = arith.constant 0 : i32
    %c0_i32_0 = arith.constant 0 : i32
    %c0_i32_1 = arith.constant 0 : i32
    return %arg0, %c0_i32, %c0_i32_0 : i32, i32, i32
  }
  func.func @transform_3(%arg0: i32) -> (i32, i32, i32) {
    %c0_i32 = arith.constant 0 : i32
    %c0_i32_0 = arith.constant 0 : i32
    %c0_i32_1 = arith.constant 0 : i32
    return %arg0, %c0_i32, %c0_i32_0 : i32, i32, i32
  }
}

</mosaic_0001>

<llo_original>
// kernel: basenet_forward.1
$region0: #{basenet_forward.1}
  #allocation0 [shape = 'u32[]', space=smem, size = 0x4, offset = 0x4, fixed_abs, tag = 'smem constant byte address 0x4 - core index']
  #allocation1 [shape = 'u32[72,128]{1,0:T(1,128)}', space=vmem, size = 0x9000, scoped, tag = 'internal scratch']
  %s0 = inlined_call_operand.vmem [shape: f32[32,48], index: 0, kind: input, shape index: {}]
  %s1 = inlined_call_operand.vmem [shape: f32[576,128], index: 1, kind: input, shape index: {}]
  %s2 = inlined_call_operand.hbm [shape: f32[2,1,128], index: 2, kind: output, shape index: {0}]
  %s3 = inlined_call_operand.hbm [shape: f32[2,1,128], index: 3, kind: output, shape index: {1}]
  %4 = xla_tuple %s2, %s3
  %s5 = sld [smem:[#allocation0]]
  $region26: #{basenet_forward.1} parent=0
    _
  %s7 = ssub.s32 1, %s5
  %s8 = scalar_select 0, %s7, %s5
  $region1: #{basenet_forward.1} parent=0
    #allocation2 [shape = 'u8[1024]{0}', space=vmem, size = 0x400, scoped, tag = 'output window, operand 0, single buffered']
    #allocation3 [shape = 's32[1]{0}', space=sflag, size = 0x4, scoped, tag = 'scoped memory for basenet_forward.1']
    #allocation4 [shape = 'u8[1024]{0}', space=vmem, size = 0x400, scoped, tag = 'output window, operand 1, single buffered']
    #allocation5 [shape = 's32[1]{0}', space=sflag, size = 0x4, scoped, tag = 'scoped memory for basenet_forward.1']
    %9 = vsyncpa [#allocation3], 0
    %10 = vsyncpa [#allocation5], 0
    // Predicated region
    $region2: #{basenet_forward.1} parent=1 // pred_check
      _
    $region3: #{basenet_forward.1} parent=1 // pred_check_branch
      %12 = sbr.rel (0) target = $region5
    $region4: #{basenet_forward.1} parent=1 // pred_region
      _
    $region5: #{basenet_forward.1} parent=1 // pred_fallthru
      _
    // Predicated region
    $region6: #{basenet_forward.1} parent=1 // pred_check
      _
    $region7: #{basenet_forward.1} parent=1 // pred_check_branch
      %14 = sbr.rel (0) target = $region9
    $region8: #{basenet_forward.1} parent=1 // pred_region
      _
    $region9: #{basenet_forward.1} parent=1 // pred_fallthru
      _
    %v15 = vld [vmem:[%s1] sm:$0xff]
    %v16 = vld [vmem:[%s1 + $0x8] sm:$0xff]
    %v17 = vld [vmem:[%s1 + $0x10] sm:$0xff]
    %v18 = vld [vmem:[%s1 + $0x18] sm:$0xff]
    %v19 = vld [vmem:[%s1 + $0x20] sm:$0xff]
    %v20 = vld [vmem:[%s1 + $0x28] sm:$0xff]
    %v21 = vld [vmem:[%s1 + $0x30] sm:$0xff]
    %v22 = vld [vmem:[%s1 + $0x38] sm:$0xff]
    %v23 = vld [vmem:[%s1 + $0x40] sm:$0xff]
    %v24 = vld [vmem:[%s1 + $0x48] sm:$0x1]
    %v25 = vld [vmem:[%s1 + $0x49] sm:$0x1]
    %v26 = vld [vmem:[%s1 + $0x4a] sm:$0x1]
    %v27 = vld [vmem:[%s1 + $0x50] sm:$0xff]
    %v28 = vld [vmem:[%s1 + $0x58] sm:$0xff]
    %v29 = vld [vmem:[%s1 + $0x60] sm:$0xff]
    %v30 = vld [vmem:[%s1 + $0x68] sm:$0xff]
    %v31 = vld [vmem:[%s0] sm:$0xff]
    %v32 = vld [vmem:[%s0 + $0x8] sm:$0xff]
    %v33 = vld [vmem:[%s0 + $0x10] sm:$0xff]
    %v34 = vld [vmem:[%s0 + $0x18] sm:$0xff]
    %vm35 = vcmask 392192
    %v37 = vsel %vm35, %v31, 0
    %v40 = vsel %vm35, %v32, 0
    %v43 = vsel %vm35, %v33, 0
    %v46 = vsel %vm35, %v34, 0
    %48 = vmatpush.msra.mxu0 0.0
    %49 = vmatpush.msra.mxu0 0.0
    %50 = vmatpush.msra.mxu0 0.0
    %51 = vmatpush.msra.mxu0 0.0
    %52 = vmatpush.msra.mxu0 0.0
    %53 = vmatpush.msra.mxu0 0.0
    %54 = vmatpush.msra.mxu0 0.0
    %55 = vmatpush.msra.mxu0 0.0
    %56 = vmatpush.msra.mxu0 0.0
    %57 = vmatpush.msra.mxu0 0.0
    %58 = vmatpush.msra.mxu0 %v20
    %59 = vmatpush.msra.mxu0 %v19
    %60 = vmatpush.msra.mxu0 %v18
    %61 = vmatpush.msra.mxu0 %v17
    %62 = vmatpush.msra.mxu0 %v16
    %63 = vmatpush.msra.mxu0 %v15
    %64 = vmatmul.f32.gmra.mxu0 %v37
    %v65 = vpop.f32.mrf.mxu0
    %v66 = vadd.f32 0.0, %v65
    %67 = vmatmul.f32.gmra.mxu0 %v40
    %v68 = vpop.f32.mrf.mxu0
    %v69 = vadd.f32 0.0, %v68
    %70 = vmatmul.f32.gmra.mxu0 %v43
    %v71 = vpop.f32.mrf.mxu0
    %v72 = vadd.f32 0.0, %v71
    %73 = vmatmul.f32.gmra.mxu0 %v46
    %v74 = vpop.f32.mrf.mxu0
    %v75 = vadd.f32 0.0, %v74
    %76 = vdwg.mxu0
    %v77 = vadd.f32 %v66, %v21
    %v78 = vadd.f32 %v69, %v22
    %v79 = vadd.f32 %v72, %v21
    %v80 = vadd.f32 %v75, %v22
    %v81 = vlaneseq
    %v82 = vand.u32 %v81, 127
    %vm83 = vcmp.lt.s32.totalorder %v82, 17
    %v84 = vsel %vm83, 0.0, -1e+30
    %v85 = vld [vmem:[%s1 + $0x70] sm:$0xff]
    %v86 = vld [vmem:[%s1 + $0x78] sm:$0xff]
    %v87 = vld [vmem:[%s1 + $0x80] sm:$0xff]
    %v88 = vld [vmem:[%s1 + $0x88] sm:$0xff]
    %v89 = vld [vmem:[%s1 + $0x90] sm:$0xff]
    %v90 = vld [vmem:[%s1 + $0x98] sm:$0xff]
    %v91 = vld [vmem:[%s1 + $0xa0] sm:$0xff]
    %v92 = vld [vmem:[%s1 + $0xa8] sm:$0xff]
    %v93 = vld [vmem:[%s1 + $0xb0] sm:$0xff]
    %v94 = vld [vmem:[%s1 + $0xb8] sm:$0xff]
    %v95 = vld [vmem:[%s1 + $0xc0] sm:$0xff]
    %v96 = vld [vmem:[%s1 + $0xc8] sm:$0xff]
    %v97 = vld [vmem:[%s1 + $0xd0] sm:$0xff]
    %v98 = vld [vmem:[%s1 + $0xd8] sm:$0xff]
    %v99 = vld [vmem:[%s1 + $0xe0] sm:$0xff]
    %v100 = vld [vmem:[%s1 + $0xe8] sm:$0xff]
    %v101 = vld [vmem:[%s1 + $0xf0] sm:$0xff]
    %v102 = vld [vmem:[%s1 + $0xf8] sm:$0xff]
    %v103 = vld [vmem:[%s1 + $0x100] sm:$0xff]
    %v104 = vld [vmem:[%s1 + $0x108] sm:$0xff]
    %v105 = vld [vmem:[%s1 + $0x110] sm:$0xff]
    %v106 = vld [vmem:[%s1 + $0x118] sm:$0xff]
    %v107 = vld [vmem:[%s1 + $0x120] sm:$0xff]
    %v108 = vld [vmem:[%s1 + $0x128] sm:$0xff]
    %v109 = vld [vmem:[%s1 + $0x130] sm:$0xff]
    %v110 = vld [vmem:[%s1 + $0x138] sm:$0xff]
    %v111 = vld [vmem:[%s1 + $0x140] sm:$0xff]
    %v112 = vld [vmem:[%s1 + $0x148] sm:$0xff]
    %v113 = vld [vmem:[%s1 + $0x150] sm:$0xff]
    %vm114 = vcmask 261120
    %v115 = vsel %vm114, %v77, 0.0
    %116 = vadd.xlane.f32.xlu0 %v115
    %v117 = vpop.xlane.xlu0 %116
    %v118 = vsel %vm114, %v78, 0.0
    %119 = vadd.xlane.f32.xlu0 %v118
    %v120 = vpop.xlane.xlu0 %119
    %v121 = vsel %vm114, %v23, 0.0
    %122 = vadd.xlane.f32.xlu0 %v121
    %v123 = vpop.xlane.xlu0 %122
    %v124 = vsel %vm114, %v79, 0.0
    %125 = vadd.xlane.f32.xlu0 %v124
    %v126 = vpop.xlane.xlu0 %125
    %v127 = vsel %vm114, %v80, 0.0
    %128 = vadd.xlane.f32.xlu0 %v127
    %v129 = vpop.xlane.xlu0 %128
    %v130 = vrcp.pop 32.0
    %v131 = vmul.f32 32.0, %v130
    %v132 = vsub.f32 1.0, %v131
    %v133 = vmul.f32 %v130, %v132
    %v134 = vadd.f32 %v130, %v133
    %vm135 = vweird.f32 %v130
    %v136 = vsel %vm135, %v130, %v134
    %v137 = vmul.f32 %v117, %v136
    %v138 = vmul.f32 %v120, %v136
    %v139 = vmul.f32 %v123, %v136
    %v140 = vmul.f32 %v126, %v136
    %v141 = vmul.f32 %v129, %v136
    %v142 = vsub.f32 %v77, %v137
    %v143 = vsub.f32 %v78, %v138
    %v144 = vsub.f32 %v23, %v139
    %v145 = vsub.f32 %v79, %v140
    %v146 = vsub.f32 %v80, %v141
    %v147 = vmul.f32 %v142, %v142
    %v148 = vmul.f32 %v143, %v143
    %v149 = vmul.f32 %v144, %v144
    %v150 = vmul.f32 %v145, %v145
    %v151 = vmul.f32 %v146, %v146
    %v152 = vsel %vm114, %v147, 0.0
    %153 = vadd.xlane.f32.xlu0 %v152
    %v154 = vpop.xlane.xlu0 %153
    %v155 = vsel %vm114, %v148, 0.0
    %156 = vadd.xlane.f32.xlu0 %v155
    %v157 = vpop.xlane.xlu0 %156
    %v158 = vsel %vm114, %v149, 0.0
    %159 = vadd.xlane.f32.xlu0 %v158
    %v160 = vpop.xlane.xlu0 %159
    %v161 = vsel %vm114, %v150, 0.0
    %162 = vadd.xlane.f32.xlu0 %v161
    %v163 = vpop.xlane.xlu0 %162
    %v164 = vsel %vm114, %v151, 0.0
    %165 = vadd.xlane.f32.xlu0 %v164
    %v166 = vpop.xlane.xlu0 %165
    %v167 = vmul.f32 %v154, %v136
    %v168 = vmul.f32 %v157, %v136
    %v169 = vmul.f32 %v160, %v136
    %v170 = vmul.f32 %v163, %v136
    %v171 = vmul.f32 %v166, %v136
    %v172 = vadd.f32 %v167, 1e-06
    %v173 = vadd.f32 %v168, 1e-06
    %v174 = vadd.f32 %v169, 1e-06
    %v175 = vadd.f32 %v170, 1e-06
    %v176 = vadd.f32 %v171, 1e-06
    %v177 = vrsqrt.pop %v172
    %v178 = vmul.f32 %v177, %v172
    %v179 = vmul.f32 %v178, %v177
    %v180 = vmul.f32 0.5, %v179
    %v181 = vsub.f32 1.5, %v180
    %v182 = vmul.f32 %v177, %v181
    %vm183 = vweird.f32 %v172
    %vm184 = vweird.f32 %v177
    %vm185 = vmor %vm183, %vm184
    %v186 = vsel %vm185, %v177, %v182
    %v187 = vrsqrt.pop %v173
    %v188 = vmul.f32 %v187, %v173
    %v189 = vmul.f32 %v188, %v187
    %v190 = vmul.f32 0.5, %v189
    %v191 = vsub.f32 1.5, %v190
    %v192 = vmul.f32 %v187, %v191
    %vm193 = vweird.f32 %v173
    %vm194 = vweird.f32 %v187
    %vm195 = vmor %vm193, %vm194
    %v196 = vsel %vm195, %v187, %v192
    %v197 = vrsqrt.pop %v174
    %v198 = vmul.f32 %v197, %v174
    %v199 = vmul.f32 %v198, %v197
    %v200 = vmul.f32 0.5, %v199
    %v201 = vsub.f32 1.5, %v200
    %v202 = vmul.f32 %v197, %v201
    %vm203 = vweird.f32 %v174
    %vm204 = vweird.f32 %v197
    %vm205 = vmor %vm203, %vm204
    %v206 = vsel %vm205, %v197, %v202
    %v207 = vrsqrt.pop %v175
    %v208 = vmul.f32 %v207, %v175
    %v209 = vmul.f32 %v208, %v207
    %v210 = vmul.f32 0.5, %v209
    %v211 = vsub.f32 1.5, %v210
    %v212 = vmul.f32 %v207, %v211
    %vm213 = vweird.f32 %v175
    %vm214 = vweird.f32 %v207
    %vm215 = vmor %vm213, %vm214
    %v216 = vsel %vm215, %v207, %v212
    %v217 = vrsqrt.pop %v176
    %v218 = vmul.f32 %v217, %v176
    %v219 = vmul.f32 %v218, %v217
    %v220 = vmul.f32 0.5, %v219
    %v221 = vsub.f32 1.5, %v220
    %v222 = vmul.f32 %v217, %v221
    %vm223 = vweird.f32 %v176
    %vm224 = vweird.f32 %v217
    %vm225 = vmor %vm223, %vm224
    %v226 = vsel %vm225, %v217, %v222
    %v227 = vmul.f32 %v142, %v186
    %v228 = vmul.f32 %v143, %v196
    %v229 = vmul.f32 %v144, %v206
    %v230 = vmul.f32 %v145, %v216
    %v231 = vmul.f32 %v146, %v226
    %v232 = vperm.slane %v113, 0
    %v233 = vmul.f32 %v227, %v232
    %v234 = vmul.f32 %v228, %v232
    %v235 = vmul.f32 %v229, %v232
    %v236 = vmul.f32 %v230, %v232
    %v237 = vmul.f32 %v231, %v232
    %v238 = vperm.slane %v113, 1
    %v239 = vadd.f32 %v233, %v238
    %v240 = vadd.f32 %v234, %v238
    %v241 = vadd.f32 %v235, %v238
    %v242 = vadd.f32 %v236, %v238
    %v243 = vadd.f32 %v237, %v238
    %v244 = vperm.slane %v113, 4
    %v246 = vsel %vm114, %v239, 0
    %v249 = vsel %vm114, %v240, 0
    %v252 = vsel %vm114, %v241, 0
    %v255 = vsel %vm114, %v242, 0
    %v258 = vsel %vm114, %v243, 0
    %260 = vmatpush.msra.mxu0 0.0
    %261 = vmatpush.msra.mxu0 0.0
    %262 = vmatpush.msra.mxu0 0.0
    %263 = vmatpush.msra.mxu0 0.0
    %264 = vmatpush.msra.mxu0 0.0
    %265 = vmatpush.msra.mxu0 0.0
    %266 = vmatpush.msra.mxu0 0.0
    %267 = vmatpush.msra.mxu0 0.0
    %268 = vmatpush.msra.mxu0 0.0
    %269 = vmatpush.msra.mxu0 0.0
    %270 = vmatpush.msra.mxu0 0.0
    %271 = vmatpush.msra.mxu0 0.0
    %272 = vmatpush.msra.mxu0 %v88
    %273 = vmatpush.msra.mxu0 %v87
    %274 = vmatpush.msra.mxu0 %v86
    %275 = vmatpush.msra.mxu0 %v85
    %276 = vmatmul.f32.gmra.mxu0 %v246
    %v277 = vpop.f32.mrf.mxu0
    %v278 = vadd.f32 %v244, %v277
    %279 = vmatmul.f32.gmra.mxu0 %v249
    %v280 = vpop.f32.mrf.mxu0
    %v281 = vadd.f32 %v244, %v280
    %282 = vmatmul.f32.gmra.mxu0 %v252
    %v283 = vpop.f32.mrf.mxu0
    %v284 = vadd.f32 %v244, %v283
    %285 = vmatmul.f32.gmra.mxu0 %v255
    %v286 = vpop.f32.mrf.mxu0
    %v287 = vadd.f32 %v244, %v286
    %288 = vmatmul.f32.gmra.mxu0 %v258
    %v289 = vpop.f32.mrf.mxu0
    %v290 = vadd.f32 %v244, %v289
    %291 = vmatmul.f32.gmra.mxu0 %v252
    %v292 = vpop.f32.mrf.mxu0
    %v293 = vadd.f32 %v244, %v292
    %294 = vdwg.mxu0
    %298 = vrot.lane.b32.xlu0 %v278, 96
    %v299 = vpop.permute.xlu0 %298
    %300 = vrot.lane.b32.xlu0 %v281, 96
    %v301 = vpop.permute.xlu0 %300
    %302 = vrot.lane.b32.xlu0 %v284, 96
    %v303 = vpop.permute.xlu0 %302
    %vm304 = vcmask 130048
    %v305 = vsel %vm304, %v278, 0
    %v307 = vsel %vm304, %v281, 0
    %v309 = vsel %vm304, %v284, 0
    %v311 = vsel %vm304, %v299, 0
    %v313 = vsel %vm304, %v301, 0
    %v315 = vsel %vm304, %v303, 0
    %317 = vmatpush.xpose.msra.mxu0 0.0
    %318 = vmatpush.xpose.msra.mxu0 0.0
    %319 = vmatpush.xpose.msra.mxu0 0.0
    %320 = vmatpush.xpose.msra.mxu0 0.0
    %321 = vmatpush.xpose.msra.mxu0 0.0
    %322 = vmatpush.xpose.msra.mxu0 0.0
    %323 = vmatpush.xpose.msra.mxu0 0.0
    %324 = vmatpush.xpose.msra.mxu0 0.0
    %325 = vmatpush.xpose.msra.mxu0 0.0
    %326 = vmatpush.xpose.msra.mxu0 0.0
    %327 = vmatpush.xpose.msra.mxu0 0.0
    %328 = vmatpush.xpose.msra.mxu0 0.0
    %329 = vmatpush.xpose.msra.mxu0 0.0
    %330 = vmatpush.xpose.msra.mxu0 %v315
    %331 = vmatpush.xpose.msra.mxu0 %v313
    %332 = vmatpush.xpose.msra.mxu0 %v311
    %333 = vmatmul.f32.gmra.mxu0 %v305
    %v334 = vpop.f32.mrf.mxu0
    %v335 = vadd.f32 0.0, %v334
    %336 = vmatmul.f32.gmra.mxu0 %v307
    %v337 = vpop.f32.mrf.mxu0
    %v338 = vadd.f32 0.0, %v337
    %339 = vmatmul.f32.gmra.mxu0 %v309
    %v340 = vpop.f32.mrf.mxu0
    %v341 = vadd.f32 0.0, %v340
    %342 = vdwg.mxu0
    %v343 = vmul.f32 %v335, 0.25
    %v344 = vmul.f32 %v338, 0.25
    %v345 = vmul.f32 %v341, 0.25
    %v346 = vadd.f32 %v343, %v84
    %v347 = vadd.f32 %v344, %v84
    %v348 = vadd.f32 %v345, %v84
    %vm349 = vcmask 195584
    %v350 = vsel %vm349, %v346, -inf
    %351 = vmax.xlane.f32.xlu0 %v350
    %v352 = vpop.xlane.xlu0 %351
    %v353 = vsel %vm349, %v347, -inf
    %354 = vmax.xlane.f32.xlu0 %v353
    %v355 = vpop.xlane.xlu0 %354
    %v356 = vsel %vm349, %v348, -inf
    %357 = vmax.xlane.f32.xlu0 %v356
    %v358 = vpop.xlane.xlu0 %357
    %v359 = vsub.f32 %v346, %v352
    %v360 = vsub.f32 %v347, %v355
    %v361 = vsub.f32 %v348, %v358
    %v362 = vmul.f32 %v359, 1.442695
    %v363 = vpow.pop %v362
    %v364 = vmul.f32 %v360, 1.442695
    %v365 = vpow.pop %v364
    %v366 = vmul.f32 %v361, 1.442695
    %v367 = vpow.pop %v366
    %v368 = vsel %vm349, %v363, 0.0
    %369 = vadd.xlane.f32.xlu0 %v368
    %v370 = vpop.xlane.xlu0 %369
    %v371 = vsel %vm349, %v365, 0.0
    %372 = vadd.xlane.f32.xlu0 %v371
    %v373 = vpop.xlane.xlu0 %372
    %v374 = vsel %vm349, %v367, 0.0
    %375 = vadd.xlane.f32.xlu0 %v374
    %v376 = vpop.xlane.xlu0 %375
    %v377 = vrcp.pop %v370
    %v378 = vrcp.pop %v373
    %v379 = vrcp.pop %v376
    %v380 = vmul.f32 %v370, %v377
    %v381 = vmul.f32 %v373, %v378
    %v382 = vmul.f32 %v376, %v379
    %v383 = vsub.f32 2.0, %v380
    %v384 = vsub.f32 2.0, %v381
    %v385 = vsub.f32 2.0, %v382
    %v386 = vmul.f32 %v377, %v383
    %v387 = vmul.f32 %v378, %v384
    %v388 = vmul.f32 %v379, %v385
    %389 = vrot.lane.b32.xlu0 %v278, 64
    %v390 = vpop.permute.xlu0 %389
    %391 = vrot.lane.b32.xlu0 %v281, 64
    %v392 = vpop.permute.xlu0 %391
    %393 = vrot.lane.b32.xlu0 %v284, 64
    %v394 = vpop.permute.xlu0 %393
    %v399 = vsel %vm349, %v363, 0
    %v402 = vsel %vm349, %v365, 0
    %v405 = vsel %vm349, %v367, 0
    %407 = vmatpush.msra.mxu0 0.0
    %408 = vmatpush.msra.mxu0 0.0
    %409 = vmatpush.msra.mxu0 0.0
    %410 = vmatpush.msra.mxu0 0.0
    %411 = vmatpush.msra.mxu0 0.0
    %412 = vmatpush.msra.mxu0 0.0
    %413 = vmatpush.msra.mxu0 0.0
    %414 = vmatpush.msra.mxu0 0.0
    %415 = vmatpush.msra.mxu0 0.0
    %416 = vmatpush.msra.mxu0 0.0
    %417 = vmatpush.msra.mxu0 0.0
    %418 = vmatpush.msra.mxu0 0.0
    %419 = vmatpush.msra.mxu0 0.0
    %420 = vmatpush.msra.mxu0 %v394
    %421 = vmatpush.msra.mxu0 %v392
    %422 = vmatpush.msra.mxu0 %v390
    %423 = vmatmul.f32.gmra.mxu0 %v399
    %v424 = vpop.f32.mrf.mxu0
    %v425 = vadd.f32 0.0, %v424
    %426 = vmatmul.f32.gmra.mxu0 %v402
    %v427 = vpop.f32.mrf.mxu0
    %v428 = vadd.f32 0.0, %v427
    %429 = vmatmul.f32.gmra.mxu0 %v405
    %v430 = vpop.f32.mrf.mxu0
    %v431 = vadd.f32 0.0, %v430
    %432 = vdwg.mxu0
    %v433 = vmul.f32 %v425, %v386
    %v434 = vmul.f32 %v428, %v387
    %v435 = vmul.f32 %v431, %v388
    %436 = vrot.lane.b32.xlu0 %v278, 112
    %v437 = vpop.permute.xlu0 %436
    %438 = vrot.lane.b32.xlu0 %v281, 112
    %v439 = vpop.permute.xlu0 %438
    %440 = vrot.lane.b32.xlu0 %v284, 112
    %v441 = vpop.permute.xlu0 %440
    %442 = vrot.lane.b32.xlu0 %v278, 80
    %v443 = vpop.permute.xlu0 %442
    %444 = vrot.lane.b32.xlu0 %v281, 80
    %v445 = vpop.permute.xlu0 %444
    %446 = vrot.lane.b32.xlu0 %v284, 80
    %v447 = vpop.permute.xlu0 %446
    %v448 = vsel %vm304, %v437, 0
    %v450 = vsel %vm304, %v439, 0
    %v452 = vsel %vm304, %v441, 0
    %v454 = vsel %vm304, %v443, 0
    %v456 = vsel %vm304, %v445, 0
    %v458 = vsel %vm304, %v447, 0
    %460 = vmatpush.xpose.msra.mxu0 0.0
    %461 = vmatpush.xpose.msra.mxu0 0.0
    %462 = vmatpush.xpose.msra.mxu0 0.0
    %463 = vmatpush.xpose.msra.mxu0 0.0
    %464 = vmatpush.xpose.msra.mxu0 0.0
    %465 = vmatpush.xpose.msra.mxu0 0.0
    %466 = vmatpush.xpose.msra.mxu0 0.0
    %467 = vmatpush.xpose.msra.mxu0 0.0
    %468 = vmatpush.xpose.msra.mxu0 0.0
    %469 = vmatpush.xpose.msra.mxu0 0.0
    %470 = vmatpush.xpose.msra.mxu0 0.0
    %471 = vmatpush.xpose.msra.mxu0 0.0
    %472 = vmatpush.xpose.msra.mxu0 0.0
    %473 = vmatpush.xpose.msra.mxu0 %v458
    %474 = vmatpush.xpose.msra.mxu0 %v456
    %475 = vmatpush.xpose.msra.mxu0 %v454
    %476 = vmatmul.f32.gmra.mxu0 %v448
    %v477 = vpop.f32.mrf.mxu0
    %v478 = vadd.f32 0.0, %v477
    %479 = vmatmul.f32.gmra.mxu0 %v450
    %v480 = vpop.f32.mrf.mxu0
    %v481 = vadd.f32 0.0, %v480
    %482 = vmatmul.f32.gmra.mxu0 %v452
    %v483 = vpop.f32.mrf.mxu0
    %v484 = vadd.f32 0.0, %v483
    %485 = vdwg.mxu0
    %v486 = vmul.f32 %v478, 0.25
    %v487 = vmul.f32 %v481, 0.25
    %v488 = vmul.f32 %v484, 0.25
    %v489 = vadd.f32 %v486, %v84
    %v490 = vadd.f32 %v487, %v84
    %v491 = vadd.f32 %v488, %v84
    %v492 = vsel %vm349, %v489, -inf
    %493 = vmax.xlane.f32.xlu0 %v492
    %v494 = vpop.xlane.xlu0 %493
    %v495 = vsel %vm349, %v490, -inf
    %496 = vmax.xlane.f32.xlu0 %v495
    %v497 = vpop.xlane.xlu0 %496
    %v498 = vsel %vm349, %v491, -inf
    %499 = vmax.xlane.f32.xlu0 %v498
    %v500 = vpop.xlane.xlu0 %499
    %v501 = vsub.f32 %v489, %v494
    %v502 = vsub.f32 %v490, %v497
    %v503 = vsub.f32 %v491, %v500
    %v504 = vmul.f32 %v501, 1.442695
    %v505 = vpow.pop %v504
    %v506 = vmul.f32 %v502, 1.442695
    %v507 = vpow.pop %v506
    %v508 = vmul.f32 %v503, 1.442695
    %v509 = vpow.pop %v508
    %v510 = vsel %vm349, %v505, 0.0
    %511 = vadd.xlane.f32.xlu0 %v510
    %v512 = vpop.xlane.xlu0 %511
    %v513 = vsel %vm349, %v507, 0.0
    %514 = vadd.xlane.f32.xlu0 %v513
    %v515 = vpop.xlane.xlu0 %514
    %v516 = vsel %vm349, %v509, 0.0
    %517 = vadd.xlane.f32.xlu0 %v516
    %v518 = vpop.xlane.xlu0 %517
    %v519 = vrcp.pop %v512
    %v520 = vrcp.pop %v515
    %v521 = vrcp.pop %v518
    %v522 = vmul.f32 %v512, %v519
    %v523 = vmul.f32 %v515, %v520
    %v524 = vmul.f32 %v518, %v521
    %v525 = vsub.f32 2.0, %v522
    %v526 = vsub.f32 2.0, %v523
    %v527 = vsub.f32 2.0, %v524
    %v528 = vmul.f32 %v519, %v525
    %v529 = vmul.f32 %v520, %v526
    %v530 = vmul.f32 %v521, %v527
    %531 = vrot.lane.b32.xlu0 %v278, 48
    %v532 = vpop.permute.xlu0 %531
    %533 = vrot.lane.b32.xlu0 %v281, 48
    %v534 = vpop.permute.xlu0 %533
    %535 = vrot.lane.b32.xlu0 %v284, 48
    %v536 = vpop.permute.xlu0 %535
    %v541 = vsel %vm349, %v505, 0
    %v544 = vsel %vm349, %v507, 0
    %v547 = vsel %vm349, %v509, 0
    %549 = vmatpush.msra.mxu0 0.0
    %550 = vmatpush.msra.mxu0 0.0
    %551 = vmatpush.msra.mxu0 0.0
    %552 = vmatpush.msra.mxu0 0.0
    %553 = vmatpush.msra.mxu0 0.0
    %554 = vmatpush.msra.mxu0 0.0
    %555 = vmatpush.msra.mxu0 0.0
    %556 = vmatpush.msra.mxu0 0.0
    %557 = vmatpush.msra.mxu0 0.0
    %558 = vmatpush.msra.mxu0 0.0
    %559 = vmatpush.msra.mxu0 0.0
    %560 = vmatpush.msra.mxu0 0.0
    %561 = vmatpush.msra.mxu0 0.0
    %562 = vmatpush.msra.mxu0 %v536
    %563 = vmatpush.msra.mxu0 %v534
    %564 = vmatpush.msra.mxu0 %v532
    %565 = vmatmul.f32.gmra.mxu0 %v541
    %v566 = vpop.f32.mrf.mxu0
    %v567 = vadd.f32 0.0, %v566
    %568 = vmatmul.f32.gmra.mxu0 %v544
    %v569 = vpop.f32.mrf.mxu0
    %v570 = vadd.f32 0.0, %v569
    %571 = vmatmul.f32.gmra.mxu0 %v547
    %v572 = vpop.f32.mrf.mxu0
    %v573 = vadd.f32 0.0, %v572
    %574 = vdwg.mxu0
    %v575 = vmul.f32 %v567, %v528
    %v576 = vmul.f32 %v570, %v529
    %v577 = vmul.f32 %v573, %v530
    %581 = vrot.lane.b32.xlu0 %v575, 16
    %v582 = vpop.permute.xlu0 %581
    %583 = vrot.lane.b32.xlu0 %v576, 16
    %v584 = vpop.permute.xlu0 %583
    %585 = vrot.lane.b32.xlu0 %v577, 16
    %v586 = vpop.permute.xlu0 %585
    %v590 = vsel %vm304, %v433, %v582
    %v591 = vsel %vm304, %v434, %v584
    %v592 = vsel %vm304, %v435, %v586
    %596 = vrot.lane.b32.xlu0 %v287, 96
    %v597 = vpop.permute.xlu0 %596
    %598 = vrot.lane.b32.xlu0 %v290, 96
    %v599 = vpop.permute.xlu0 %598
    %600 = vrot.lane.b32.xlu0 %v293, 96
    %v601 = vpop.permute.xlu0 %600
    %v602 = vsel %vm304, %v287, 0
    %v604 = vsel %vm304, %v290, 0
    %v606 = vsel %vm304, %v293, 0
    %v608 = vsel %vm304, %v597, 0
    %v610 = vsel %vm304, %v599, 0
    %v612 = vsel %vm304, %v601, 0
    %614 = vmatpush.xpose.msra.mxu0 0.0
    %615 = vmatpush.xpose.msra.mxu0 0.0
    %616 = vmatpush.xpose.msra.mxu0 0.0
    %617 = vmatpush.xpose.msra.mxu0 0.0
    %618 = vmatpush.xpose.msra.mxu0 0.0
    %619 = vmatpush.xpose.msra.mxu0 0.0
    %620 = vmatpush.xpose.msra.mxu0 0.0
    %621 = vmatpush.xpose.msra.mxu0 0.0
    %622 = vmatpush.xpose.msra.mxu0 0.0
    %623 = vmatpush.xpose.msra.mxu0 0.0
    %624 = vmatpush.xpose.msra.mxu0 0.0
    %625 = vmatpush.xpose.msra.mxu0 0.0
    %626 = vmatpush.xpose.msra.mxu0 0.0
    %627 = vmatpush.xpose.msra.mxu0 %v612
    %628 = vmatpush.xpose.msra.mxu0 %v610
    %629 = vmatpush.xpose.msra.mxu0 %v608
    %630 = vmatmul.f32.gmra.mxu0 %v602
    %v631 = vpop.f32.mrf.mxu0
    %v632 = vadd.f32 0.0, %v631
    %633 = vmatmul.f32.gmra.mxu0 %v604
    %v634 = vpop.f32.mrf.mxu0
    %v635 = vadd.f32 0.0, %v634
    %636 = vmatmul.f32.gmra.mxu0 %v606
    %v637 = vpop.f32.mrf.mxu0
    %v638 = vadd.f32 0.0, %v637
    %639 = vdwg.mxu0
    %v640 = vmul.f32 %v632, 0.25
    %v641 = vmul.f32 %v635, 0.25
    %v642 = vmul.f32 %v638, 0.25
    %v643 = vadd.f32 %v640, %v84
    %v644 = vadd.f32 %v641, %v84
    %v645 = vadd.f32 %v642, %v84
    %v646 = vsel %vm349, %v643, -inf
    %647 = vmax.xlane.f32.xlu0 %v646
    %v648 = vpop.xlane.xlu0 %647
    %v649 = vsel %vm349, %v644, -inf
    %650 = vmax.xlane.f32.xlu0 %v649
    %v651 = vpop.xlane.xlu0 %650
    %v652 = vsel %vm349, %v645, -inf
    %653 = vmax.xlane.f32.xlu0 %v652
    %v654 = vpop.xlane.xlu0 %653
    %v655 = vsub.f32 %v643, %v648
    %v656 = vsub.f32 %v644, %v651
    %v657 = vsub.f32 %v645, %v654
    %v658 = vmul.f32 %v655, 1.442695
    %v659 = vpow.pop %v658
    %v660 = vmul.f32 %v656, 1.442695
    %v661 = vpow.pop %v660
    %v662 = vmul.f32 %v657, 1.442695
    %v663 = vpow.pop %v662
    %v664 = vsel %vm349, %v659, 0.0
    %665 = vadd.xlane.f32.xlu0 %v664
    %v666 = vpop.xlane.xlu0 %665
    %v667 = vsel %vm349, %v661, 0.0
    %668 = vadd.xlane.f32.xlu0 %v667
    %v669 = vpop.xlane.xlu0 %668
    %v670 = vsel %vm349, %v663, 0.0
    %671 = vadd.xlane.f32.xlu0 %v670
    %v672 = vpop.xlane.xlu0 %671
    %v673 = vrcp.pop %v666
    %v674 = vrcp.pop %v669
    %v675 = vrcp.pop %v672
    %v676 = vmul.f32 %v666, %v673
    %v677 = vmul.f32 %v669, %v674
    %v678 = vmul.f32 %v672, %v675
    %v679 = vsub.f32 2.0, %v676
    %v680 = vsub.f32 2.0, %v677
    %v681 = vsub.f32 2.0, %v678
    %v682 = vmul.f32 %v673, %v679
    %v683 = vmul.f32 %v674, %v680
    %v684 = vmul.f32 %v675, %v681
    %685 = vrot.lane.b32.xlu0 %v287, 64
    %v686 = vpop.permute.xlu0 %685
    %687 = vrot.lane.b32.xlu0 %v290, 64
    %v688 = vpop.permute.xlu0 %687
    %689 = vrot.lane.b32.xlu0 %v293, 64
    %v690 = vpop.permute.xlu0 %689
    %v695 = vsel %vm349, %v659, 0
    %v698 = vsel %vm349, %v661, 0
    %v701 = vsel %vm349, %v663, 0
    %703 = vmatpush.msra.mxu0 0.0
    %704 = vmatpush.msra.mxu0 0.0
    %705 = vmatpush.msra.mxu0 0.0
    %706 = vmatpush.msra.mxu0 0.0
    %707 = vmatpush.msra.mxu0 0.0
    %708 = vmatpush.msra.mxu0 0.0
    %709 = vmatpush.msra.mxu0 0.0
    %710 = vmatpush.msra.mxu0 0.0
    %711 = vmatpush.msra.mxu0 0.0
    %712 = vmatpush.msra.mxu0 0.0
    %713 = vmatpush.msra.mxu0 0.0
    %714 = vmatpush.msra.mxu0 0.0
    %715 = vmatpush.msra.mxu0 0.0
    %716 = vmatpush.msra.mxu0 %v690
    %717 = vmatpush.msra.mxu0 %v688
    %718 = vmatpush.msra.mxu0 %v686
    %719 = vmatmul.f32.gmra.mxu0 %v695
    %v720 = vpop.f32.mrf.mxu0
    %v721 = vadd.f32 0.0, %v720
    %722 = vmatmul.f32.gmra.mxu0 %v698
    %v723 = vpop.f32.mrf.mxu0
    %v724 = vadd.f32 0.0, %v723
    %725 = vmatmul.f32.gmra.mxu0 %v701
    %v726 = vpop.f32.mrf.mxu0
    %v727 = vadd.f32 0.0, %v726
    %728 = vdwg.mxu0
    %v729 = vmul.f32 %v721, %v682
    %v730 = vmul.f32 %v724, %v683
    %v731 = vmul.f32 %v727, %v684
    %732 = vrot.lane.b32.xlu0 %v287, 112
    %v733 = vpop.permute.xlu0 %732
    %734 = vrot.lane.b32.xlu0 %v290, 112
    %v735 = vpop.permute.xlu0 %734
    %736 = vrot.lane.b32.xlu0 %v293, 112
    %v737 = vpop.permute.xlu0 %736
    %738 = vrot.lane.b32.xlu0 %v287, 80
    %v739 = vpop.permute.xlu0 %738
    %740 = vrot.lane.b32.xlu0 %v290, 80
    %v741 = vpop.permute.xlu0 %740
    %742 = vrot.lane.b32.xlu0 %v293, 80
    %v743 = vpop.permute.xlu0 %742
    %v744 = vsel %vm304, %v733, 0
    %v746 = vsel %vm304, %v735, 0
    %v748 = vsel %vm304, %v737, 0
    %v750 = vsel %vm304, %v739, 0
    %v752 = vsel %vm304, %v741, 0
    %v754 = vsel %vm304, %v743, 0
    %756 = vmatpush.xpose.msra.mxu0 0.0
    %757 = vmatpush.xpose.msra.mxu0 0.0
    %758 = vmatpush.xpose.msra.mxu0 0.0
    %759 = vmatpush.xpose.msra.mxu0 0.0
    %760 = vmatpush.xpose.msra.mxu0 0.0
    %761 = vmatpush.xpose.msra.mxu0 0.0
    %762 = vmatpush.xpose.msra.mxu0 0.0
    %763 = vmatpush.xpose.msra.mxu0 0.0
    %764 = vmatpush.xpose.msra.mxu0 0.0
    %765 = vmatpush.xpose.msra.mxu0 0.0
    %766 = vmatpush.xpose.msra.mxu0 0.0
    %767 = vmatpush.xpose.msra.mxu0 0.0
    %768 = vmatpush.xpose.msra.mxu0 0.0
    %769 = vmatpush.xpose.msra.mxu0 %v754
    %770 = vmatpush.xpose.msra.mxu0 %v752
    %771 = vmatpush.xpose.msra.mxu0 %v750
    %772 = vmatmul.f32.gmra.mxu0 %v744
    %v773 = vpop.f32.mrf.mxu0
    %v774 = vadd.f32 0.0, %v773
    %775 = vmatmul.f32.gmra.mxu0 %v746
    %v776 = vpop.f32.mrf.mxu0
    %v777 = vadd.f32 0.0, %v776
    %778 = vmatmul.f32.gmra.mxu0 %v748
    %v779 = vpop.f32.mrf.mxu0
    %v780 = vadd.f32 0.0, %v779
    %781 = vdwg.mxu0
    %v782 = vmul.f32 %v774, 0.25
    %v783 = vmul.f32 %v777, 0.25
    %v784 = vmul.f32 %v780, 0.25
    %v785 = vadd.f32 %v782, %v84
    %v786 = vadd.f32 %v783, %v84
    %v787 = vadd.f32 %v784, %v84
    %v788 = vsel %vm349, %v785, -inf
    %789 = vmax.xlane.f32.xlu0 %v788
    %v790 = vpop.xlane.xlu0 %789
    %v791 = vsel %vm349, %v786, -inf
    %792 = vmax.xlane.f32.xlu0 %v791
    %v793 = vpop.xlane.xlu0 %792
    %v794 = vsel %vm349, %v787, -inf
    %795 = vmax.xlane.f32.xlu0 %v794
    %v796 = vpop.xlane.xlu0 %795
    %v797 = vsub.f32 %v785, %v790
    %v798 = vsub.f32 %v786, %v793
    %v799 = vsub.f32 %v787, %v796
    %v800 = vmul.f32 %v797, 1.442695
    %v801 = vpow.pop %v800
    %v802 = vmul.f32 %v798, 1.442695
    %v803 = vpow.pop %v802
    %v804 = vmul.f32 %v799, 1.442695
    %v805 = vpow.pop %v804
    %v806 = vsel %vm349, %v801, 0.0
    %807 = vadd.xlane.f32.xlu0 %v806
    %v808 = vpop.xlane.xlu0 %807
    %v809 = vsel %vm349, %v803, 0.0
    %810 = vadd.xlane.f32.xlu0 %v809
    %v811 = vpop.xlane.xlu0 %810
    %v812 = vsel %vm349, %v805, 0.0
    %813 = vadd.xlane.f32.xlu0 %v812
    %v814 = vpop.xlane.xlu0 %813
    %v815 = vrcp.pop %v808
    %v816 = vrcp.pop %v811
    %v817 = vrcp.pop %v814
    %v818 = vmul.f32 %v808, %v815
    %v819 = vmul.f32 %v811, %v816
    %v820 = vmul.f32 %v814, %v817
    %v821 = vsub.f32 2.0, %v818
    %v822 = vsub.f32 2.0, %v819
    %v823 = vsub.f32 2.0, %v820
    %v824 = vmul.f32 %v815, %v821
    %v825 = vmul.f32 %v816, %v822
    %v826 = vmul.f32 %v817, %v823
    %827 = vrot.lane.b32.xlu0 %v287, 48
    %v828 = vpop.permute.xlu0 %827
    %829 = vrot.lane.b32.xlu0 %v290, 48
    %v830 = vpop.permute.xlu0 %829
    %831 = vrot.lane.b32.xlu0 %v293, 48
    %v832 = vpop.permute.xlu0 %831
    %v837 = vsel %vm349, %v801, 0
    %v840 = vsel %vm349, %v803, 0
    %v843 = vsel %vm349, %v805, 0
    %845 = vmatpush.msra.mxu0 0.0
    %846 = vmatpush.msra.mxu0 0.0
    %847 = vmatpush.msra.mxu0 0.0
    %848 = vmatpush.msra.mxu0 0.0
    %849 = vmatpush.msra.mxu0 0.0
    %850 = vmatpush.msra.mxu0 0.0
    %851 = vmatpush.msra.mxu0 0.0
    %852 = vmatpush.msra.mxu0 0.0
    %853 = vmatpush.msra.mxu0 0.0
    %854 = vmatpush.msra.mxu0 0.0
    %855 = vmatpush.msra.mxu0 0.0
    %856 = vmatpush.msra.mxu0 0.0
    %857 = vmatpush.msra.mxu0 0.0
    %858 = vmatpush.msra.mxu0 %v832
    %859 = vmatpush.msra.mxu0 %v830
    %860 = vmatpush.msra.mxu0 %v828
    %861 = vmatmul.f32.gmra.mxu0 %v837
    %v862 = vpop.f32.mrf.mxu0
    %v863 = vadd.f32 0.0, %v862
    %864 = vmatmul.f32.gmra.mxu0 %v840
    %v865 = vpop.f32.mrf.mxu0
    %v866 = vadd.f32 0.0, %v865
    %867 = vmatmul.f32.gmra.mxu0 %v843
    %v868 = vpop.f32.mrf.mxu0
    %v869 = vadd.f32 0.0, %v868
    %870 = vdwg.mxu0
    %v871 = vmul.f32 %v863, %v824
    %v872 = vmul.f32 %v866, %v825
    %v873 = vmul.f32 %v869, %v826
    %877 = vrot.lane.b32.xlu0 %v871, 16
    %v878 = vpop.permute.xlu0 %877
    %879 = vrot.lane.b32.xlu0 %v872, 16
    %v880 = vpop.permute.xlu0 %879
    %881 = vrot.lane.b32.xlu0 %v873, 16
    %v882 = vpop.permute.xlu0 %881
    %v886 = vsel %vm304, %v729, %v878
    %v887 = vsel %vm304, %v730, %v880
    %v888 = vsel %vm304, %v731, %v882
    %v890 = vsel %vm114, %v590, 0
    %v893 = vsel %vm114, %v591, 0
    %v896 = vsel %vm114, %v592, 0
    %v899 = vsel %vm114, %v886, 0
    %v902 = vsel %vm114, %v887, 0
    %v905 = vsel %vm114, %v888, 0
    %907 = vmatpush.msra.mxu0 0.0
    %908 = vmatpush.msra.mxu0 0.0
    %909 = vmatpush.msra.mxu0 0.0
    %910 = vmatpush.msra.mxu0 0.0
    %911 = vmatpush.msra.mxu0 0.0
    %912 = vmatpush.msra.mxu0 0.0
    %913 = vmatpush.msra.mxu0 0.0
    %914 = vmatpush.msra.mxu0 0.0
    %915 = vmatpush.msra.mxu0 0.0
    %916 = vmatpush.msra.mxu0 0.0
    %917 = vmatpush.msra.mxu0 0.0
    %918 = vmatpush.msra.mxu0 0.0
    %919 = vmatpush.msra.mxu0 %v92
    %920 = vmatpush.msra.mxu0 %v91
    %921 = vmatpush.msra.mxu0 %v90
    %922 = vmatpush.msra.mxu0 %v89
    %923 = vmatmul.f32.gmra.mxu0 %v890
    %v924 = vpop.f32.mrf.mxu0
    %v925 = vadd.f32 0.0, %v924
    %926 = vmatmul.f32.gmra.mxu0 %v893
    %v927 = vpop.f32.mrf.mxu0
    %v928 = vadd.f32 0.0, %v927
    %929 = vmatmul.f32.gmra.mxu0 %v896
    %v930 = vpop.f32.mrf.mxu0
    %v931 = vadd.f32 0.0, %v930
    %932 = vmatmul.f32.gmra.mxu0 %v899
    %v933 = vpop.f32.mrf.mxu0
    %v934 = vadd.f32 0.0, %v933
    %935 = vmatmul.f32.gmra.mxu0 %v902
    %v936 = vpop.f32.mrf.mxu0
    %v937 = vadd.f32 0.0, %v936
    %938 = vmatmul.f32.gmra.mxu0 %v905
    %v939 = vpop.f32.mrf.mxu0
    %v940 = vadd.f32 0.0, %v939
    %941 = vdwg.mxu0
    %v942 = vadd.f32 %v77, %v925
    %v943 = vadd.f32 %v78, %v928
    %v944 = vadd.f32 %v23, %v931
    %v945 = vadd.f32 %v79, %v934
    %v946 = vadd.f32 %v80, %v937
    %v947 = vadd.f32 %v23, %v940
    %v948 = vperm.slane %v113, 5
    %v949 = vadd.f32 %v942, %v948
    %v950 = vadd.f32 %v943, %v948
    %v951 = vadd.f32 %v944, %v948
    %v952 = vadd.f32 %v945, %v948
    %v953 = vadd.f32 %v946, %v948
    %v954 = vadd.f32 %v947, %v948
    %v955 = vsel %vm114, %v949, 0.0
    %956 = vadd.xlane.f32.xlu0 %v955
    %v957 = vpop.xlane.xlu0 %956
    %v958 = vsel %vm114, %v950, 0.0
    %959 = vadd.xlane.f32.xlu0 %v958
    %v960 = vpop.xlane.xlu0 %959
    %v961 = vsel %vm114, %v951, 0.0
    %962 = vadd.xlane.f32.xlu0 %v961
    %v963 = vpop.xlane.xlu0 %962
    %v964 = vsel %vm114, %v952, 0.0
    %965 = vadd.xlane.f32.xlu0 %v964
    %v966 = vpop.xlane.xlu0 %965
    %v967 = vsel %vm114, %v953, 0.0
    %968 = vadd.xlane.f32.xlu0 %v967
    %v969 = vpop.xlane.xlu0 %968
    %v970 = vsel %vm114, %v954, 0.0
    %971 = vadd.xlane.f32.xlu0 %v970
    %v972 = vpop.xlane.xlu0 %971
    %v973 = vmul.f32 %v957, %v136
    %v974 = vmul.f32 %v960, %v136
    %v975 = vmul.f32 %v963, %v136
    %v976 = vmul.f32 %v966, %v136
    %v977 = vmul.f32 %v969, %v136
    %v978 = vmul.f32 %v972, %v136
    %v979 = vsub.f32 %v949, %v973
    %v980 = vsub.f32 %v950, %v974
    %v981 = vsub.f32 %v951, %v975
    %v982 = vsub.f32 %v952, %v976
    %v983 = vsub.f32 %v953, %v977
    %v984 = vsub.f32 %v954, %v978
    %v985 = vmul.f32 %v979, %v979
    %v986 = vmul.f32 %v980, %v980
    %v987 = vmul.f32 %v981, %v981
    %v988 = vmul.f32 %v982, %v982
    %v989 = vmul.f32 %v983, %v983
    %v990 = vmul.f32 %v984, %v984
    %v991 = vsel %vm114, %v985, 0.0
    %992 = vadd.xlane.f32.xlu0 %v991
    %v993 = vpop.xlane.xlu0 %992
    %v994 = vsel %vm114, %v986, 0.0
    %995 = vadd.xlane.f32.xlu0 %v994
    %v996 = vpop.xlane.xlu0 %995
    %v997 = vsel %vm114, %v987, 0.0
    %998 = vadd.xlane.f32.xlu0 %v997
    %v999 = vpop.xlane.xlu0 %998
    %v1000 = vsel %vm114, %v988, 0.0
    %1001 = vadd.xlane.f32.xlu0 %v1000
    %v1002 = vpop.xlane.xlu0 %1001
    %v1003 = vsel %vm114, %v989, 0.0
    %1004 = vadd.xlane.f32.xlu0 %v1003
    %v1005 = vpop.xlane.xlu0 %1004
    %v1006 = vsel %vm114, %v990, 0.0
    %1007 = vadd.xlane.f32.xlu0 %v1006
    %v1008 = vpop.xlane.xlu0 %1007
    %v1009 = vmul.f32 %v993, %v136
    %v1010 = vmul.f32 %v996, %v136
    %v1011 = vmul.f32 %v999, %v136
    %v1012 = vmul.f32 %v1002, %v136
    %v1013 = vmul.f32 %v1005, %v136
    %v1014 = vmul.f32 %v1008, %v136
    %v1015 = vadd.f32 %v1009, 1e-06
    %v1016 = vadd.f32 %v1010, 1e-06
    %v1017 = vadd.f32 %v1011, 1e-06
    %v1018 = vadd.f32 %v1012, 1e-06
    %v1019 = vadd.f32 %v1013, 1e-06
    %v1020 = vadd.f32 %v1014, 1e-06
    %v1021 = vrsqrt.pop %v1015
    %v1022 = vmul.f32 %v1021, %v1015
    %v1023 = vmul.f32 %v1022, %v1021
    %v1024 = vmul.f32 0.5, %v1023
    %v1025 = vsub.f32 1.5, %v1024
    %v1026 = vmul.f32 %v1021, %v1025
    %vm1027 = vweird.f32 %v1015
    %vm1028 = vweird.f32 %v1021
    %vm1029 = vmor %vm1027, %vm1028
    %v1030 = vsel %vm1029, %v1021, %v1026
    %v1031 = vrsqrt.pop %v1016
    %v1032 = vmul.f32 %v1031, %v1016
    %v1033 = vmul.f32 %v1032, %v1031
    %v1034 = vmul.f32 0.5, %v1033
    %v1035 = vsub.f32 1.5, %v1034
    %v1036 = vmul.f32 %v1031, %v1035
    %vm1037 = vweird.f32 %v1016
    %vm1038 = vweird.f32 %v1031
    %vm1039 = vmor %vm1037, %vm1038
    %v1040 = vsel %vm1039, %v1031, %v1036
    %v1041 = vrsqrt.pop %v1017
    %v1042 = vmul.f32 %v1041, %v1017
    %v1043 = vmul.f32 %v1042, %v1041
    %v1044 = vmul.f32 0.5, %v1043
    %v1045 = vsub.f32 1.5, %v1044
    %v1046 = vmul.f32 %v1041, %v1045
    %vm1047 = vweird.f32 %v1017
    %vm1048 = vweird.f32 %v1041
    %vm1049 = vmor %vm1047, %vm1048
    %v1050 = vsel %vm1049, %v1041, %v1046
    %v1051 = vrsqrt.pop %v1018
    %v1052 = vmul.f32 %v1051, %v1018
    %v1053 = vmul.f32 %v1052, %v1051
    %v1054 = vmul.f32 0.5, %v1053
    %v1055 = vsub.f32 1.5, %v1054
    %v1056 = vmul.f32 %v1051, %v1055
    %vm1057 = vweird.f32 %v1018
    %vm1058 = vweird.f32 %v1051
    %vm1059 = vmor %vm1057, %vm1058
    %v1060 = vsel %vm1059, %v1051, %v1056
    %v1061 = vrsqrt.pop %v1019
    %v1062 = vmul.f32 %v1061, %v1019
    %v1063 = vmul.f32 %v1062, %v1061
    %v1064 = vmul.f32 0.5, %v1063
    %v1065 = vsub.f32 1.5, %v1064
    %v1066 = vmul.f32 %v1061, %v1065
    %vm1067 = vweird.f32 %v1019
    %vm1068 = vweird.f32 %v1061
    %vm1069 = vmor %vm1067, %vm1068
    %v1070 = vsel %vm1069, %v1061, %v1066
    %v1071 = vrsqrt.pop %v1020
    %v1072 = vmul.f32 %v1071, %v1020
    %v1073 = vmul.f32 %v1072, %v1071
    %v1074 = vmul.f32 0.5, %v1073
    %v1075 = vsub.f32 1.5, %v1074
    %v1076 = vmul.f32 %v1071, %v1075
    %vm1077 = vweird.f32 %v1020
    %vm1078 = vweird.f32 %v1071
    %vm1079 = vmor %vm1077, %vm1078
    %v1080 = vsel %vm1079, %v1071, %v1076
    %v1081 = vmul.f32 %v979, %v1030
    %v1082 = vmul.f32 %v980, %v1040
    %v1083 = vmul.f32 %v981, %v1050
    %v1084 = vmul.f32 %v982, %v1060
    %v1085 = vmul.f32 %v983, %v1070
    %v1086 = vmul.f32 %v984, %v1080
    %v1087 = vperm.slane %v113, 2
    %v1088 = vmul.f32 %v1081, %v1087
    %v1089 = vmul.f32 %v1082, %v1087
    %v1090 = vmul.f32 %v1083, %v1087
    %v1091 = vmul.f32 %v1084, %v1087
    %v1092 = vmul.f32 %v1085, %v1087
    %v1093 = vmul.f32 %v1086, %v1087
    %v1094 = vperm.slane %v113, 3
    %v1095 = vadd.f32 %v1088, %v1094
    %v1096 = vadd.f32 %v1089, %v1094
    %v1097 = vadd.f32 %v1090, %v1094
    %v1098 = vadd.f32 %v1091, %v1094
    %v1099 = vadd.f32 %v1092, %v1094
    %v1100 = vadd.f32 %v1093, %v1094
    %v1101 = vperm.slane %v113, 6
    %v1103 = vsel %vm114, %v1095, 0
    %v1106 = vsel %vm114, %v1096, 0
    %v1109 = vsel %vm114, %v1097, 0
    %v1112 = vsel %vm114, %v1098, 0
    %v1115 = vsel %vm114, %v1099, 0
    %v1118 = vsel %vm114, %v1100, 0
    %1120 = vmatpush.msra.mxu0 0.0
    %1121 = vmatpush.msra.mxu0 0.0
    %1122 = vmatpush.msra.mxu0 0.0
    %1123 = vmatpush.msra.mxu0 0.0
    %1124 = vmatpush.msra.mxu0 0.0
    %1125 = vmatpush.msra.mxu0 0.0
    %1126 = vmatpush.msra.mxu0 0.0
    %1127 = vmatpush.msra.mxu0 0.0
    %1128 = vmatpush.msra.mxu0 0.0
    %1129 = vmatpush.msra.mxu0 0.0
    %1130 = vmatpush.msra.mxu0 0.0
    %1131 = vmatpush.msra.mxu0 0.0
    %1132 = vmatpush.msra.mxu0 %v96
    %1133 = vmatpush.msra.mxu0 %v95
    %1134 = vmatpush.msra.mxu0 %v94
    %1135 = vmatpush.msra.mxu0 %v93
    %1136 = vmatmul.f32.gmra.mxu0 %v1103
    %v1137 = vpop.f32.mrf.mxu0
    %v1138 = vadd.f32 %v1101, %v1137
    %1139 = vmatmul.f32.gmra.mxu0 %v1106
    %v1140 = vpop.f32.mrf.mxu0
    %v1141 = vadd.f32 %v1101, %v1140
    %1142 = vmatmul.f32.gmra.mxu0 %v1109
    %v1143 = vpop.f32.mrf.mxu0
    %v1144 = vadd.f32 %v1101, %v1143
    %1145 = vmatmul.f32.gmra.mxu0 %v1112
    %v1146 = vpop.f32.mrf.mxu0
    %v1147 = vadd.f32 %v1101, %v1146
    %1148 = vmatmul.f32.gmra.mxu0 %v1115
    %v1149 = vpop.f32.mrf.mxu0
    %v1150 = vadd.f32 %v1101, %v1149
    %1151 = vmatmul.f32.gmra.mxu0 %v1118
    %v1152 = vpop.f32.mrf.mxu0
    %v1153 = vadd.f32 %v1101, %v1152
    %1154 = vdwg.mxu0
    %v1155 = vmul.f32 %v1138, %v1138
    %v1156 = vmul.f32 %v1141, %v1141
    %v1157 = vmul.f32 %v1144, %v1144
    %v1158 = vmul.f32 %v1147, %v1147
    %v1159 = vmul.f32 %v1150, %v1150
    %v1160 = vmul.f32 %v1153, %v1153
    %v1161 = vmul.f32 %v1138, %v1155
    %v1162 = vmul.f32 %v1141, %v1156
    %v1163 = vmul.f32 %v1144, %v1157
    %v1164 = vmul.f32 %v1147, %v1158
    %v1165 = vmul.f32 %v1150, %v1159
    %v1166 = vmul.f32 %v1153, %v1160
    %v1167 = vmul.f32 %v1161, 0.044715
    %v1168 = vmul.f32 %v1162, 0.044715
    %v1169 = vmul.f32 %v1163, 0.044715
    %v1170 = vmul.f32 %v1164, 0.044715
    %v1171 = vmul.f32 %v1165, 0.044715
    %v1172 = vmul.f32 %v1166, 0.044715
    %v1173 = vadd.f32 %v1138, %v1167
    %v1174 = vadd.f32 %v1141, %v1168
    %v1175 = vadd.f32 %v1144, %v1169
    %v1176 = vadd.f32 %v1147, %v1170
    %v1177 = vadd.f32 %v1150, %v1171
    %v1178 = vadd.f32 %v1153, %v1172
    %v1179 = vmul.f32 %v1173, 0.7978846
    %v1180 = vmul.f32 %v1174, 0.7978846
    %v1181 = vmul.f32 %v1175, 0.7978846
    %v1182 = vmul.f32 %v1176, 0.7978846
    %v1183 = vmul.f32 %v1177, 0.7978846
    %v1184 = vmul.f32 %v1178, 0.7978846
    %v1185 = vtanh.pop %v1179
    %v1186 = vtanh.pop %v1180
    %v1187 = vtanh.pop %v1181
    %v1188 = vtanh.pop %v1182
    %v1189 = vtanh.pop %v1183
    %v1190 = vtanh.pop %v1184
    %v1191 = vadd.f32 %v1185, 1.0
    %v1192 = vadd.f32 %v1186, 1.0
    %v1193 = vadd.f32 %v1187, 1.0
    %v1194 = vadd.f32 %v1188, 1.0
    %v1195 = vadd.f32 %v1189, 1.0
    %v1196 = vadd.f32 %v1190, 1.0
    %v1197 = vmul.f32 %v1191, 0.5
    %v1198 = vmul.f32 %v1192, 0.5
    %v1199 = vmul.f32 %v1193, 0.5
    %v1200 = vmul.f32 %v1194, 0.5
    %v1201 = vmul.f32 %v1195, 0.5
    %v1202 = vmul.f32 %v1196, 0.5
    %v1203 = vmul.f32 %v1138, %v1197
    %v1204 = vmul.f32 %v1141, %v1198
    %v1205 = vmul.f32 %v1144, %v1199
    %v1206 = vmul.f32 %v1147, %v1200
    %v1207 = vmul.f32 %v1150, %v1201
    %v1208 = vmul.f32 %v1153, %v1202
    %1209 = vmatpush.msra.mxu0 %v112
    %1210 = vmatpush.msra.mxu0 %v111
    %1211 = vmatpush.msra.mxu0 %v110
    %1212 = vmatpush.msra.mxu0 %v109
    %1213 = vmatpush.msra.mxu0 %v108
    %1214 = vmatpush.msra.mxu0 %v107
    %1215 = vmatpush.msra.mxu0 %v106
    %1216 = vmatpush.msra.mxu0 %v105
    %1217 = vmatpush.msra.mxu0 %v104
    %1218 = vmatpush.msra.mxu0 %v103
    %1219 = vmatpush.msra.mxu0 %v102
    %1220 = vmatpush.msra.mxu0 %v101
    %1221 = vmatpush.msra.mxu0 %v100
    %1222 = vmatpush.msra.mxu0 %v99
    %1223 = vmatpush.msra.mxu0 %v98
    %1224 = vmatpush.msra.mxu0 %v97
    %1225 = vmatmul.f32.gmra.mxu0 %v1203
    %v1226 = vpop.f32.mrf.mxu0
    %v1227 = vadd.f32 0.0, %v1226
    %1228 = vmatmul.f32.gmra.mxu0 %v1204
    %v1229 = vpop.f32.mrf.mxu0
    %v1230 = vadd.f32 0.0, %v1229
    %1231 = vmatmul.f32.gmra.mxu0 %v1205
    %v1232 = vpop.f32.mrf.mxu0
    %v1233 = vadd.f32 0.0, %v1232
    %1234 = vmatmul.f32.gmra.mxu0 %v1206
    %v1235 = vpop.f32.mrf.mxu0
    %v1236 = vadd.f32 0.0, %v1235
    %1237 = vmatmul.f32.gmra.mxu0 %v1207
    %v1238 = vpop.f32.mrf.mxu0
    %v1239 = vadd.f32 0.0, %v1238
    %1240 = vmatmul.f32.gmra.mxu0 %v1208
    %v1241 = vpop.f32.mrf.mxu0
    %v1242 = vadd.f32 0.0, %v1241
    %1243 = vdwg.mxu0
    %v1244 = vadd.f32 %v949, %v1227
    %v1245 = vadd.f32 %v950, %v1230
    %v1246 = vadd.f32 %v951, %v1233
    %v1247 = vadd.f32 %v952, %v1236
    %v1248 = vadd.f32 %v953, %v1239
    %v1249 = vadd.f32 %v954, %v1242
    %v1250 = vperm.slane %v113, 7
    %v1251 = vadd.f32 %v1244, %v1250
    %v1252 = vadd.f32 %v1245, %v1250
    %v1253 = vadd.f32 %v1246, %v1250
    %v1254 = vadd.f32 %v1247, %v1250
    %v1255 = vadd.f32 %v1248, %v1250
    %v1256 = vadd.f32 %v1249, %v1250
    %v1257 = vld [vmem:[%s1 + $0x158] sm:$0xff]
    %v1258 = vld [vmem:[%s1 + $0x160] sm:$0xff]
    %v1259 = vld [vmem:[%s1 + $0x168] sm:$0xff]
    %v1260 = vld [vmem:[%s1 + $0x170] sm:$0xff]
    %v1261 = vld [vmem:[%s1 + $0x178] sm:$0xff]
    %v1262 = vld [vmem:[%s1 + $0x180] sm:$0xff]
    %v1263 = vld [vmem:[%s1 + $0x188] sm:$0xff]
    %v1264 = vld [vmem:[%s1 + $0x190] sm:$0xff]
    %v1265 = vld [vmem:[%s1 + $0x198] sm:$0xff]
    %v1266 = vld [vmem:[%s1 + $0x1a0] sm:$0xff]
    %v1267 = vld [vmem:[%s1 + $0x1a8] sm:$0xff]
    %v1268 = vld [vmem:[%s1 + $0x1b0] sm:$0xff]
    %v1269 = vld [vmem:[%s1 + $0x1b8] sm:$0xff]
    %v1270 = vld [vmem:[%s1 + $0x1c0] sm:$0xff]
    %v1271 = vld [vmem:[%s1 + $0x1c8] sm:$0xff]
    %v1272 = vld [vmem:[%s1 + $0x1d0] sm:$0xff]
    %v1273 = vld [vmem:[%s1 + $0x1d8] sm:$0xff]
    %v1274 = vld [vmem:[%s1 + $0x1e0] sm:$0xff]
    %v1275 = vld [vmem:[%s1 + $0x1e8] sm:$0xff]
    %v1276 = vld [vmem:[%s1 + $0x1f0] sm:$0xff]
    %v1277 = vld [vmem:[%s1 + $0x1f8] sm:$0xff]
    %v1278 = vld [vmem:[%s1 + $0x200] sm:$0xff]
    %v1279 = vld [vmem:[%s1 + $0x208] sm:$0xff]
    %v1280 = vld [vmem:[%s1 + $0x210] sm:$0xff]
    %v1281 = vld [vmem:[%s1 + $0x218] sm:$0xff]
    %v1282 = vld [vmem:[%s1 + $0x220] sm:$0xff]
    %v1283 = vld [vmem:[%s1 + $0x228] sm:$0xff]
    %v1284 = vld [vmem:[%s1 + $0x230] sm:$0xff]
    %v1285 = vld [vmem:[%s1 + $0x238] sm:$0xff]
    %v1286 = vsel %vm114, %v1251, 0.0
    %1287 = vadd.xlane.f32.xlu0 %v1286
    %v1288 = vpop.xlane.xlu0 %1287
    %v1289 = vsel %vm114, %v1252, 0.0
    %1290 = vadd.xlane.f32.xlu0 %v1289
    %v1291 = vpop.xlane.xlu0 %1290
    %v1292 = vsel %vm114, %v1253, 0.0
    %1293 = vadd.xlane.f32.xlu0 %v1292
    %v1294 = vpop.xlane.xlu0 %1293
    %v1295 = vsel %vm114, %v1254, 0.0
    %1296 = vadd.xlane.f32.xlu0 %v1295
    %v1297 = vpop.xlane.xlu0 %1296
    %v1298 = vsel %vm114, %v1255, 0.0
    %1299 = vadd.xlane.f32.xlu0 %v1298
    %v1300 = vpop.xlane.xlu0 %1299
    %v1301 = vsel %vm114, %v1256, 0.0
    %1302 = vadd.xlane.f32.xlu0 %v1301
    %v1303 = vpop.xlane.xlu0 %1302
    %v1304 = vmul.f32 %v1288, %v136
    %v1305 = vmul.f32 %v1291, %v136
    %v1306 = vmul.f32 %v1294, %v136
    %v1307 = vmul.f32 %v1297, %v136
    %v1308 = vmul.f32 %v1300, %v136
    %v1309 = vmul.f32 %v1303, %v136
    %v1310 = vsub.f32 %v1251, %v1304
    %v1311 = vsub.f32 %v1252, %v1305
    %v1312 = vsub.f32 %v1253, %v1306
    %v1313 = vsub.f32 %v1254, %v1307
    %v1314 = vsub.f32 %v1255, %v1308
    %v1315 = vsub.f32 %v1256, %v1309
    %v1316 = vmul.f32 %v1310, %v1310
    %v1317 = vmul.f32 %v1311, %v1311
    %v1318 = vmul.f32 %v1312, %v1312
    %v1319 = vmul.f32 %v1313, %v1313
    %v1320 = vmul.f32 %v1314, %v1314
    %v1321 = vmul.f32 %v1315, %v1315
    %v1322 = vsel %vm114, %v1316, 0.0
    %1323 = vadd.xlane.f32.xlu0 %v1322
    %v1324 = vpop.xlane.xlu0 %1323
    %v1325 = vsel %vm114, %v1317, 0.0
    %1326 = vadd.xlane.f32.xlu0 %v1325
    %v1327 = vpop.xlane.xlu0 %1326
    %v1328 = vsel %vm114, %v1318, 0.0
    %1329 = vadd.xlane.f32.xlu0 %v1328
    %v1330 = vpop.xlane.xlu0 %1329
    %v1331 = vsel %vm114, %v1319, 0.0
    %1332 = vadd.xlane.f32.xlu0 %v1331
    %v1333 = vpop.xlane.xlu0 %1332
    %v1334 = vsel %vm114, %v1320, 0.0
    %1335 = vadd.xlane.f32.xlu0 %v1334
    %v1336 = vpop.xlane.xlu0 %1335
    %v1337 = vsel %vm114, %v1321, 0.0
    %1338 = vadd.xlane.f32.xlu0 %v1337
    %v1339 = vpop.xlane.xlu0 %1338
    %v1340 = vmul.f32 %v1324, %v136
    %v1341 = vmul.f32 %v1327, %v136
    %v1342 = vmul.f32 %v1330, %v136
    %v1343 = vmul.f32 %v1333, %v136
    %v1344 = vmul.f32 %v1336, %v136
    %v1345 = vmul.f32 %v1339, %v136
    %v1346 = vadd.f32 %v1340, 1e-06
    %v1347 = vadd.f32 %v1341, 1e-06
    %v1348 = vadd.f32 %v1342, 1e-06
    %v1349 = vadd.f32 %v1343, 1e-06
    %v1350 = vadd.f32 %v1344, 1e-06
    %v1351 = vadd.f32 %v1345, 1e-06
    %v1352 = vrsqrt.pop %v1346
    %v1353 = vmul.f32 %v1352, %v1346
    %v1354 = vmul.f32 %v1353, %v1352
    %v1355 = vmul.f32 0.5, %v1354
    %v1356 = vsub.f32 1.5, %v1355
    %v1357 = vmul.f32 %v1352, %v1356
    %vm1358 = vweird.f32 %v1346
    %vm1359 = vweird.f32 %v1352
    %vm1360 = vmor %vm1358, %vm1359
    %v1361 = vsel %vm1360, %v1352, %v1357
    %v1362 = vrsqrt.pop %v1347
    %v1363 = vmul.f32 %v1362, %v1347
    %v1364 = vmul.f32 %v1363, %v1362
    %v1365 = vmul.f32 0.5, %v1364
    %v1366 = vsub.f32 1.5, %v1365
    %v1367 = vmul.f32 %v1362, %v1366
    %vm1368 = vweird.f32 %v1347
    %vm1369 = vweird.f32 %v1362
    %vm1370 = vmor %vm1368, %vm1369
    %v1371 = vsel %vm1370, %v1362, %v1367
    %v1372 = vrsqrt.pop %v1348
    %v1373 = vmul.f32 %v1372, %v1348
    %v1374 = vmul.f32 %v1373, %v1372
    %v1375 = vmul.f32 0.5, %v1374
    %v1376 = vsub.f32 1.5, %v1375
    %v1377 = vmul.f32 %v1372, %v1376
    %vm1378 = vweird.f32 %v1348
    %vm1379 = vweird.f32 %v1372
    %vm1380 = vmor %vm1378, %vm1379
    %v1381 = vsel %vm1380, %v1372, %v1377
    %v1382 = vrsqrt.pop %v1349
    %v1383 = vmul.f32 %v1382, %v1349
    %v1384 = vmul.f32 %v1383, %v1382
    %v1385 = vmul.f32 0.5, %v1384
    %v1386 = vsub.f32 1.5, %v1385
    %v1387 = vmul.f32 %v1382, %v1386
    %vm1388 = vweird.f32 %v1349
    %vm1389 = vweird.f32 %v1382
    %vm1390 = vmor %vm1388, %vm1389
    %v1391 = vsel %vm1390, %v1382, %v1387
    %v1392 = vrsqrt.pop %v1350
    %v1393 = vmul.f32 %v1392, %v1350
    %v1394 = vmul.f32 %v1393, %v1392
    %v1395 = vmul.f32 0.5, %v1394
    %v1396 = vsub.f32 1.5, %v1395
    %v1397 = vmul.f32 %v1392, %v1396
    %vm1398 = vweird.f32 %v1350
    %vm1399 = vweird.f32 %v1392
    %vm1400 = vmor %vm1398, %vm1399
    %v1401 = vsel %vm1400, %v1392, %v1397
    %v1402 = vrsqrt.pop %v1351
    %v1403 = vmul.f32 %v1402, %v1351
    %v1404 = vmul.f32 %v1403, %v1402
    %v1405 = vmul.f32 0.5, %v1404
    %v1406 = vsub.f32 1.5, %v1405
    %v1407 = vmul.f32 %v1402, %v1406
    %vm1408 = vweird.f32 %v1351
    %vm1409 = vweird.f32 %v1402
    %vm1410 = vmor %vm1408, %vm1409
    %v1411 = vsel %vm1410, %v1402, %v1407
    %v1412 = vmul.f32 %v1310, %v1361
    %v1413 = vmul.f32 %v1311, %v1371
    %v1414 = vmul.f32 %v1312, %v1381
    %v1415 = vmul.f32 %v1313, %v1391
    %v1416 = vmul.f32 %v1314, %v1401
    %v1417 = vmul.f32 %v1315, %v1411
    %v1418 = vperm.slane %v1285, 0
    %v1419 = vmul.f32 %v1412, %v1418
    %v1420 = vmul.f32 %v1413, %v1418
    %v1421 = vmul.f32 %v1414, %v1418
    %v1422 = vmul.f32 %v1415, %v1418
    %v1423 = vmul.f32 %v1416, %v1418
    %v1424 = vmul.f32 %v1417, %v1418
    %v1425 = vperm.slane %v1285, 1
    %v1426 = vadd.f32 %v1419, %v1425
    %v1427 = vadd.f32 %v1420, %v1425
    %v1428 = vadd.f32 %v1421, %v1425
    %v1429 = vadd.f32 %v1422, %v1425
    %v1430 = vadd.f32 %v1423, %v1425
    %v1431 = vadd.f32 %v1424, %v1425
    %v1432 = vperm.slane %v1285, 4
    %v1434 = vsel %vm114, %v1426, 0
    %v1437 = vsel %vm114, %v1427, 0
    %v1440 = vsel %vm114, %v1428, 0
    %v1443 = vsel %vm114, %v1429, 0
    %v1446 = vsel %vm114, %v1430, 0
    %v1449 = vsel %vm114, %v1431, 0
    %1451 = vmatpush.msra.mxu0 0.0
    %1452 = vmatpush.msra.mxu0 0.0
    %1453 = vmatpush.msra.mxu0 0.0
    %1454 = vmatpush.msra.mxu0 0.0
    %1455 = vmatpush.msra.mxu0 0.0
    %1456 = vmatpush.msra.mxu0 0.0
    %1457 = vmatpush.msra.mxu0 0.0
    %1458 = vmatpush.msra.mxu0 0.0
    %1459 = vmatpush.msra.mxu0 0.0
    %1460 = vmatpush.msra.mxu0 0.0
    %1461 = vmatpush.msra.mxu0 0.0
    %1462 = vmatpush.msra.mxu0 0.0
    %1463 = vmatpush.msra.mxu0 %v1260
    %1464 = vmatpush.msra.mxu0 %v1259
    %1465 = vmatpush.msra.mxu0 %v1258
    %1466 = vmatpush.msra.mxu0 %v1257
    %1467 = vmatmul.f32.gmra.mxu0 %v1434
    %v1468 = vpop.f32.mrf.mxu0
    %v1469 = vadd.f32 %v1432, %v1468
    %1470 = vmatmul.f32.gmra.mxu0 %v1437
    %v1471 = vpop.f32.mrf.mxu0
    %v1472 = vadd.f32 %v1432, %v1471
    %1473 = vmatmul.f32.gmra.mxu0 %v1440
    %v1474 = vpop.f32.mrf.mxu0
    %v1475 = vadd.f32 %v1432, %v1474
    %1476 = vmatmul.f32.gmra.mxu0 %v1443
    %v1477 = vpop.f32.mrf.mxu0
    %v1478 = vadd.f32 %v1432, %v1477
    %1479 = vmatmul.f32.gmra.mxu0 %v1446
    %v1480 = vpop.f32.mrf.mxu0
    %v1481 = vadd.f32 %v1432, %v1480
    %1482 = vmatmul.f32.gmra.mxu0 %v1449
    %v1483 = vpop.f32.mrf.mxu0
    %v1484 = vadd.f32 %v1432, %v1483
    %1485 = vdwg.mxu0
    %1489 = vrot.lane.b32.xlu0 %v1469, 96
    %v1490 = vpop.permute.xlu0 %1489
    %1491 = vrot.lane.b32.xlu0 %v1472, 96
    %v1492 = vpop.permute.xlu0 %1491
    %1493 = vrot.lane.b32.xlu0 %v1475, 96
    %v1494 = vpop.permute.xlu0 %1493
    %v1495 = vsel %vm304, %v1469, 0
    %v1497 = vsel %vm304, %v1472, 0
    %v1499 = vsel %vm304, %v1475, 0
    %v1501 = vsel %vm304, %v1490, 0
    %v1503 = vsel %vm304, %v1492, 0
    %v1505 = vsel %vm304, %v1494, 0
    %1507 = vmatpush.xpose.msra.mxu0 0.0
    %1508 = vmatpush.xpose.msra.mxu0 0.0
    %1509 = vmatpush.xpose.msra.mxu0 0.0
    %1510 = vmatpush.xpose.msra.mxu0 0.0
    %1511 = vmatpush.xpose.msra.mxu0 0.0
    %1512 = vmatpush.xpose.msra.mxu0 0.0
    %1513 = vmatpush.xpose.msra.mxu0 0.0
    %1514 = vmatpush.xpose.msra.mxu0 0.0
    %1515 = vmatpush.xpose.msra.mxu0 0.0
    %1516 = vmatpush.xpose.msra.mxu0 0.0
    %1517 = vmatpush.xpose.msra.mxu0 0.0
    %1518 = vmatpush.xpose.msra.mxu0 0.0
    %1519 = vmatpush.xpose.msra.mxu0 0.0
    %1520 = vmatpush.xpose.msra.mxu0 %v1505
    %1521 = vmatpush.xpose.msra.mxu0 %v1503
    %1522 = vmatpush.xpose.msra.mxu0 %v1501
    %1523 = vmatmul.f32.gmra.mxu0 %v1495
    %v1524 = vpop.f32.mrf.mxu0
    %v1525 = vadd.f32 0.0, %v1524
    %1526 = vmatmul.f32.gmra.mxu0 %v1497
    %v1527 = vpop.f32.mrf.mxu0
    %v1528 = vadd.f32 0.0, %v1527
    %1529 = vmatmul.f32.gmra.mxu0 %v1499
    %v1530 = vpop.f32.mrf.mxu0
    %v1531 = vadd.f32 0.0, %v1530
    %1532 = vdwg.mxu0
    %v1533 = vmul.f32 %v1525, 0.25
    %v1534 = vmul.f32 %v1528, 0.25
    %v1535 = vmul.f32 %v1531, 0.25
    %v1536 = vadd.f32 %v1533, %v84
    %v1537 = vadd.f32 %v1534, %v84
    %v1538 = vadd.f32 %v1535, %v84
    %v1539 = vsel %vm349, %v1536, -inf
    %1540 = vmax.xlane.f32.xlu0 %v1539
    %v1541 = vpop.xlane.xlu0 %1540
    %v1542 = vsel %vm349, %v1537, -inf
    %1543 = vmax.xlane.f32.xlu0 %v1542
    %v1544 = vpop.xlane.xlu0 %1543
    %v1545 = vsel %vm349, %v1538, -inf
    %1546 = vmax.xlane.f32.xlu0 %v1545
    %v1547 = vpop.xlane.xlu0 %1546
    %v1548 = vsub.f32 %v1536, %v1541
    %v1549 = vsub.f32 %v1537, %v1544
    %v1550 = vsub.f32 %v1538, %v1547
    %v1551 = vmul.f32 %v1548, 1.442695
    %v1552 = vpow.pop %v1551
    %v1553 = vmul.f32 %v1549, 1.442695
    %v1554 = vpow.pop %v1553
    %v1555 = vmul.f32 %v1550, 1.442695
    %v1556 = vpow.pop %v1555
    %v1557 = vsel %vm349, %v1552, 0.0
    %1558 = vadd.xlane.f32.xlu0 %v1557
    %v1559 = vpop.xlane.xlu0 %1558
    %v1560 = vsel %vm349, %v1554, 0.0
    %1561 = vadd.xlane.f32.xlu0 %v1560
    %v1562 = vpop.xlane.xlu0 %1561
    %v1563 = vsel %vm349, %v1556, 0.0
    %1564 = vadd.xlane.f32.xlu0 %v1563
    %v1565 = vpop.xlane.xlu0 %1564
    %v1566 = vrcp.pop %v1559
    %v1567 = vrcp.pop %v1562
    %v1568 = vrcp.pop %v1565
    %v1569 = vmul.f32 %v1559, %v1566
    %v1570 = vmul.f32 %v1562, %v1567
    %v1571 = vmul.f32 %v1565, %v1568
    %v1572 = vsub.f32 2.0, %v1569
    %v1573 = vsub.f32 2.0, %v1570
    %v1574 = vsub.f32 2.0, %v1571
    %v1575 = vmul.f32 %v1566, %v1572
    %v1576 = vmul.f32 %v1567, %v1573
    %v1577 = vmul.f32 %v1568, %v1574
    %1578 = vrot.lane.b32.xlu0 %v1469, 64
    %v1579 = vpop.permute.xlu0 %1578
    %1580 = vrot.lane.b32.xlu0 %v1472, 64
    %v1581 = vpop.permute.xlu0 %1580
    %1582 = vrot.lane.b32.xlu0 %v1475, 64
    %v1583 = vpop.permute.xlu0 %1582
    %v1588 = vsel %vm349, %v1552, 0
    %v1591 = vsel %vm349, %v1554, 0
    %v1594 = vsel %vm349, %v1556, 0
    %1596 = vmatpush.msra.mxu0 0.0
    %1597 = vmatpush.msra.mxu0 0.0
    %1598 = vmatpush.msra.mxu0 0.0
    %1599 = vmatpush.msra.mxu0 0.0
    %1600 = vmatpush.msra.mxu0 0.0
    %1601 = vmatpush.msra.mxu0 0.0
    %1602 = vmatpush.msra.mxu0 0.0
    %1603 = vmatpush.msra.mxu0 0.0
    %1604 = vmatpush.msra.mxu0 0.0
    %1605 = vmatpush.msra.mxu0 0.0
    %1606 = vmatpush.msra.mxu0 0.0
    %1607 = vmatpush.msra.mxu0 0.0
    %1608 = vmatpush.msra.mxu0 0.0
    %1609 = vmatpush.msra.mxu0 %v1583
    %1610 = vmatpush.msra.mxu0 %v1581
    %1611 = vmatpush.msra.mxu0 %v1579
    %1612 = vmatmul.f32.gmra.mxu0 %v1588
    %v1613 = vpop.f32.mrf.mxu0
    %v1614 = vadd.f32 0.0, %v1613
    %1615 = vmatmul.f32.gmra.mxu0 %v1591
    %v1616 = vpop.f32.mrf.mxu0
    %v1617 = vadd.f32 0.0, %v1616
    %1618 = vmatmul.f32.gmra.mxu0 %v1594
    %v1619 = vpop.f32.mrf.mxu0
    %v1620 = vadd.f32 0.0, %v1619
    %1621 = vdwg.mxu0
    %v1622 = vmul.f32 %v1614, %v1575
    %v1623 = vmul.f32 %v1617, %v1576
    %v1624 = vmul.f32 %v1620, %v1577
    %1625 = vrot.lane.b32.xlu0 %v1469, 112
    %v1626 = vpop.permute.xlu0 %1625
    %1627 = vrot.lane.b32.xlu0 %v1472, 112
    %v1628 = vpop.permute.xlu0 %1627
    %1629 = vrot.lane.b32.xlu0 %v1475, 112
    %v1630 = vpop.permute.xlu0 %1629
    %1631 = vrot.lane.b32.xlu0 %v1469, 80
    %v1632 = vpop.permute.xlu0 %1631
    %1633 = vrot.lane.b32.xlu0 %v1472, 80
    %v1634 = vpop.permute.xlu0 %1633
    %1635 = vrot.lane.b32.xlu0 %v1475, 80
    %v1636 = vpop.permute.xlu0 %1635
    %v1637 = vsel %vm304, %v1626, 0
    %v1639 = vsel %vm304, %v1628, 0
    %v1641 = vsel %vm304, %v1630, 0
    %v1643 = vsel %vm304, %v1632, 0
    %v1645 = vsel %vm304, %v1634, 0
    %v1647 = vsel %vm304, %v1636, 0
    %1649 = vmatpush.xpose.msra.mxu0 0.0
    %1650 = vmatpush.xpose.msra.mxu0 0.0
    %1651 = vmatpush.xpose.msra.mxu0 0.0
    %1652 = vmatpush.xpose.msra.mxu0 0.0
    %1653 = vmatpush.xpose.msra.mxu0 0.0
    %1654 = vmatpush.xpose.msra.mxu0 0.0
    %1655 = vmatpush.xpose.msra.mxu0 0.0
    %1656 = vmatpush.xpose.msra.mxu0 0.0
    %1657 = vmatpush.xpose.msra.mxu0 0.0
    %1658 = vmatpush.xpose.msra.mxu0 0.0
    %1659 = vmatpush.xpose.msra.mxu0 0.0
    %1660 = vmatpush.xpose.msra.mxu0 0.0
    %1661 = vmatpush.xpose.msra.mxu0 0.0
    %1662 = vmatpush.xpose.msra.mxu0 %v1647
    %1663 = vmatpush.xpose.msra.mxu0 %v1645
    %1664 = vmatpush.xpose.msra.mxu0 %v1643
    %1665 = vmatmul.f32.gmra.mxu0 %v1637
    %v1666 = vpop.f32.mrf.mxu0
    %v1667 = vadd.f32 0.0, %v1666
    %1668 = vmatmul.f32.gmra.mxu0 %v1639
    %v1669 = vpop.f32.mrf.mxu0
    %v1670 = vadd.f32 0.0, %v1669
    %1671 = vmatmul.f32.gmra.mxu0 %v1641
    %v1672 = vpop.f32.mrf.mxu0
    %v1673 = vadd.f32 0.0, %v1672
    %1674 = vdwg.mxu0
    %v1675 = vmul.f32 %v1667, 0.25
    %v1676 = vmul.f32 %v1670, 0.25
    %v1677 = vmul.f32 %v1673, 0.25
    %v1678 = vadd.f32 %v1675, %v84
    %v1679 = vadd.f32 %v1676, %v84
    %v1680 = vadd.f32 %v1677, %v84
    %v1681 = vsel %vm349, %v1678, -inf
    %1682 = vmax.xlane.f32.xlu0 %v1681
    %v1683 = vpop.xlane.xlu0 %1682
    %v1684 = vsel %vm349, %v1679, -inf
    %1685 = vmax.xlane.f32.xlu0 %v1684
    %v1686 = vpop.xlane.xlu0 %1685
    %v1687 = vsel %vm349, %v1680, -inf
    %1688 = vmax.xlane.f32.xlu0 %v1687
    %v1689 = vpop.xlane.xlu0 %1688
    %v1690 = vsub.f32 %v1678, %v1683
    %v1691 = vsub.f32 %v1679, %v1686
    %v1692 = vsub.f32 %v1680, %v1689
    %v1693 = vmul.f32 %v1690, 1.442695
    %v1694 = vpow.pop %v1693
    %v1695 = vmul.f32 %v1691, 1.442695
    %v1696 = vpow.pop %v1695
    %v1697 = vmul.f32 %v1692, 1.442695
    %v1698 = vpow.pop %v1697
    %v1699 = vsel %vm349, %v1694, 0.0
    %1700 = vadd.xlane.f32.xlu0 %v1699
    %v1701 = vpop.xlane.xlu0 %1700
    %v1702 = vsel %vm349, %v1696, 0.0
    %1703 = vadd.xlane.f32.xlu0 %v1702
    %v1704 = vpop.xlane.xlu0 %1703
    %v1705 = vsel %vm349, %v1698, 0.0
    %1706 = vadd.xlane.f32.xlu0 %v1705
    %v1707 = vpop.xlane.xlu0 %1706
    %v1708 = vrcp.pop %v1701
    %v1709 = vrcp.pop %v1704
    %v1710 = vrcp.pop %v1707
    %v1711 = vmul.f32 %v1701, %v1708
    %v1712 = vmul.f32 %v1704, %v1709
    %v1713 = vmul.f32 %v1707, %v1710
    %v1714 = vsub.f32 2.0, %v1711
    %v1715 = vsub.f32 2.0, %v1712
    %v1716 = vsub.f32 2.0, %v1713
    %v1717 = vmul.f32 %v1708, %v1714
    %v1718 = vmul.f32 %v1709, %v1715
    %v1719 = vmul.f32 %v1710, %v1716
    %1720 = vrot.lane.b32.xlu0 %v1469, 48
    %v1721 = vpop.permute.xlu0 %1720
    %1722 = vrot.lane.b32.xlu0 %v1472, 48
    %v1723 = vpop.permute.xlu0 %1722
    %1724 = vrot.lane.b32.xlu0 %v1475, 48
    %v1725 = vpop.permute.xlu0 %1724
    %v1730 = vsel %vm349, %v1694, 0
    %v1733 = vsel %vm349, %v1696, 0
    %v1736 = vsel %vm349, %v1698, 0
    %1738 = vmatpush.msra.mxu0 0.0
    %1739 = vmatpush.msra.mxu0 0.0
    %1740 = vmatpush.msra.mxu0 0.0
    %1741 = vmatpush.msra.mxu0 0.0
    %1742 = vmatpush.msra.mxu0 0.0
    %1743 = vmatpush.msra.mxu0 0.0
    %1744 = vmatpush.msra.mxu0 0.0
    %1745 = vmatpush.msra.mxu0 0.0
    %1746 = vmatpush.msra.mxu0 0.0
    %1747 = vmatpush.msra.mxu0 0.0
    %1748 = vmatpush.msra.mxu0 0.0
    %1749 = vmatpush.msra.mxu0 0.0
    %1750 = vmatpush.msra.mxu0 0.0
    %1751 = vmatpush.msra.mxu0 %v1725
    %1752 = vmatpush.msra.mxu0 %v1723
    %1753 = vmatpush.msra.mxu0 %v1721
    %1754 = vmatmul.f32.gmra.mxu0 %v1730
    %v1755 = vpop.f32.mrf.mxu0
    %v1756 = vadd.f32 0.0, %v1755
    %1757 = vmatmul.f32.gmra.mxu0 %v1733
    %v1758 = vpop.f32.mrf.mxu0
    %v1759 = vadd.f32 0.0, %v1758
    %1760 = vmatmul.f32.gmra.mxu0 %v1736
    %v1761 = vpop.f32.mrf.mxu0
    %v1762 = vadd.f32 0.0, %v1761
    %1763 = vdwg.mxu0
    %v1764 = vmul.f32 %v1756, %v1717
    %v1765 = vmul.f32 %v1759, %v1718
    %v1766 = vmul.f32 %v1762, %v1719
    %1770 = vrot.lane.b32.xlu0 %v1764, 16
    %v1771 = vpop.permute.xlu0 %1770
    %1772 = vrot.lane.b32.xlu0 %v1765, 16
    %v1773 = vpop.permute.xlu0 %1772
    %1774 = vrot.lane.b32.xlu0 %v1766, 16
    %v1775 = vpop.permute.xlu0 %1774
    %v1779 = vsel %vm304, %v1622, %v1771
    %v1780 = vsel %vm304, %v1623, %v1773
    %v1781 = vsel %vm304, %v1624, %v1775
    %1785 = vrot.lane.b32.xlu0 %v1478, 96
    %v1786 = vpop.permute.xlu0 %1785
    %1787 = vrot.lane.b32.xlu0 %v1481, 96
    %v1788 = vpop.permute.xlu0 %1787
    %1789 = vrot.lane.b32.xlu0 %v1484, 96
    %v1790 = vpop.permute.xlu0 %1789
    %v1791 = vsel %vm304, %v1478, 0
    %v1793 = vsel %vm304, %v1481, 0
    %v1795 = vsel %vm304, %v1484, 0
    %v1797 = vsel %vm304, %v1786, 0
    %v1799 = vsel %vm304, %v1788, 0
    %v1801 = vsel %vm304, %v1790, 0
    %1803 = vmatpush.xpose.msra.mxu0 0.0
    %1804 = vmatpush.xpose.msra.mxu0 0.0
    %1805 = vmatpush.xpose.msra.mxu0 0.0
    %1806 = vmatpush.xpose.msra.mxu0 0.0
    %1807 = vmatpush.xpose.msra.mxu0 0.0
    %1808 = vmatpush.xpose.msra.mxu0 0.0
    %1809 = vmatpush.xpose.msra.mxu0 0.0
    %1810 = vmatpush.xpose.msra.mxu0 0.0
    %1811 = vmatpush.xpose.msra.mxu0 0.0
    %1812 = vmatpush.xpose.msra.mxu0 0.0
    %1813 = vmatpush.xpose.msra.mxu0 0.0
    %1814 = vmatpush.xpose.msra.mxu0 0.0
    %1815 = vmatpush.xpose.msra.mxu0 0.0
    %1816 = vmatpush.xpose.msra.mxu0 %v1801
    %1817 = vmatpush.xpose.msra.mxu0 %v1799
    %1818 = vmatpush.xpose.msra.mxu0 %v1797
    %1819 = vmatmul.f32.gmra.mxu0 %v1791
    %v1820 = vpop.f32.mrf.mxu0
    %v1821 = vadd.f32 0.0, %v1820
    %1822 = vmatmul.f32.gmra.mxu0 %v1793
    %v1823 = vpop.f32.mrf.mxu0
    %v1824 = vadd.f32 0.0, %v1823
    %1825 = vmatmul.f32.gmra.mxu0 %v1795
    %v1826 = vpop.f32.mrf.mxu0
    %v1827 = vadd.f32 0.0, %v1826
    %1828 = vdwg.mxu0
    %v1829 = vmul.f32 %v1821, 0.25
    %v1830 = vmul.f32 %v1824, 0.25
    %v1831 = vmul.f32 %v1827, 0.25
    %v1832 = vadd.f32 %v1829, %v84
    %v1833 = vadd.f32 %v1830, %v84
    %v1834 = vadd.f32 %v1831, %v84
    %v1835 = vsel %vm349, %v1832, -inf
    %1836 = vmax.xlane.f32.xlu0 %v1835
    %v1837 = vpop.xlane.xlu0 %1836
    %v1838 = vsel %vm349, %v1833, -inf
    %1839 = vmax.xlane.f32.xlu0 %v1838
    %v1840 = vpop.xlane.xlu0 %1839
    %v1841 = vsel %vm349, %v1834, -inf
    %1842 = vmax.xlane.f32.xlu0 %v1841
    %v1843 = vpop.xlane.xlu0 %1842
    %v1844 = vsub.f32 %v1832, %v1837
    %v1845 = vsub.f32 %v1833, %v1840
    %v1846 = vsub.f32 %v1834, %v1843
    %v1847 = vmul.f32 %v1844, 1.442695
    %v1848 = vpow.pop %v1847
    %v1849 = vmul.f32 %v1845, 1.442695
    %v1850 = vpow.pop %v1849
    %v1851 = vmul.f32 %v1846, 1.442695
    %v1852 = vpow.pop %v1851
    %v1853 = vsel %vm349, %v1848, 0.0
    %1854 = vadd.xlane.f32.xlu0 %v1853
    %v1855 = vpop.xlane.xlu0 %1854
    %v1856 = vsel %vm349, %v1850, 0.0
    %1857 = vadd.xlane.f32.xlu0 %v1856
    %v1858 = vpop.xlane.xlu0 %1857
    %v1859 = vsel %vm349, %v1852, 0.0
    %1860 = vadd.xlane.f32.xlu0 %v1859
    %v1861 = vpop.xlane.xlu0 %1860
    %v1862 = vrcp.pop %v1855
    %v1863 = vrcp.pop %v1858
    %v1864 = vrcp.pop %v1861
    %v1865 = vmul.f32 %v1855, %v1862
    %v1866 = vmul.f32 %v1858, %v1863
    %v1867 = vmul.f32 %v1861, %v1864
    %v1868 = vsub.f32 2.0, %v1865
    %v1869 = vsub.f32 2.0, %v1866
    %v1870 = vsub.f32 2.0, %v1867
    %v1871 = vmul.f32 %v1862, %v1868
    %v1872 = vmul.f32 %v1863, %v1869
    %v1873 = vmul.f32 %v1864, %v1870
    %1874 = vrot.lane.b32.xlu0 %v1478, 64
    %v1875 = vpop.permute.xlu0 %1874
    %1876 = vrot.lane.b32.xlu0 %v1481, 64
    %v1877 = vpop.permute.xlu0 %1876
    %1878 = vrot.lane.b32.xlu0 %v1484, 64
    %v1879 = vpop.permute.xlu0 %1878
    %v1884 = vsel %vm349, %v1848, 0
    %v1887 = vsel %vm349, %v1850, 0
    %v1890 = vsel %vm349, %v1852, 0
    %1892 = vmatpush.msra.mxu0 0.0
    %1893 = vmatpush.msra.mxu0 0.0
    %1894 = vmatpush.msra.mxu0 0.0
    %1895 = vmatpush.msra.mxu0 0.0
    %1896 = vmatpush.msra.mxu0 0.0
    %1897 = vmatpush.msra.mxu0 0.0
    %1898 = vmatpush.msra.mxu0 0.0
    %1899 = vmatpush.msra.mxu0 0.0
    %1900 = vmatpush.msra.mxu0 0.0
    %1901 = vmatpush.msra.mxu0 0.0
    %1902 = vmatpush.msra.mxu0 0.0
    %1903 = vmatpush.msra.mxu0 0.0
    %1904 = vmatpush.msra.mxu0 0.0
    %1905 = vmatpush.msra.mxu0 %v1879
    %1906 = vmatpush.msra.mxu0 %v1877
    %1907 = vmatpush.msra.mxu0 %v1875
    %1908 = vmatmul.f32.gmra.mxu0 %v1884
    %v1909 = vpop.f32.mrf.mxu0
    %v1910 = vadd.f32 0.0, %v1909
    %1911 = vmatmul.f32.gmra.mxu0 %v1887
    %v1912 = vpop.f32.mrf.mxu0
    %v1913 = vadd.f32 0.0, %v1912
    %1914 = vmatmul.f32.gmra.mxu0 %v1890
    %v1915 = vpop.f32.mrf.mxu0
    %v1916 = vadd.f32 0.0, %v1915
    %1917 = vdwg.mxu0
    %v1918 = vmul.f32 %v1910, %v1871
    %v1919 = vmul.f32 %v1913, %v1872
    %v1920 = vmul.f32 %v1916, %v1873
    %1921 = vrot.lane.b32.xlu0 %v1478, 112
    %v1922 = vpop.permute.xlu0 %1921
    %1923 = vrot.lane.b32.xlu0 %v1481, 112
    %v1924 = vpop.permute.xlu0 %1923
    %1925 = vrot.lane.b32.xlu0 %v1484, 112
    %v1926 = vpop.permute.xlu0 %1925
    %1927 = vrot.lane.b32.xlu0 %v1478, 80
    %v1928 = vpop.permute.xlu0 %1927
    %1929 = vrot.lane.b32.xlu0 %v1481, 80
    %v1930 = vpop.permute.xlu0 %1929
    %1931 = vrot.lane.b32.xlu0 %v1484, 80
    %v1932 = vpop.permute.xlu0 %1931
    %v1933 = vsel %vm304, %v1922, 0
    %v1935 = vsel %vm304, %v1924, 0
    %v1937 = vsel %vm304, %v1926, 0
    %v1939 = vsel %vm304, %v1928, 0
    %v1941 = vsel %vm304, %v1930, 0
    %v1943 = vsel %vm304, %v1932, 0
    %1945 = vmatpush.xpose.msra.mxu0 0.0
    %1946 = vmatpush.xpose.msra.mxu0 0.0
    %1947 = vmatpush.xpose.msra.mxu0 0.0
    %1948 = vmatpush.xpose.msra.mxu0 0.0
    %1949 = vmatpush.xpose.msra.mxu0 0.0
    %1950 = vmatpush.xpose.msra.mxu0 0.0
    %1951 = vmatpush.xpose.msra.mxu0 0.0
    %1952 = vmatpush.xpose.msra.mxu0 0.0
    %1953 = vmatpush.xpose.msra.mxu0 0.0
    %1954 = vmatpush.xpose.msra.mxu0 0.0
    %1955 = vmatpush.xpose.msra.mxu0 0.0
    %1956 = vmatpush.xpose.msra.mxu0 0.0
    %1957 = vmatpush.xpose.msra.mxu0 0.0
    %1958 = vmatpush.xpose.msra.mxu0 %v1943
    %1959 = vmatpush.xpose.msra.mxu0 %v1941
    %1960 = vmatpush.xpose.msra.mxu0 %v1939
    %1961 = vmatmul.f32.gmra.mxu0 %v1933
    %v1962 = vpop.f32.mrf.mxu0
    %v1963 = vadd.f32 0.0, %v1962
    %1964 = vmatmul.f32.gmra.mxu0 %v1935
    %v1965 = vpop.f32.mrf.mxu0
    %v1966 = vadd.f32 0.0, %v1965
    %1967 = vmatmul.f32.gmra.mxu0 %v1937
    %v1968 = vpop.f32.mrf.mxu0
    %v1969 = vadd.f32 0.0, %v1968
    %1970 = vdwg.mxu0
    %v1971 = vmul.f32 %v1963, 0.25
    %v1972 = vmul.f32 %v1966, 0.25
    %v1973 = vmul.f32 %v1969, 0.25
    %v1974 = vadd.f32 %v1971, %v84
    %v1975 = vadd.f32 %v1972, %v84
    %v1976 = vadd.f32 %v1973, %v84
    %v1977 = vsel %vm349, %v1974, -inf
    %1978 = vmax.xlane.f32.xlu0 %v1977
    %v1979 = vpop.xlane.xlu0 %1978
    %v1980 = vsel %vm349, %v1975, -inf
    %1981 = vmax.xlane.f32.xlu0 %v1980
    %v1982 = vpop.xlane.xlu0 %1981
    %v1983 = vsel %vm349, %v1976, -inf
    %1984 = vmax.xlane.f32.xlu0 %v1983
    %v1985 = vpop.xlane.xlu0 %1984
    %v1986 = vsub.f32 %v1974, %v1979
    %v1987 = vsub.f32 %v1975, %v1982
    %v1988 = vsub.f32 %v1976, %v1985
    %v1989 = vmul.f32 %v1986, 1.442695
    %v1990 = vpow.pop %v1989
    %v1991 = vmul.f32 %v1987, 1.442695
    %v1992 = vpow.pop %v1991
    %v1993 = vmul.f32 %v1988, 1.442695
    %v1994 = vpow.pop %v1993
    %v1995 = vsel %vm349, %v1990, 0.0
    %1996 = vadd.xlane.f32.xlu0 %v1995
    %v1997 = vpop.xlane.xlu0 %1996
    %v1998 = vsel %vm349, %v1992, 0.0
    %1999 = vadd.xlane.f32.xlu0 %v1998
    %v2000 = vpop.xlane.xlu0 %1999
    %v2001 = vsel %vm349, %v1994, 0.0
    %2002 = vadd.xlane.f32.xlu0 %v2001
    %v2003 = vpop.xlane.xlu0 %2002
    %v2004 = vrcp.pop %v1997
    %v2005 = vrcp.pop %v2000
    %v2006 = vrcp.pop %v2003
    %v2007 = vmul.f32 %v1997, %v2004
    %v2008 = vmul.f32 %v2000, %v2005
    %v2009 = vmul.f32 %v2003, %v2006
    %v2010 = vsub.f32 2.0, %v2007
    %v2011 = vsub.f32 2.0, %v2008
    %v2012 = vsub.f32 2.0, %v2009
    %v2013 = vmul.f32 %v2004, %v2010
    %v2014 = vmul.f32 %v2005, %v2011
    %v2015 = vmul.f32 %v2006, %v2012
    %2016 = vrot.lane.b32.xlu0 %v1478, 48
    %v2017 = vpop.permute.xlu0 %2016
    %2018 = vrot.lane.b32.xlu0 %v1481, 48
    %v2019 = vpop.permute.xlu0 %2018
    %2020 = vrot.lane.b32.xlu0 %v1484, 48
    %v2021 = vpop.permute.xlu0 %2020
    %v2026 = vsel %vm349, %v1990, 0
    %v2029 = vsel %vm349, %v1992, 0
    %v2032 = vsel %vm349, %v1994, 0
    %2034 = vmatpush.msra.mxu0 0.0
    %2035 = vmatpush.msra.mxu0 0.0
    %2036 = vmatpush.msra.mxu0 0.0
    %2037 = vmatpush.msra.mxu0 0.0
    %2038 = vmatpush.msra.mxu0 0.0
    %2039 = vmatpush.msra.mxu0 0.0
    %2040 = vmatpush.msra.mxu0 0.0
    %2041 = vmatpush.msra.mxu0 0.0
    %2042 = vmatpush.msra.mxu0 0.0
    %2043 = vmatpush.msra.mxu0 0.0
    %2044 = vmatpush.msra.mxu0 0.0
    %2045 = vmatpush.msra.mxu0 0.0
    %2046 = vmatpush.msra.mxu0 0.0
    %2047 = vmatpush.msra.mxu0 %v2021
    %2048 = vmatpush.msra.mxu0 %v2019
    %2049 = vmatpush.msra.mxu0 %v2017
    %2050 = vmatmul.f32.gmra.mxu0 %v2026
    %v2051 = vpop.f32.mrf.mxu0
    %v2052 = vadd.f32 0.0, %v2051
    %2053 = vmatmul.f32.gmra.mxu0 %v2029
    %v2054 = vpop.f32.mrf.mxu0
    %v2055 = vadd.f32 0.0, %v2054
    %2056 = vmatmul.f32.gmra.mxu0 %v2032
    %v2057 = vpop.f32.mrf.mxu0
    %v2058 = vadd.f32 0.0, %v2057
    %2059 = vdwg.mxu0
    %v2060 = vmul.f32 %v2052, %v2013
    %v2061 = vmul.f32 %v2055, %v2014
    %v2062 = vmul.f32 %v2058, %v2015
    %2066 = vrot.lane.b32.xlu0 %v2060, 16
    %v2067 = vpop.permute.xlu0 %2066
    %2068 = vrot.lane.b32.xlu0 %v2061, 16
    %v2069 = vpop.permute.xlu0 %2068
    %2070 = vrot.lane.b32.xlu0 %v2062, 16
    %v2071 = vpop.permute.xlu0 %2070
    %v2075 = vsel %vm304, %v1918, %v2067
    %v2076 = vsel %vm304, %v1919, %v2069
    %v2077 = vsel %vm304, %v1920, %v2071
    %v2079 = vsel %vm114, %v1779, 0
    %v2082 = vsel %vm114, %v1780, 0
    %v2085 = vsel %vm114, %v1781, 0
    %v2088 = vsel %vm114, %v2075, 0
    %v2091 = vsel %vm114, %v2076, 0
    %v2094 = vsel %vm114, %v2077, 0
    %2096 = vmatpush.msra.mxu0 0.0
    %2097 = vmatpush.msra.mxu0 0.0
    %2098 = vmatpush.msra.mxu0 0.0
    %2099 = vmatpush.msra.mxu0 0.0
    %2100 = vmatpush.msra.mxu0 0.0
    %2101 = vmatpush.msra.mxu0 0.0
    %2102 = vmatpush.msra.mxu0 0.0
    %2103 = vmatpush.msra.mxu0 0.0
    %2104 = vmatpush.msra.mxu0 0.0
    %2105 = vmatpush.msra.mxu0 0.0
    %2106 = vmatpush.msra.mxu0 0.0
    %2107 = vmatpush.msra.mxu0 0.0
    %2108 = vmatpush.msra.mxu0 %v1264
    %2109 = vmatpush.msra.mxu0 %v1263
    %2110 = vmatpush.msra.mxu0 %v1262
    %2111 = vmatpush.msra.mxu0 %v1261
    %2112 = vmatmul.f32.gmra.mxu0 %v2079
    %v2113 = vpop.f32.mrf.mxu0
    %v2114 = vadd.f32 0.0, %v2113
    %2115 = vmatmul.f32.gmra.mxu0 %v2082
    %v2116 = vpop.f32.mrf.mxu0
    %v2117 = vadd.f32 0.0, %v2116
    %2118 = vmatmul.f32.gmra.mxu0 %v2085
    %v2119 = vpop.f32.mrf.mxu0
    %v2120 = vadd.f32 0.0, %v2119
    %2121 = vmatmul.f32.gmra.mxu0 %v2088
    %v2122 = vpop.f32.mrf.mxu0
    %v2123 = vadd.f32 0.0, %v2122
    %2124 = vmatmul.f32.gmra.mxu0 %v2091
    %v2125 = vpop.f32.mrf.mxu0
    %v2126 = vadd.f32 0.0, %v2125
    %2127 = vmatmul.f32.gmra.mxu0 %v2094
    %v2128 = vpop.f32.mrf.mxu0
    %v2129 = vadd.f32 0.0, %v2128
    %2130 = vdwg.mxu0
    %v2131 = vadd.f32 %v1251, %v2114
    %v2132 = vadd.f32 %v1252, %v2117
    %v2133 = vadd.f32 %v1253, %v2120
    %v2134 = vadd.f32 %v1254, %v2123
    %v2135 = vadd.f32 %v1255, %v2126
    %v2136 = vadd.f32 %v1256, %v2129
    %v2137 = vperm.slane %v1285, 5
    %v2138 = vadd.f32 %v2131, %v2137
    %v2139 = vadd.f32 %v2132, %v2137
    %v2140 = vadd.f32 %v2133, %v2137
    %v2141 = vadd.f32 %v2134, %v2137
    %v2142 = vadd.f32 %v2135, %v2137
    %v2143 = vadd.f32 %v2136, %v2137
    %v2144 = vsel %vm114, %v2138, 0.0
    %2145 = vadd.xlane.f32.xlu0 %v2144
    %v2146 = vpop.xlane.xlu0 %2145
    %v2147 = vsel %vm114, %v2139, 0.0
    %2148 = vadd.xlane.f32.xlu0 %v2147
    %v2149 = vpop.xlane.xlu0 %2148
    %v2150 = vsel %vm114, %v2140, 0.0
    %2151 = vadd.xlane.f32.xlu0 %v2150
    %v2152 = vpop.xlane.xlu0 %2151
    %v2153 = vsel %vm114, %v2141, 0.0
    %2154 = vadd.xlane.f32.xlu0 %v2153
    %v2155 = vpop.xlane.xlu0 %2154
    %v2156 = vsel %vm114, %v2142, 0.0
    %2157 = vadd.xlane.f32.xlu0 %v2156
    %v2158 = vpop.xlane.xlu0 %2157
    %v2159 = vsel %vm114, %v2143, 0.0
    %2160 = vadd.xlane.f32.xlu0 %v2159
    %v2161 = vpop.xlane.xlu0 %2160
    %v2162 = vmul.f32 %v2146, %v136
    %v2163 = vmul.f32 %v2149, %v136
    %v2164 = vmul.f32 %v2152, %v136
    %v2165 = vmul.f32 %v2155, %v136
    %v2166 = vmul.f32 %v2158, %v136
    %v2167 = vmul.f32 %v2161, %v136
    %v2168 = vsub.f32 %v2138, %v2162
    %v2169 = vsub.f32 %v2139, %v2163
    %v2170 = vsub.f32 %v2140, %v2164
    %v2171 = vsub.f32 %v2141, %v2165
    %v2172 = vsub.f32 %v2142, %v2166
    %v2173 = vsub.f32 %v2143, %v2167
    %v2174 = vmul.f32 %v2168, %v2168
    %v2175 = vmul.f32 %v2169, %v2169
    %v2176 = vmul.f32 %v2170, %v2170
    %v2177 = vmul.f32 %v2171, %v2171
    %v2178 = vmul.f32 %v2172, %v2172
    %v2179 = vmul.f32 %v2173, %v2173
    %v2180 = vsel %vm114, %v2174, 0.0
    %2181 = vadd.xlane.f32.xlu0 %v2180
    %v2182 = vpop.xlane.xlu0 %2181
    %v2183 = vsel %vm114, %v2175, 0.0
    %2184 = vadd.xlane.f32.xlu0 %v2183
    %v2185 = vpop.xlane.xlu0 %2184
    %v2186 = vsel %vm114, %v2176, 0.0
    %2187 = vadd.xlane.f32.xlu0 %v2186
    %v2188 = vpop.xlane.xlu0 %2187
    %v2189 = vsel %vm114, %v2177, 0.0
    %2190 = vadd.xlane.f32.xlu0 %v2189
    %v2191 = vpop.xlane.xlu0 %2190
    %v2192 = vsel %vm114, %v2178, 0.0
    %2193 = vadd.xlane.f32.xlu0 %v2192
    %v2194 = vpop.xlane.xlu0 %2193
    %v2195 = vsel %vm114, %v2179, 0.0
    %2196 = vadd.xlane.f32.xlu0 %v2195
    %v2197 = vpop.xlane.xlu0 %2196
    %v2198 = vmul.f32 %v2182, %v136
    %v2199 = vmul.f32 %v2185, %v136
    %v2200 = vmul.f32 %v2188, %v136
    %v2201 = vmul.f32 %v2191, %v136
    %v2202 = vmul.f32 %v2194, %v136
    %v2203 = vmul.f32 %v2197, %v136
    %v2204 = vadd.f32 %v2198, 1e-06
    %v2205 = vadd.f32 %v2199, 1e-06
    %v2206 = vadd.f32 %v2200, 1e-06
    %v2207 = vadd.f32 %v2201, 1e-06
    %v2208 = vadd.f32 %v2202, 1e-06
    %v2209 = vadd.f32 %v2203, 1e-06
    %v2210 = vrsqrt.pop %v2204
    %v2211 = vmul.f32 %v2210, %v2204
    %v2212 = vmul.f32 %v2211, %v2210
    %v2213 = vmul.f32 0.5, %v2212
    %v2214 = vsub.f32 1.5, %v2213
    %v2215 = vmul.f32 %v2210, %v2214
    %vm2216 = vweird.f32 %v2204
    %vm2217 = vweird.f32 %v2210
    %vm2218 = vmor %vm2216, %vm2217
    %v2219 = vsel %vm2218, %v2210, %v2215
    %v2220 = vrsqrt.pop %v2205
    %v2221 = vmul.f32 %v2220, %v2205
    %v2222 = vmul.f32 %v2221, %v2220
    %v2223 = vmul.f32 0.5, %v2222
    %v2224 = vsub.f32 1.5, %v2223
    %v2225 = vmul.f32 %v2220, %v2224
    %vm2226 = vweird.f32 %v2205
    %vm2227 = vweird.f32 %v2220
    %vm2228 = vmor %vm2226, %vm2227
    %v2229 = vsel %vm2228, %v2220, %v2225
    %v2230 = vrsqrt.pop %v2206
    %v2231 = vmul.f32 %v2230, %v2206
    %v2232 = vmul.f32 %v2231, %v2230
    %v2233 = vmul.f32 0.5, %v2232
    %v2234 = vsub.f32 1.5, %v2233
    %v2235 = vmul.f32 %v2230, %v2234
    %vm2236 = vweird.f32 %v2206
    %vm2237 = vweird.f32 %v2230
    %vm2238 = vmor %vm2236, %vm2237
    %v2239 = vsel %vm2238, %v2230, %v2235
    %v2240 = vrsqrt.pop %v2207
    %v2241 = vmul.f32 %v2240, %v2207
    %v2242 = vmul.f32 %v2241, %v2240
    %v2243 = vmul.f32 0.5, %v2242
    %v2244 = vsub.f32 1.5, %v2243
    %v2245 = vmul.f32 %v2240, %v2244
    %vm2246 = vweird.f32 %v2207
    %vm2247 = vweird.f32 %v2240
    %vm2248 = vmor %vm2246, %vm2247
    %v2249 = vsel %vm2248, %v2240, %v2245
    %v2250 = vrsqrt.pop %v2208
    %v2251 = vmul.f32 %v2250, %v2208
    %v2252 = vmul.f32 %v2251, %v2250
    %v2253 = vmul.f32 0.5, %v2252
    %v2254 = vsub.f32 1.5, %v2253
    %v2255 = vmul.f32 %v2250, %v2254
    %vm2256 = vweird.f32 %v2208
    %vm2257 = vweird.f32 %v2250
    %vm2258 = vmor %vm2256, %vm2257
    %v2259 = vsel %vm2258, %v2250, %v2255
    %v2260 = vrsqrt.pop %v2209
    %v2261 = vmul.f32 %v2260, %v2209
    %v2262 = vmul.f32 %v2261, %v2260
    %v2263 = vmul.f32 0.5, %v2262
    %v2264 = vsub.f32 1.5, %v2263
    %v2265 = vmul.f32 %v2260, %v2264
    %vm2266 = vweird.f32 %v2209
    %vm2267 = vweird.f32 %v2260
    %vm2268 = vmor %vm2266, %vm2267
    %v2269 = vsel %vm2268, %v2260, %v2265
    %v2270 = vmul.f32 %v2168, %v2219
    %v2271 = vmul.f32 %v2169, %v2229
    %v2272 = vmul.f32 %v2170, %v2239
    %v2273 = vmul.f32 %v2171, %v2249
    %v2274 = vmul.f32 %v2172, %v2259
    %v2275 = vmul.f32 %v2173, %v2269
    %v2276 = vperm.slane %v1285, 2
    %v2277 = vmul.f32 %v2270, %v2276
    %v2278 = vmul.f32 %v2271, %v2276
    %v2279 = vmul.f32 %v2272, %v2276
    %v2280 = vmul.f32 %v2273, %v2276
    %v2281 = vmul.f32 %v2274, %v2276
    %v2282 = vmul.f32 %v2275, %v2276
    %v2283 = vperm.slane %v1285, 3
    %v2284 = vadd.f32 %v2277, %v2283
    %v2285 = vadd.f32 %v2278, %v2283
    %v2286 = vadd.f32 %v2279, %v2283
    %v2287 = vadd.f32 %v2280, %v2283
    %v2288 = vadd.f32 %v2281, %v2283
    %v2289 = vadd.f32 %v2282, %v2283
    %v2290 = vperm.slane %v1285, 6
    %v2292 = vsel %vm114, %v2284, 0
    %v2295 = vsel %vm114, %v2285, 0
    %v2298 = vsel %vm114, %v2286, 0
    %v2301 = vsel %vm114, %v2287, 0
    %v2304 = vsel %vm114, %v2288, 0
    %v2307 = vsel %vm114, %v2289, 0
    %2309 = vmatpush.msra.mxu0 0.0
    %2310 = vmatpush.msra.mxu0 0.0
    %2311 = vmatpush.msra.mxu0 0.0
    %2312 = vmatpush.msra.mxu0 0.0
    %2313 = vmatpush.msra.mxu0 0.0
    %2314 = vmatpush.msra.mxu0 0.0
    %2315 = vmatpush.msra.mxu0 0.0
    %2316 = vmatpush.msra.mxu0 0.0
    %2317 = vmatpush.msra.mxu0 0.0
    %2318 = vmatpush.msra.mxu0 0.0
    %2319 = vmatpush.msra.mxu0 0.0
    %2320 = vmatpush.msra.mxu0 0.0
    %2321 = vmatpush.msra.mxu0 %v1268
    %2322 = vmatpush.msra.mxu0 %v1267
    %2323 = vmatpush.msra.mxu0 %v1266
    %2324 = vmatpush.msra.mxu0 %v1265
    %2325 = vmatmul.f32.gmra.mxu0 %v2292
    %v2326 = vpop.f32.mrf.mxu0
    %v2327 = vadd.f32 %v2290, %v2326
    %2328 = vmatmul.f32.gmra.mxu0 %v2295
    %v2329 = vpop.f32.mrf.mxu0
    %v2330 = vadd.f32 %v2290, %v2329
    %2331 = vmatmul.f32.gmra.mxu0 %v2298
    %v2332 = vpop.f32.mrf.mxu0
    %v2333 = vadd.f32 %v2290, %v2332
    %2334 = vmatmul.f32.gmra.mxu0 %v2301
    %v2335 = vpop.f32.mrf.mxu0
    %v2336 = vadd.f32 %v2290, %v2335
    %2337 = vmatmul.f32.gmra.mxu0 %v2304
    %v2338 = vpop.f32.mrf.mxu0
    %v2339 = vadd.f32 %v2290, %v2338
    %2340 = vmatmul.f32.gmra.mxu0 %v2307
    %v2341 = vpop.f32.mrf.mxu0
    %v2342 = vadd.f32 %v2290, %v2341
    %2343 = vdwg.mxu0
    %v2344 = vmul.f32 %v2327, %v2327
    %v2345 = vmul.f32 %v2330, %v2330
    %v2346 = vmul.f32 %v2333, %v2333
    %v2347 = vmul.f32 %v2336, %v2336
    %v2348 = vmul.f32 %v2339, %v2339
    %v2349 = vmul.f32 %v2342, %v2342
    %v2350 = vmul.f32 %v2327, %v2344
    %v2351 = vmul.f32 %v2330, %v2345
    %v2352 = vmul.f32 %v2333, %v2346
    %v2353 = vmul.f32 %v2336, %v2347
    %v2354 = vmul.f32 %v2339, %v2348
    %v2355 = vmul.f32 %v2342, %v2349
    %v2356 = vmul.f32 %v2350, 0.044715
    %v2357 = vmul.f32 %v2351, 0.044715
    %v2358 = vmul.f32 %v2352, 0.044715
    %v2359 = vmul.f32 %v2353, 0.044715
    %v2360 = vmul.f32 %v2354, 0.044715
    %v2361 = vmul.f32 %v2355, 0.044715
    %v2362 = vadd.f32 %v2327, %v2356
    %v2363 = vadd.f32 %v2330, %v2357
    %v2364 = vadd.f32 %v2333, %v2358
    %v2365 = vadd.f32 %v2336, %v2359
    %v2366 = vadd.f32 %v2339, %v2360
    %v2367 = vadd.f32 %v2342, %v2361
    %v2368 = vmul.f32 %v2362, 0.7978846
    %v2369 = vmul.f32 %v2363, 0.7978846
    %v2370 = vmul.f32 %v2364, 0.7978846
    %v2371 = vmul.f32 %v2365, 0.7978846
    %v2372 = vmul.f32 %v2366, 0.7978846
    %v2373 = vmul.f32 %v2367, 0.7978846
    %v2374 = vtanh.pop %v2368
    %v2375 = vtanh.pop %v2369
    %v2376 = vtanh.pop %v2370
    %v2377 = vtanh.pop %v2371
    %v2378 = vtanh.pop %v2372
    %v2379 = vtanh.pop %v2373
    %v2380 = vadd.f32 %v2374, 1.0
    %v2381 = vadd.f32 %v2375, 1.0
    %v2382 = vadd.f32 %v2376, 1.0
    %v2383 = vadd.f32 %v2377, 1.0
    %v2384 = vadd.f32 %v2378, 1.0
    %v2385 = vadd.f32 %v2379, 1.0
    %v2386 = vmul.f32 %v2380, 0.5
    %v2387 = vmul.f32 %v2381, 0.5
    %v2388 = vmul.f32 %v2382, 0.5
    %v2389 = vmul.f32 %v2383, 0.5
    %v2390 = vmul.f32 %v2384, 0.5
    %v2391 = vmul.f32 %v2385, 0.5
    %v2392 = vmul.f32 %v2327, %v2386
    %v2393 = vmul.f32 %v2330, %v2387
    %v2394 = vmul.f32 %v2333, %v2388
    %v2395 = vmul.f32 %v2336, %v2389
    %v2396 = vmul.f32 %v2339, %v2390
    %v2397 = vmul.f32 %v2342, %v2391
    %2398 = vmatpush.msra.mxu0 %v1284
    %2399 = vmatpush.msra.mxu0 %v1283
    %2400 = vmatpush.msra.mxu0 %v1282
    %2401 = vmatpush.msra.mxu0 %v1281
    %2402 = vmatpush.msra.mxu0 %v1280
    %2403 = vmatpush.msra.mxu0 %v1279
    %2404 = vmatpush.msra.mxu0 %v1278
    %2405 = vmatpush.msra.mxu0 %v1277
    %2406 = vmatpush.msra.mxu0 %v1276
    %2407 = vmatpush.msra.mxu0 %v1275
    %2408 = vmatpush.msra.mxu0 %v1274
    %2409 = vmatpush.msra.mxu0 %v1273
    %2410 = vmatpush.msra.mxu0 %v1272
    %2411 = vmatpush.msra.mxu0 %v1271
    %2412 = vmatpush.msra.mxu0 %v1270
    %2413 = vmatpush.msra.mxu0 %v1269
    %2414 = vmatmul.f32.gmra.mxu0 %v2392
    %v2415 = vpop.f32.mrf.mxu0
    %2416 = vmatmul.f32.gmra.mxu0 %v2393
    %v2417 = vpop.f32.mrf.mxu0
    %2418 = vmatmul.f32.gmra.mxu0 %v2394
    %v2419 = vpop.f32.mrf.mxu0
    %v2420 = vadd.f32 0.0, %v2419
    %2421 = vmatmul.f32.gmra.mxu0 %v2395
    %v2422 = vpop.f32.mrf.mxu0
    %2423 = vmatmul.f32.gmra.mxu0 %v2396
    %v2424 = vpop.f32.mrf.mxu0
    %2425 = vmatmul.f32.gmra.mxu0 %v2397
    %v2426 = vpop.f32.mrf.mxu0
    %v2427 = vadd.f32 0.0, %v2426
    %2428 = vdwg.mxu0
    %v2429 = vadd.f32 %v2140, %v2420
    %v2430 = vadd.f32 %v2143, %v2427
    %v2431 = vperm.slane %v1285, 7
    %v2432 = vadd.f32 %v2429, %v2431
    %v2433 = vadd.f32 %v2430, %v2431
    %v2434 = vsel %vm114, %v2432, 0.0
    %2435 = vadd.xlane.f32.xlu0 %v2434
    %v2436 = vpop.xlane.xlu0 %2435
    %v2437 = vsel %vm114, %v2433, 0.0
    %2438 = vadd.xlane.f32.xlu0 %v2437
    %v2439 = vpop.xlane.xlu0 %2438
    %v2440 = vmul.f32 %v2436, %v136
    %v2441 = vmul.f32 %v2439, %v136
    %v2442 = vsub.f32 %v2432, %v2440
    %v2443 = vsub.f32 %v2433, %v2441
    %v2444 = vmul.f32 %v2442, %v2442
    %v2445 = vmul.f32 %v2443, %v2443
    %v2446 = vsel %vm114, %v2444, 0.0
    %2447 = vadd.xlane.f32.xlu0 %v2446
    %v2448 = vpop.xlane.xlu0 %2447
    %v2449 = vsel %vm114, %v2445, 0.0
    %2450 = vadd.xlane.f32.xlu0 %v2449
    %v2451 = vpop.xlane.xlu0 %2450
    %v2452 = vmul.f32 %v2448, %v136
    %v2453 = vmul.f32 %v2451, %v136
    %v2454 = vadd.f32 %v2452, 1e-06
    %v2455 = vadd.f32 %v2453, 1e-06
    %v2456 = vrsqrt.pop %v2454
    %v2457 = vmul.f32 %v2456, %v2454
    %v2458 = vmul.f32 %v2457, %v2456
    %v2459 = vmul.f32 0.5, %v2458
    %v2460 = vsub.f32 1.5, %v2459
    %v2461 = vmul.f32 %v2456, %v2460
    %vm2462 = vweird.f32 %v2454
    %vm2463 = vweird.f32 %v2456
    %vm2464 = vmor %vm2462, %vm2463
    %v2465 = vsel %vm2464, %v2456, %v2461
    %v2466 = vrsqrt.pop %v2455
    %v2467 = vmul.f32 %v2466, %v2455
    %v2468 = vmul.f32 %v2467, %v2466
    %v2469 = vmul.f32 0.5, %v2468
    %v2470 = vsub.f32 1.5, %v2469
    %v2471 = vmul.f32 %v2466, %v2470
    %vm2472 = vweird.f32 %v2455
    %vm2473 = vweird.f32 %v2466
    %vm2474 = vmor %vm2472, %vm2473
    %v2475 = vsel %vm2474, %v2466, %v2471
    %v2476 = vmul.f32 %v2442, %v2465
    %v2477 = vmul.f32 %v2443, %v2475
    %v2478 = vperm.slane %v24, 0
    %v2479 = vmul.f32 %v2476, %v2478
    %v2480 = vmul.f32 %v2477, %v2478
    %v2481 = vperm.slane %v25, 0
    %v2482 = vadd.f32 %v2479, %v2481
    %v2483 = vadd.f32 %v2480, %v2481
    %v2485 = vrot.slane %v2483, 7
    %vm2487 = vcmask 1040384
    %v2488 = vsel %vm2487, %v2482, %v2485
    %v2489 = vsel %vm114, %v2488, 0.0
    %v2490 = vperm.slane %v26, 0
    %v2492 = vsel %vm114, %v2488, 0
    %2494 = vmatpush.msra.mxu0 0.0
    %2495 = vmatpush.msra.mxu0 0.0
    %2496 = vmatpush.msra.mxu0 0.0
    %2497 = vmatpush.msra.mxu0 0.0
    %2498 = vmatpush.msra.mxu0 0.0
    %2499 = vmatpush.msra.mxu0 0.0
    %2500 = vmatpush.msra.mxu0 0.0
    %2501 = vmatpush.msra.mxu0 0.0
    %2502 = vmatpush.msra.mxu0 0.0
    %2503 = vmatpush.msra.mxu0 0.0
    %2504 = vmatpush.msra.mxu0 0.0
    %2505 = vmatpush.msra.mxu0 0.0
    %2506 = vmatpush.msra.mxu0 %v30
    %2507 = vmatpush.msra.mxu0 %v29
    %2508 = vmatpush.msra.mxu0 %v28
    %2509 = vmatpush.msra.mxu0 %v27
    %2510 = vmatmul.f32.gmra.mxu0 %v2492
    %v2511 = vpop.f32.mrf.mxu0
    %v2512 = vadd.f32 %v2490, %v2511
    %2513 = vdwg.mxu0
    %v2515 = vrot.slane %v2489, 1
    %2517 = vst [vmem:[#allocation2] sm:$0x1] %v2489
    %2518 = vst [vmem:[#allocation2 + $0x1] sm:$0x1] %v2515
    %v2520 = vrot.slane %v2512, 1
    %2522 = vst [vmem:[#allocation4] sm:$0x1] %v2512
    %2523 = vst [vmem:[#allocation4 + $0x1] sm:$0x1] %v2520
    // Predicated region
    $region10: #{basenet_forward.1} parent=1 // pred_check
      _
    $region11: #{basenet_forward.1} parent=1 // pred_check_branch
      %2525 = sbr.rel (0) target = $region13
    $region12: #{basenet_forward.1} parent=1 // pred_region
      %2527 = vsyncadd [#allocation3], 0
      %s2528 = sshll.u32 [#allocation2], 4
      %s2529 = int_to_ptr.vmem [resolvable:$true] %s2528
      %s2530 = sshll.u32 %s2, 4
      %s2531 = int_to_ptr.hbm [resolvable:$true] %s2530
      %2536 = dma.vmem_to_hbm [thread:$0]  %s2529, 32, %s2531, [#allocation3], 16, 16, 1
    $region13: #{basenet_forward.1} parent=1 // pred_fallthru
      _
    // Predicated region
    $region14: #{basenet_forward.1} parent=1 // pred_check
      _
    $region15: #{basenet_forward.1} parent=1 // pred_check_branch
      %2538 = sbr.rel (0) target = $region17
    $region16: #{basenet_forward.1} parent=1 // pred_region
      %2540 = vsyncadd [#allocation5], 0
      %s2541 = sshll.u32 [#allocation4], 4
      %s2542 = int_to_ptr.vmem [resolvable:$true] %s2541
      %s2543 = sshll.u32 %s3, 4
      %s2544 = int_to_ptr.hbm [resolvable:$true] %s2543
      %2549 = dma.vmem_to_hbm [thread:$0]  %s2542, 32, %s2544, [#allocation5], 16, 16, 1
    $region17: #{basenet_forward.1} parent=1 // pred_fallthru
      _
    // Predicated region
    $region18: #{basenet_forward.1} parent=1 // pred_check
      _
    $region19: #{basenet_forward.1} parent=1 // pred_check_branch
      %2551 = sbr.rel (0) target = $region21
    $region20: #{basenet_forward.1} parent=1 // pred_region
      %2553 = dma.done [#allocation3], 32
    $region21: #{basenet_forward.1} parent=1 // pred_fallthru
      _
    // Predicated region
    $region22: #{basenet_forward.1} parent=1 // pred_check
      _
    $region23: #{basenet_forward.1} parent=1 // pred_check_branch
      %2555 = sbr.rel (0) target = $region25
    $region24: #{basenet_forward.1} parent=1 // pred_region
      %2557 = dma.done [#allocation5], 32
    $region25: #{basenet_forward.1} parent=1 // pred_fallthru
      _
    %2558 = vsyncpa [#allocation3], 1
    %2559 = vsyncpa [#allocation5], 1

</llo_original>
